<compile_context>
chip_gen: v7x
topology: tpu7x:2x2x1
jax: 0.10.0
libtpu: 0.0.40
codegen_flags: <defaults>
</compile_context>

<pallas_src>
import jax
import jax.numpy as jnp
import numpy as np
from jax.experimental import pallas as pl
from jax.experimental.pallas import tpu as pltpu


# --------------------------------------------------------------------------
# Generation-dependent sizing helpers
# --------------------------------------------------------------------------
def _device_kind():
    try:
        return jax.devices()[0].device_kind.lower()
    except Exception:
        return ""


def _num_tensorcores():
    # v7x has 2 TensorCores per chip; everything earlier has 1.
    kind = _device_kind()
    return 2 if ("v7" in kind or "7x" in kind) else 1


def _vmem_limit_bytes():
    kind = _device_kind()
    if "v7" in kind or "7x" in kind:
        return 48 << 20          # 64 MiB physical per TC -> leave headroom
    if "v5" in kind or "v6" in kind:
        return 96 << 20          # 128 MiB physical
    return None                  # older gens: keep compiler default


# --------------------------------------------------------------------------
# Pallas kernel: iterative co-attention + gating + final attention + classifier
# --------------------------------------------------------------------------
def _coattn_kernel(v_ref, e_ref, m_ref, tm_ref, pw_ref,
                   w1_ref, b1_ref, w2t_ref, b2_ref, wc_ref, bc_ref,
                   z_ref, alpha_ref, cat_ref):
    NEG = jnp.float32(-1e9)
    BB, S, D2 = v_ref.shape
    T = e_ref.shape[1]

    e_bf = e_ref[...]                                  # (BB, T, D2) bf16 (MXU operand)
    v = v_ref[...].astype(jnp.float32)                 # running state in f32
    m = m_ref[...]                                     # (BB, S) f32
    tm = tm_ref[...]                                   # (BB, T) f32

    # hoisted loop invariants (JAX does not CSE broadcast_in_dim)
    m_col = m[:, :, None]                              # (BB, S, 1)
    pw = pw_ref[...][:, :, None]                       # (BB, S, 1)
    invalid_st = (m_col * tm[:, None, :]) == 0.0       # (BB, S, T)

    # dimension_numbers: contract on shared feature axis, batch over BB
    dn_score = (((2,), (2,)), ((0,), (0,)))   # v(b,s,d) x e(b,t,d) -> (b,s,t)
    dn_ctx = (((2,), (1,)), ((0,), (0,)))     # a(b,s,t) x e(b,t,d) -> (b,s,d)

    # two unrolled refinement iterations (matches `for i in range(2)` in torch)
    for i in range(2):
        v_bf = v.astype(jnp.bfloat16)
        a = jax.lax.dot_general(v_bf, e_bf, dimension_numbers=dn_score,
                                preferred_element_type=jnp.float32)      # (BB,S,T)
        a = jnp.where(invalid_st, NEG, a)
        a = a - jnp.max(a, axis=2, keepdims=True)                        # softmax dim=2
        a = jnp.exp(a)
        a = a * pl.reciprocal(jnp.sum(a, axis=2, keepdims=True), approx=True)
        aspect_mid = jax.lax.dot_general(a.astype(jnp.bfloat16), e_bf,
                                         dimension_numbers=dn_ctx,
                                         preferred_element_type=jnp.float32)  # (BB,S,D2)

        # fused linear1: single K = 2*D2 GEMM via persistent bf16 concat scratch
        cat_ref[:, :D2] = aspect_mid.astype(jnp.bfloat16).reshape(BB * S, D2)
        cat_ref[:, D2:] = v_bf.reshape(BB * S, D2)
        h = (jnp.dot(cat_ref[...], w1_ref[i],
                     preferred_element_type=jnp.float32)
             + b1_ref[i])                                                # (BB*S, D2)
        h = jnp.where(h > 0, h, jnp.float32(0.01) * h)                   # leaky_relu
        h = h.reshape(BB, S, D2)

        # gate (output width 1): VPU multiply + lane reduce, not an MXU matmul
        t = jax.nn.sigmoid(
            jnp.sum(v * w2t_ref[i][None], axis=-1, keepdims=True)
            + b2_ref[i][None])                                           # (BB, S, 1)
        v = (1.0 - t) * h + t * v
        v = pw * v

    # query = max over valid aspect positions of e (f32 for the masking value)
    e_q = jnp.where(tm[:, :, None] == 0.0, NEG, e_bf.astype(jnp.float32))
    query = jnp.max(e_q, axis=1)                                         # (BB, D2)

    # final attention logits (output width 1): VPU multiply + lane reduce
    logits = jnp.sum(v * query[:, None, :], axis=-1, keepdims=True)      # (BB, S, 1)
    logits = jnp.where(m_col == 0.0, NEG, logits)
    logits = logits - jnp.max(logits, axis=1, keepdims=True)             # softmax dim=1
    alpha = jnp.exp(logits)
    # exact divide for the returned attention weights (parity with torch)
    alpha = alpha / jnp.sum(alpha, axis=1, keepdims=True)

    z = jnp.sum(alpha * v, axis=1)                                       # (BB, D2)
    z = (jnp.dot(z.astype(jnp.bfloat16), wc_ref[...],
                 preferred_element_type=jnp.float32) + bc_ref[...])

    z_ref[...] = z.astype(z_ref.dtype)                                   # (BB, C)
    alpha_ref[...] = alpha[:, :, 0].astype(alpha_ref.dtype)              # lane-dense (BB, S)


def coattn_pallas(v, e, masks, target_masks, position_weight,
                  w1, b1, w2, b2, wc, bc, block_b=16):
    """v:(B,S,2H) e:(B,T,2H) masks:(B,S) target_masks:(B,T) pw:(B,S)
       w1:(2,4H,2H) b1:(2,1,2H) w2:(2,2H,1) b2:(2,1,1) wc:(2H,C) bc:(1,C)"""
    B, S, D2 = v.shape
    T = e.shape[1]
    D4 = 2 * D2
    C = wc.shape[1]

    ntc = _num_tensorcores()
    # per-step batch chunk:
    #   * multiple of 8 so (BB,S)/(BB,T)/(BB,C) blocks are sublane-aligned
    #   * default block_b=16 gives BB*S >= 256 at S=16 (fills MXU M dim)
    #   * grid keeps at least `ntc` steps so v7x uses both TensorCores
    BB = min(block_b, max(1, pl.cdiv(B, ntc)))
    BB = max(8, ((BB + 7) // 8) * 8)
    G = max(ntc, pl.cdiv(B, BB))
    Bp = G * BB

    f32 = jnp.float32
    bf16 = jnp.bfloat16
    masks = masks.astype(f32)
    target_masks = target_masks.astype(f32)
    position_weight = position_weight.astype(f32)
    # bf16 MXU operands (accumulation stays f32 inside the kernel); halves the
    # HBM->VMEM bytes for the two largest per-step inputs
    v = v.astype(bf16)
    e = e.astype(bf16)

    if Bp != B:
        # pad the batch with copies of row 0 (valid data, sliced off afterwards)
        def pad_b(x):
            pad = Bp - B
            return jnp.concatenate(
                [x, jnp.broadcast_to(x[:1], (pad,) + x.shape[1:])], axis=0)
        v, e, masks, target_masks, position_weight = (
            pad_b(v), pad_b(e), pad_b(masks), pad_b(target_masks),
            pad_b(position_weight))

    w1_bf = w1.astype(bf16)
    wc_bf = wc.astype(bf16)
    # pre-transpose the width-1 gate weight: kernel does a broadcast-mul + reduce
    w2t = jnp.transpose(w2, (0, 2, 1))          # (2, 1, D2)

    in_specs = [
        pl.BlockSpec((BB, S, D2), lambda g: (g, 0, 0)),   # v (bf16)
        pl.BlockSpec((BB, T, D2), lambda g: (g, 0, 0)),   # e (bf16)
        pl.BlockSpec((BB, S), lambda g: (g, 0)),          # masks
        pl.BlockSpec((BB, T), lambda g: (g, 0)),          # target masks
        pl.BlockSpec((BB, S), lambda g: (g, 0)),          # position weight
        pl.BlockSpec((2, D4, D2), lambda g: (0, 0, 0)),   # linear1 weights (bf16)
        pl.BlockSpec((2, 1, D2), lambda g: (0, 0, 0)),    # linear1 biases
        pl.BlockSpec((2, 1, D2), lambda g: (0, 0, 0)),    # linear2 weights (transposed)
        pl.BlockSpec((2, 1, 1), lambda g: (0, 0, 0)),     # linear2 biases
        pl.BlockSpec((D2, C), lambda g: (0, 0)),          # classifier weight (bf16)
        pl.BlockSpec((1, C), lambda g: (0, 0)),           # classifier bias
    ]
    out_specs = [
        pl.BlockSpec((BB, C), lambda g: (g, 0)),          # z     (lane-dense)
        pl.BlockSpec((BB, S), lambda g: (g, 0)),          # alpha (lane-dense)
    ]
    out_shape = (jax.ShapeDtypeStruct((Bp, C), f32),
                 jax.ShapeDtypeStruct((Bp, S), f32))

    z, alpha = pl.pallas_call(
        _coattn_kernel,
        out_shape=out_shape,
        grid_spec=pltpu.PrefetchScalarGridSpec(
            num_scalar_prefetch=0,
            grid=(G,),
            in_specs=in_specs,
            out_specs=out_specs,
            # persistent bf16 concat buffer for the fused K=2*D2 linear1 GEMM
            scratch_shapes=[pltpu.VMEM((BB * S, D4), bf16)],
        ),
        compiler_params=pltpu.CompilerParams(
            dimension_semantics=("parallel",),
            vmem_limit_bytes=_vmem_limit_bytes()),
    )(v, e, masks, target_masks, position_weight,
      w1_bf, b1, w2t, b2, wc_bf, bc)

    return z[:B], alpha[:B]                               # (B, C), (B, S)


# --------------------------------------------------------------------------
# Pure-JAX reference of the same block (for correctness checking)
# --------------------------------------------------------------------------
def coattn_ref(v, e, masks, target_masks, position_weight,
               w1, b1, w2, b2, wc, bc):
    NEG = jnp.float32(-1e9)
    mask_st = masks[:, :, None] * target_masks[:, None, :]
    for i in range(2):
        a = jnp.einsum('bsd,btd->bst', v, e)
        a = jnp.where(mask_st == 0, NEG, a)
        a = jax.nn.softmax(a, axis=2)
        aspect_mid = jnp.einsum('bst,btd->bsd', a, e)
        cat = jnp.concatenate([aspect_mid, v], axis=2)
        h = jax.nn.leaky_relu(jnp.einsum('bsf,fd->bsd', cat, w1[i]) + b1[i, 0],
                              negative_slope=0.01)
        t = jax.nn.sigmoid(jnp.einsum('bsd,do->bso', v, w2[i]) + b2[i, 0])
        v = (1.0 - t) * h + t * v
        v = position_weight[:, :, None] * v
    e_masked = jnp.where(target_masks[:, :, None] == 0, NEG, e)
    query = jnp.max(e_masked, axis=1, keepdims=True)               # (B,1,2H)
    alpha = jnp.einsum('bsd,bqd->bsq', v, query)                   # (B,S,1)
    alpha = jnp.where(masks[:, :, None] == 0, NEG, alpha)
    alpha = jax.nn.softmax(alpha, axis=1)
    z = jnp.einsum('bsq,bsd->bqd', alpha, v)[:, 0]                 # (B,2H)
    z = z @ wc + bc[0]
    return z, alpha[:, :, 0]


# --------------------------------------------------------------------------
# Length-masked bidirectional LSTM (DynamicLSTM equivalent), plain JAX glue
# --------------------------------------------------------------------------
def _reverse_within_len(x, lens):
    S = x.shape[1]
    t = jnp.arange(S)[None, :]
    rev = jnp.where(t < lens[:, None], lens[:, None] - 1 - t, t)
    return jnp.take_along_axis(x, rev[:, :, None], axis=1)


def _lstm_dir(x, params):
    Wih, Whh, bih, bhh = params          # (4H,E) (4H,H) (4H,) (4H,)
    H = Whh.shape[1]
    B = x.shape[0]

    def step(carry, x_t):
        h, c = carry
        gates = x_t @ Wih.T + h @ Whh.T + bih + bhh
        i, f, g, o = jnp.split(gates, 4, axis=-1)   # torch gate order i,f,g,o
        i = jax.nn.sigmoid(i)
        f = jax.nn.sigmoid(f)
        g = jnp.tanh(g)
        o = jax.nn.sigmoid(o)
        c = f * c + i * g
        h = o * jnp.tanh(c)
        return (h, c), h

    h0 = jnp.zeros((B, H), jnp.float32)
    c0 = jnp.zeros((B, H), jnp.float32)
    _, hs = jax.lax.scan(step, (h0, c0), jnp.swapaxes(x, 0, 1))
    return jnp.swapaxes(hs, 0, 1)        # (B,S,H)


def bilstm(x, lens, params):
    S = x.shape[1]
    valid = (jnp.arange(S)[None, :] < lens[:, None])[:, :, None].astype(x.dtype)
    out_f = _lstm_dir(x, params['fwd']) * valid
    x_rev = _reverse_within_len(x, lens)
    out_b = _reverse_within_len(_lstm_dir(x_rev, params['bwd']), lens) * valid
    return jnp.concatenate([out_f, out_b], axis=-1)   # (B,S,2H)


# --------------------------------------------------------------------------
# Full model forward (embeddings + biLSTMs in JAX, attention block in Pallas)
# --------------------------------------------------------------------------
def model_forward(params, feature_ids, aspect_ids, feature_lens, aspect_lens,
                  position_weight, masks, target_masks, target, use_pallas=True):
    emb = params['embedding']
    features = emb[feature_ids]          # (B,S,E)
    aspects = emb[aspect_ids]            # (B,T,E)
    v = bilstm(features, feature_lens, params['lstm1'])
    e = bilstm(aspects, aspect_lens, params['lstm2'])
    # dropout -> identity (inference)
    fn = coattn_pallas if use_pallas else coattn_ref
    z, alpha = fn(v, e, masks, target_masks, position_weight,
                  params['w1'], params['b1'], params['w2'], params['b2'],
                  params['wc'], params['bc'])
    # mirrors torch return: (z, alpha, target, a_mask, a_value) with initial=True
    return z, alpha, target, None, None


# --------------------------------------------------------------------------
def init_params(key, V, E, H, C):
    D2, D4 = 2 * H, 4 * H
    ks = jax.random.split(key, 16)

    emb = jax.random.normal(ks[0], (V, E), jnp.float32) * 0.1
    emb = emb.at[0].set(0.0)             # padding_idx=0

    def lstm_params(k, in_dim):
        k1, k2, k3, k4 = jax.random.split(k, 4)
        return (jax.random.normal(k1, (4 * H, in_dim), jnp.float32) * 0.1,
                jax.random.normal(k2, (4 * H, H), jnp.float32) * 0.1,
                jax.random.normal(k3, (4 * H,), jnp.float32) * 0.05,
                jax.random.normal(k4, (4 * H,), jnp.float32) * 0.05)

    params = {
        'embedding': emb,
        'lstm1': {'fwd': lstm_params(ks[1], E), 'bwd': lstm_params(ks[2], E)},
        'lstm2': {'fwd': lstm_params(ks[3], E), 'bwd': lstm_params(ks[4], E)},
        # linear1[i]: Linear(4H,2H) stored pre-transposed as (4H,2H) so x @ w
        'w1': jax.random.normal(ks[5], (2, D4, D2), jnp.float32) * 0.05,
        'b1': jax.random.normal(ks[6], (2, 1, D2), jnp.float32) * 0.05,
        # linear2[i]: Linear(2H,1) stored as (2H,1)
        'w2': jax.random.normal(ks[7], (2, D2, 1), jnp.float32) * 0.05,
        'b2': jax.random.normal(ks[8], (2, 1, 1), jnp.float32) * 0.05,
        # classifier: Linear(2H,C) stored as (2H,C)
        'wc': jax.random.normal(ks[9], (D2, C), jnp.float32) * 0.1,
        'bc': jax.random.normal(ks[10], (1, C), jnp.float32) * 0.05,
    }
    return params


if __name__ == "__main__":
    key = jax.random.PRNGKey(0)
    B, S, T = 2, 16, 8         # batch, sentence len, aspect len
    E, H, C = 32, 32, 3        # embed_dim, hidden_dim, num_classes
    V = 50                     # vocab size

    params = init_params(key, V, E, H, C)

    k1, k2, k3, k4 = jax.random.split(jax.random.PRNGKey(1), 4)
    feature_lens = jnp.array([16, 12], dtype=jnp.int32)
    aspect_lens = jnp.array([5, 3], dtype=jnp.int32)

    t_s = jnp.arange(S)[None, :]
    t_t = jnp.arange(T)[None, :]
    feature_ids = jnp.where(t_s < feature_lens[:, None],
                            jax.random.randint(k1, (B, S), 1, V), 0)
    aspect_ids = jnp.where(t_t < aspect_lens[:, None],
                           jax.random.randint(k2, (B, T), 1, V), 0)
    masks = (t_s < feature_lens[:, None]).astype(jnp.float32)
    target_masks = (t_t < aspect_lens[:, None]).astype(jnp.float32)
    position_weight = jax.random.uniform(k3, (B, S), jnp.float32, 0.5, 1.0) * masks
    target = jnp.array([1, 2], dtype=jnp.int32)

    z, alpha, tgt, a_mask, a_value = model_forward(
        params, feature_ids, aspect_ids, feature_lens, aspect_lens,
        position_weight, masks, target_masks, target, use_pallas=True)
    z = jax.block_until_ready(z)
    alpha = jax.block_until_ready(alpha)

    # reference check (pure JAX f32 path)
    z_ref, alpha_ref_, *_ = model_forward(
        params, feature_ids, aspect_ids, feature_lens, aspect_lens,
        position_weight, masks, target_masks, target, use_pallas=False)

    assert z.shape == (B, C) and alpha.shape == (B, S)
    assert np.all(np.isfinite(np.asarray(z))) and np.all(np.isfinite(np.asarray(alpha)))
    np.testing.assert_allclose(np.asarray(z), np.asarray(z_ref), rtol=5e-2, atol=5e-2)
    np.testing.assert_allclose(np.asarray(alpha), np.asarray(alpha_ref_),
                               rtol=5e-2, atol=5e-2)
    print("KERNEL_OK")
</pallas_src>

<mosaic_0001>
module attributes {stable_mosaic.version = 11 : i64} {
  func.func @_coattn_kernel(%arg0: i32, %arg1: memref<8x16x64xbf16, #tpu.memory_space<vmem>>, %arg2: memref<8x8x64xbf16, #tpu.memory_space<vmem>>, %arg3: memref<8x16xf32, #tpu.memory_space<vmem>>, %arg4: memref<8x8xf32, #tpu.memory_space<vmem>>, %arg5: memref<8x16xf32, #tpu.memory_space<vmem>>, %arg6: memref<2x128x64xbf16, #tpu.memory_space<vmem>>, %arg7: memref<2x1x64xf32, #tpu.memory_space<vmem>>, %arg8: memref<2x1x64xf32, #tpu.memory_space<vmem>>, %arg9: memref<2x1x1xf32, #tpu.memory_space<vmem>>, %arg10: memref<64x3xbf16, #tpu.memory_space<vmem>>, %arg11: memref<1x3xf32, #tpu.memory_space<vmem>>, %arg12: memref<8x3xf32, #tpu.memory_space<vmem>>, %arg13: memref<8x16xf32, #tpu.memory_space<vmem>>, %arg14: memref<128x128xbf16, #tpu.memory_space<vmem>>) attributes {dimension_semantics = [#tpu.dimension_semantics<parallel>], iteration_bounds = array<i64: 1>, scalar_prefetch = 0 : i64, scratch_operands = 1 : i64, tpu.core_type = #tpu.core_type<tc>, window_params = [{transform_indices = @transform_0, window_bounds = array<i64: 8, 16, 64>}, {transform_indices = @transform_1, window_bounds = array<i64: 8, 8, 64>}, {transform_indices = @transform_2, window_bounds = array<i64: 8, 16>}, {transform_indices = @transform_3, window_bounds = array<i64: 8, 8>}, {transform_indices = @transform_4, window_bounds = array<i64: 8, 16>}, {pipeline_mode = #tpu.pipeline_mode<synchronous>, transform_indices = @transform_5, window_bounds = array<i64: 2, 128, 64>}, {pipeline_mode = #tpu.pipeline_mode<synchronous>, transform_indices = @transform_6, window_bounds = array<i64: 2, 1, 64>}, {pipeline_mode = #tpu.pipeline_mode<synchronous>, transform_indices = @transform_7, window_bounds = array<i64: 2, 1, 64>}, {pipeline_mode = #tpu.pipeline_mode<synchronous>, transform_indices = @transform_8, window_bounds = array<i64: 2, 1, 1>}, {pipeline_mode = #tpu.pipeline_mode<synchronous>, transform_indices = @transform_9, window_bounds = array<i64: 64, 3>}, {pipeline_mode = #tpu.pipeline_mode<synchronous>, transform_indices = @transform_10, window_bounds = array<i64: 1, 3>}, {transform_indices = @transform_11, window_bounds = array<i64: 8, 3>}, {transform_indices = @transform_12, window_bounds = array<i64: 8, 16>}]} {
    %c0 = arith.constant 0 : index
    %c0_0 = arith.constant 0 : index
    %c0_1 = arith.constant 0 : index
    %0 = vector.load %arg2[%c0, %c0_0, %c0_1] : memref<8x8x64xbf16, #tpu.memory_space<vmem>>, vector<8x8x64xbf16>
    %c0_2 = arith.constant 0 : index
    %c0_3 = arith.constant 0 : index
    %c0_4 = arith.constant 0 : index
    %1 = vector.load %arg1[%c0_2, %c0_3, %c0_4] : memref<8x16x64xbf16, #tpu.memory_space<vmem>>, vector<8x16x64xbf16>
    %2 = arith.extf %1 : vector<8x16x64xbf16> to vector<8x16x64xf32>
    %c0_5 = arith.constant 0 : index
    %c0_6 = arith.constant 0 : index
    %3 = vector.load %arg3[%c0_5, %c0_6] : memref<8x16xf32, #tpu.memory_space<vmem>>, vector<8x16xf32>
    %c0_7 = arith.constant 0 : index
    %c0_8 = arith.constant 0 : index
    %4 = vector.load %arg4[%c0_7, %c0_8] : memref<8x8xf32, #tpu.memory_space<vmem>>, vector<8x8xf32>
    %5 = vector.shape_cast %3 : vector<8x16xf32> to vector<8x16x1xf32>
    %c0_9 = arith.constant 0 : index
    %c0_10 = arith.constant 0 : index
    %6 = vector.load %arg5[%c0_9, %c0_10] : memref<8x16xf32, #tpu.memory_space<vmem>>, vector<8x16xf32>
    %7 = vector.shape_cast %6 : vector<8x16xf32> to vector<8x16x1xf32>
    %8 = vector.shape_cast %4 : vector<8x8xf32> to vector<8x1x8xf32>
    %9 = vector.broadcast %5 : vector<8x16x1xf32> to vector<8x16x8xf32>
    %10 = vector.broadcast %8 : vector<8x1x8xf32> to vector<8x16x8xf32>
    %11 = arith.mulf %9, %10 : vector<8x16x8xf32>
    %cst = arith.constant 0.000000e+00 : f32
    %12 = vector.broadcast %cst : f32 to vector<8x16x8xf32>
    %13 = arith.cmpf oeq, %11, %12 : vector<8x16x8xf32>
    %14 = arith.truncf %2 : vector<8x16x64xf32> to vector<8x16x64xbf16>
    %cst_11 = arith.constant dense<0.000000e+00> : vector<8x16x8xf32>
    %15 = tpu.matmul %14, %0, %cst_11 {dimension_numbers = #tpu.dot_dimension_numbers<[2], [2], [1], [1], [0, 0, 0, 1, 1, 1], [0], [0]>} : vector<8x16x64xbf16>, vector<8x8x64xbf16>, vector<8x16x8xf32> -> vector<8x16x8xf32>
    %cst_12 = arith.constant -1.000000e+09 : f32
    %16 = vector.broadcast %cst_12 : f32 to vector<8x16x8xf32>
    %17 = arith.select %13, %16, %15 : vector<8x16x8xi1>, vector<8x16x8xf32>
    %cst_13 = arith.constant dense<0xFF800000> : vector<8x16xf32>
    %18 = vector.multi_reduction <maximumf>, %17, %cst_13 [2] : vector<8x16x8xf32> to vector<8x16xf32>
    %19 = vector.shape_cast %18 : vector<8x16xf32> to vector<8x16x1xf32>
    %20 = vector.broadcast %19 : vector<8x16x1xf32> to vector<8x16x8xf32>
    %21 = arith.subf %17, %20 : vector<8x16x8xf32>
    %22 = math.exp %21 : vector<8x16x8xf32>
    %cst_14 = arith.constant dense<0.000000e+00> : vector<8x16xf32>
    %23 = vector.multi_reduction <add>, %22, %cst_14 [2] : vector<8x16x8xf32> to vector<8x16xf32>
    %24 = vector.shape_cast %23 : vector<8x16xf32> to vector<8x16x1xf32>
    %25 = tpu.reciprocal %24 {approx = true} : vector<8x16x1xf32> -> vector<8x16x1xf32>
    %26 = vector.broadcast %25 : vector<8x16x1xf32> to vector<8x16x8xf32>
    %27 = arith.mulf %22, %26 : vector<8x16x8xf32>
    %28 = arith.truncf %27 : vector<8x16x8xf32> to vector<8x16x8xbf16>
    %cst_15 = arith.constant dense<0.000000e+00> : vector<8x16x64xf32>
    %29 = tpu.matmul %28, %0, %cst_15 {dimension_numbers = #tpu.dot_dimension_numbers<[2], [1], [1], [2], [0, 0, 0, 1, 1, 2], [0], [0]>} : vector<8x16x8xbf16>, vector<8x8x64xbf16>, vector<8x16x64xf32> -> vector<8x16x64xf32>
    %30 = arith.truncf %29 : vector<8x16x64xf32> to vector<8x16x64xbf16>
    %31 = vector.shape_cast %30 : vector<8x16x64xbf16> to vector<128x64xbf16>
    %c0_16 = arith.constant 0 : index
    %c0_17 = arith.constant 0 : index
    %32 = vector.load %arg14[%c0_16, %c0_17] : memref<128x128xbf16, #tpu.memory_space<vmem>>, vector<128x64xbf16>
    tpu.vector_store %arg14[%c0_16, %c0_17], %31 {strides = array<i32>} : memref<128x128xbf16, #tpu.memory_space<vmem>>, vector<128x64xbf16>,
    %33 = vector.shape_cast %14 : vector<8x16x64xbf16> to vector<128x64xbf16>
    %c0_18 = arith.constant 0 : index
    %c64 = arith.constant 64 : index
    %34 = vector.load %arg14[%c0_18, %c64] : memref<128x128xbf16, #tpu.memory_space<vmem>>, vector<128x64xbf16>
    tpu.vector_store %arg14[%c0_18, %c64], %33 {strides = array<i32>} : memref<128x128xbf16, #tpu.memory_space<vmem>>, vector<128x64xbf16>,
    %c0_19 = arith.constant 0 : index
    %c0_20 = arith.constant 0 : index
    %35 = vector.load %arg14[%c0_19, %c0_20] : memref<128x128xbf16, #tpu.memory_space<vmem>>, vector<128x128xbf16>
    %c0_21 = arith.constant 0 : index
    %c0_22 = arith.constant 0 : index
    %c0_23 = arith.constant 0 : index
    %36 = vector.load %arg6[%c0_21, %c0_22, %c0_23] : memref<2x128x64xbf16, #tpu.memory_space<vmem>>, vector<1x128x64xbf16>
    %37 = vector.shape_cast %36 : vector<1x128x64xbf16> to vector<128x64xbf16>
    %cst_24 = arith.constant dense<0.000000e+00> : vector<128x64xf32>
    %38 = tpu.matmul %35, %37, %cst_24 {dimension_numbers = #tpu.dot_dimension_numbers<[1], [0], [0], [1], [0, 0, 1, 1], [], []>} : vector<128x128xbf16>, vector<128x64xbf16>, vector<128x64xf32> -> vector<128x64xf32>
    %c0_25 = arith.constant 0 : index
    %c0_26 = arith.constant 0 : index
    %c0_27 = arith.constant 0 : index
    %39 = vector.load %arg7[%c0_25, %c0_26, %c0_27] : memref<2x1x64xf32, #tpu.memory_space<vmem>>, vector<1x1x64xf32>
    %40 = vector.shape_cast %39 : vector<1x1x64xf32> to vector<1x64xf32>
    %41 = vector.broadcast %40 : vector<1x64xf32> to vector<128x64xf32>
    %42 = arith.addf %38, %41 : vector<128x64xf32>
    %cst_28 = arith.constant 0.000000e+00 : f32
    %43 = vector.broadcast %cst_28 : f32 to vector<128x64xf32>
    %44 = arith.cmpf ogt, %42, %43 : vector<128x64xf32>
    %cst_29 = arith.constant 0.00999999977 : f32
    %45 = vector.broadcast %cst_29 : f32 to vector<128x64xf32>
    %46 = arith.mulf %45, %42 : vector<128x64xf32>
    %47 = arith.select %44, %42, %46 : vector<128x64xi1>, vector<128x64xf32>
    %48 = vector.shape_cast %47 : vector<128x64xf32> to vector<8x16x64xf32>
    %c0_30 = arith.constant 0 : index
    %c0_31 = arith.constant 0 : index
    %c0_32 = arith.constant 0 : index
    %49 = vector.load %arg8[%c0_30, %c0_31, %c0_32] : memref<2x1x64xf32, #tpu.memory_space<vmem>>, vector<1x1x64xf32>
    %50 = vector.shape_cast %49 : vector<1x1x64xf32> to vector<1x64xf32>
    %51 = vector.shape_cast %50 : vector<1x64xf32> to vector<1x1x64xf32>
    %52 = vector.broadcast %51 : vector<1x1x64xf32> to vector<8x16x64xf32>
    %53 = arith.mulf %2, %52 : vector<8x16x64xf32>
    %cst_33 = arith.constant dense<0.000000e+00> : vector<8x16xf32>
    %54 = vector.multi_reduction <add>, %53, %cst_33 [2] : vector<8x16x64xf32> to vector<8x16xf32>
    %55 = vector.shape_cast %54 : vector<8x16xf32> to vector<8x16x1xf32>
    %c0_34 = arith.constant 0 : index
    %c0_35 = arith.constant 0 : index
    %c0_36 = arith.constant 0 : index
    %56 = vector.load %arg9[%c0_34, %c0_35, %c0_36] : memref<2x1x1xf32, #tpu.memory_space<vmem>>, vector<1x1x1xf32>
    %57 = vector.shape_cast %56 : vector<1x1x1xf32> to vector<1x1xf32>
    %58 = vector.shape_cast %57 : vector<1x1xf32> to vector<1x1x1xf32>
    %59 = vector.broadcast %58 : vector<1x1x1xf32> to vector<8x16x1xf32>
    %60 = arith.addf %55, %59 : vector<8x16x1xf32>
    %61 = arith.negf %60 : vector<8x16x1xf32>
    %62 = math.exp %61 : vector<8x16x1xf32>
    %cst_37 = arith.constant 1.000000e+00 : f32
    %63 = vector.broadcast %cst_37 : f32 to vector<8x16x1xf32>
    %64 = arith.addf %63, %62 : vector<8x16x1xf32>
    %65 = arith.divf %63, %64 : vector<8x16x1xf32>
    %cst_38 = arith.constant 1.000000e+00 : f32
    %66 = vector.broadcast %cst_38 : f32 to vector<8x16x1xf32>
    %67 = arith.subf %66, %65 : vector<8x16x1xf32>
    %68 = vector.broadcast %67 : vector<8x16x1xf32> to vector<8x16x64xf32>
    %69 = arith.mulf %68, %48 : vector<8x16x64xf32>
    %70 = vector.broadcast %65 : vector<8x16x1xf32> to vector<8x16x64xf32>
    %71 = arith.mulf %70, %2 : vector<8x16x64xf32>
    %72 = arith.addf %69, %71 : vector<8x16x64xf32>
    %73 = vector.broadcast %7 : vector<8x16x1xf32> to vector<8x16x64xf32>
    %74 = arith.mulf %73, %72 : vector<8x16x64xf32>
    %75 = arith.truncf %74 : vector<8x16x64xf32> to vector<8x16x64xbf16>
    %cst_39 = arith.constant dense<0.000000e+00> : vector<8x16x8xf32>
    %76 = tpu.matmul %75, %0, %cst_39 {dimension_numbers = #tpu.dot_dimension_numbers<[2], [2], [1], [1], [0, 0, 0, 1, 1, 1], [0], [0]>} : vector<8x16x64xbf16>, vector<8x8x64xbf16>, vector<8x16x8xf32> -> vector<8x16x8xf32>
    %cst_40 = arith.constant -1.000000e+09 : f32
    %77 = vector.broadcast %cst_40 : f32 to vector<8x16x8xf32>
    %78 = arith.select %13, %77, %76 : vector<8x16x8xi1>, vector<8x16x8xf32>
    %cst_41 = arith.constant dense<0xFF800000> : vector<8x16xf32>
    %79 = vector.multi_reduction <maximumf>, %78, %cst_41 [2] : vector<8x16x8xf32> to vector<8x16xf32>
    %80 = vector.shape_cast %79 : vector<8x16xf32> to vector<8x16x1xf32>
    %81 = vector.broadcast %80 : vector<8x16x1xf32> to vector<8x16x8xf32>
    %82 = arith.subf %78, %81 : vector<8x16x8xf32>
    %83 = math.exp %82 : vector<8x16x8xf32>
    %cst_42 = arith.constant dense<0.000000e+00> : vector<8x16xf32>
    %84 = vector.multi_reduction <add>, %83, %cst_42 [2] : vector<8x16x8xf32> to vector<8x16xf32>
    %85 = vector.shape_cast %84 : vector<8x16xf32> to vector<8x16x1xf32>
    %86 = tpu.reciprocal %85 {approx = true} : vector<8x16x1xf32> -> vector<8x16x1xf32>
    %87 = vector.broadcast %86 : vector<8x16x1xf32> to vector<8x16x8xf32>
    %88 = arith.mulf %83, %87 : vector<8x16x8xf32>
    %89 = arith.truncf %88 : vector<8x16x8xf32> to vector<8x16x8xbf16>
    %cst_43 = arith.constant dense<0.000000e+00> : vector<8x16x64xf32>
    %90 = tpu.matmul %89, %0, %cst_43 {dimension_numbers = #tpu.dot_dimension_numbers<[2], [1], [1], [2], [0, 0, 0, 1, 1, 2], [0], [0]>} : vector<8x16x8xbf16>, vector<8x8x64xbf16>, vector<8x16x64xf32> -> vector<8x16x64xf32>
    %91 = arith.truncf %90 : vector<8x16x64xf32> to vector<8x16x64xbf16>
    %92 = vector.shape_cast %91 : vector<8x16x64xbf16> to vector<128x64xbf16>
    %c0_44 = arith.constant 0 : index
    %c0_45 = arith.constant 0 : index
    %93 = vector.load %arg14[%c0_44, %c0_45] : memref<128x128xbf16, #tpu.memory_space<vmem>>, vector<128x64xbf16>
    tpu.vector_store %arg14[%c0_44, %c0_45], %92 {strides = array<i32>} : memref<128x128xbf16, #tpu.memory_space<vmem>>, vector<128x64xbf16>,
    %94 = vector.shape_cast %75 : vector<8x16x64xbf16> to vector<128x64xbf16>
    %c0_46 = arith.constant 0 : index
    %c64_47 = arith.constant 64 : index
    %95 = vector.load %arg14[%c0_46, %c64_47] : memref<128x128xbf16, #tpu.memory_space<vmem>>, vector<128x64xbf16>
    tpu.vector_store %arg14[%c0_46, %c64_47], %94 {strides = array<i32>} : memref<128x128xbf16, #tpu.memory_space<vmem>>, vector<128x64xbf16>,
    %c0_48 = arith.constant 0 : index
    %c0_49 = arith.constant 0 : index
    %96 = vector.load %arg14[%c0_48, %c0_49] : memref<128x128xbf16, #tpu.memory_space<vmem>>, vector<128x128xbf16>
    %c1 = arith.constant 1 : index
    %c0_50 = arith.constant 0 : index
    %c0_51 = arith.constant 0 : index
    %97 = vector.load %arg6[%c1, %c0_50, %c0_51] : memref<2x128x64xbf16, #tpu.memory_space<vmem>>, vector<1x128x64xbf16>
    %98 = vector.shape_cast %97 : vector<1x128x64xbf16> to vector<128x64xbf16>
    %cst_52 = arith.constant dense<0.000000e+00> : vector<128x64xf32>
    %99 = tpu.matmul %96, %98, %cst_52 {dimension_numbers = #tpu.dot_dimension_numbers<[1], [0], [0], [1], [0, 0, 1, 1], [], []>} : vector<128x128xbf16>, vector<128x64xbf16>, vector<128x64xf32> -> vector<128x64xf32>
    %c1_53 = arith.constant 1 : index
    %c0_54 = arith.constant 0 : index
    %c0_55 = arith.constant 0 : index
    %100 = vector.load %arg7[%c1_53, %c0_54, %c0_55] : memref<2x1x64xf32, #tpu.memory_space<vmem>>, vector<1x1x64xf32>
    %101 = vector.shape_cast %100 : vector<1x1x64xf32> to vector<1x64xf32>
    %102 = vector.broadcast %101 : vector<1x64xf32> to vector<128x64xf32>
    %103 = arith.addf %99, %102 : vector<128x64xf32>
    %cst_56 = arith.constant 0.000000e+00 : f32
    %104 = vector.broadcast %cst_56 : f32 to vector<128x64xf32>
    %105 = arith.cmpf ogt, %103, %104 : vector<128x64xf32>
    %cst_57 = arith.constant 0.00999999977 : f32
    %106 = vector.broadcast %cst_57 : f32 to vector<128x64xf32>
    %107 = arith.mulf %106, %103 : vector<128x64xf32>
    %108 = arith.select %105, %103, %107 : vector<128x64xi1>, vector<128x64xf32>
    %109 = vector.shape_cast %108 : vector<128x64xf32> to vector<8x16x64xf32>
    %c1_58 = arith.constant 1 : index
    %c0_59 = arith.constant 0 : index
    %c0_60 = arith.constant 0 : index
    %110 = vector.load %arg8[%c1_58, %c0_59, %c0_60] : memref<2x1x64xf32, #tpu.memory_space<vmem>>, vector<1x1x64xf32>
    %111 = vector.shape_cast %110 : vector<1x1x64xf32> to vector<1x64xf32>
    %112 = vector.shape_cast %111 : vector<1x64xf32> to vector<1x1x64xf32>
    %113 = vector.broadcast %112 : vector<1x1x64xf32> to vector<8x16x64xf32>
    %114 = arith.mulf %74, %113 : vector<8x16x64xf32>
    %cst_61 = arith.constant dense<0.000000e+00> : vector<8x16xf32>
    %115 = vector.multi_reduction <add>, %114, %cst_61 [2] : vector<8x16x64xf32> to vector<8x16xf32>
    %116 = vector.shape_cast %115 : vector<8x16xf32> to vector<8x16x1xf32>
    %c1_62 = arith.constant 1 : index
    %c0_63 = arith.constant 0 : index
    %c0_64 = arith.constant 0 : index
    %117 = vector.load %arg9[%c1_62, %c0_63, %c0_64] : memref<2x1x1xf32, #tpu.memory_space<vmem>>, vector<1x1x1xf32>
    %118 = vector.shape_cast %117 : vector<1x1x1xf32> to vector<1x1xf32>
    %119 = vector.shape_cast %118 : vector<1x1xf32> to vector<1x1x1xf32>
    %120 = vector.broadcast %119 : vector<1x1x1xf32> to vector<8x16x1xf32>
    %121 = arith.addf %116, %120 : vector<8x16x1xf32>
    %122 = arith.negf %121 : vector<8x16x1xf32>
    %123 = math.exp %122 : vector<8x16x1xf32>
    %cst_65 = arith.constant 1.000000e+00 : f32
    %124 = vector.broadcast %cst_65 : f32 to vector<8x16x1xf32>
    %125 = arith.addf %124, %123 : vector<8x16x1xf32>
    %126 = arith.divf %124, %125 : vector<8x16x1xf32>
    %cst_66 = arith.constant 1.000000e+00 : f32
    %127 = vector.broadcast %cst_66 : f32 to vector<8x16x1xf32>
    %128 = arith.subf %127, %126 : vector<8x16x1xf32>
    %129 = vector.broadcast %128 : vector<8x16x1xf32> to vector<8x16x64xf32>
    %130 = arith.mulf %129, %109 : vector<8x16x64xf32>
    %131 = vector.broadcast %126 : vector<8x16x1xf32> to vector<8x16x64xf32>
    %132 = arith.mulf %131, %74 : vector<8x16x64xf32>
    %133 = arith.addf %130, %132 : vector<8x16x64xf32>
    %134 = vector.broadcast %7 : vector<8x16x1xf32> to vector<8x16x64xf32>
    %135 = arith.mulf %134, %133 : vector<8x16x64xf32>
    %136 = vector.shape_cast %4 : vector<8x8xf32> to vector<8x8x1xf32>
    %cst_67 = arith.constant 0.000000e+00 : f32
    %137 = vector.broadcast %cst_67 : f32 to vector<8x8x1xf32>
    %138 = arith.cmpf oeq, %136, %137 : vector<8x8x1xf32>
    %139 = arith.extf %0 : vector<8x8x64xbf16> to vector<8x8x64xf32>
    %cst_68 = arith.constant -1.000000e+09 : f32
    %140 = vector.shape_cast %138 : vector<8x8x1xi1> to vector<8x8x1xi1>
    %141 = vector.broadcast %140 : vector<8x8x1xi1> to vector<8x8x64xi1>
    %142 = vector.broadcast %cst_68 : f32 to vector<8x8x64xf32>
    %143 = arith.select %141, %142, %139 : vector<8x8x64xi1>, vector<8x8x64xf32>
    %cst_69 = arith.constant dense<0xFF800000> : vector<8x64xf32>
    %144 = vector.multi_reduction <maximumf>, %143, %cst_69 [1] : vector<8x8x64xf32> to vector<8x64xf32>
    %145 = vector.shape_cast %144 : vector<8x64xf32> to vector<8x1x64xf32>
    %146 = vector.broadcast %145 : vector<8x1x64xf32> to vector<8x16x64xf32>
    %147 = arith.mulf %135, %146 : vector<8x16x64xf32>
    %cst_70 = arith.constant dense<0.000000e+00> : vector<8x16xf32>
    %148 = vector.multi_reduction <add>, %147, %cst_70 [2] : vector<8x16x64xf32> to vector<8x16xf32>
    %149 = vector.shape_cast %148 : vector<8x16xf32> to vector<8x16x1xf32>
    %cst_71 = arith.constant 0.000000e+00 : f32
    %150 = vector.broadcast %cst_71 : f32 to vector<8x16x1xf32>
    %151 = arith.cmpf oeq, %5, %150 : vector<8x16x1xf32>
    %cst_72 = arith.constant -1.000000e+09 : f32
    %152 = vector.broadcast %cst_72 : f32 to vector<8x16x1xf32>
    %153 = arith.select %151, %152, %149 : vector<8x16x1xi1>, vector<8x16x1xf32>
    %cst_73 = arith.constant dense<0xFF800000> : vector<8x1xf32>
    %154 = vector.multi_reduction <maximumf>, %153, %cst_73 [1] : vector<8x16x1xf32> to vector<8x1xf32>
    %155 = vector.shape_cast %154 : vector<8x1xf32> to vector<8x1x1xf32>
    %156 = vector.broadcast %155 : vector<8x1x1xf32> to vector<8x16x1xf32>
    %157 = arith.subf %153, %156 : vector<8x16x1xf32>
    %158 = math.exp %157 : vector<8x16x1xf32>
    %cst_74 = arith.constant dense<0.000000e+00> : vector<8x1xf32>
    %159 = vector.multi_reduction <add>, %158, %cst_74 [1] : vector<8x16x1xf32> to vector<8x1xf32>
    %160 = vector.shape_cast %159 : vector<8x1xf32> to vector<8x1x1xf32>
    %161 = vector.broadcast %160 : vector<8x1x1xf32> to vector<8x16x1xf32>
    %162 = arith.divf %158, %161 : vector<8x16x1xf32>
    %163 = vector.broadcast %162 : vector<8x16x1xf32> to vector<8x16x64xf32>
    %164 = arith.mulf %163, %135 : vector<8x16x64xf32>
    %cst_75 = arith.constant dense<0.000000e+00> : vector<8x64xf32>
    %165 = vector.multi_reduction <add>, %164, %cst_75 [1] : vector<8x16x64xf32> to vector<8x64xf32>
    %166 = arith.truncf %165 : vector<8x64xf32> to vector<8x64xbf16>
    %c0_76 = arith.constant 0 : index
    %c0_77 = arith.constant 0 : index
    %167 = vector.load %arg10[%c0_76, %c0_77] : memref<64x3xbf16, #tpu.memory_space<vmem>>, vector<64x3xbf16>
    %cst_78 = arith.constant dense<0.000000e+00> : vector<8x3xf32>
    %168 = tpu.matmul %166, %167, %cst_78 {dimension_numbers = #tpu.dot_dimension_numbers<[1], [0], [0], [1], [0, 0, 1, 1], [], []>} : vector<8x64xbf16>, vector<64x3xbf16>, vector<8x3xf32> -> vector<8x3xf32>
    %c0_79 = arith.constant 0 : index
    %c0_80 = arith.constant 0 : index
    %169 = vector.load %arg11[%c0_79, %c0_80] : memref<1x3xf32, #tpu.memory_space<vmem>>, vector<1x3xf32>
    %170 = vector.broadcast %169 : vector<1x3xf32> to vector<8x3xf32>
    %171 = arith.addf %168, %170 : vector<8x3xf32>
    %c0_81 = arith.constant 0 : index
    %c0_82 = arith.constant 0 : index
    %172 = vector.load %arg12[%c0_81, %c0_82] : memref<8x3xf32, #tpu.memory_space<vmem>>, vector<8x3xf32>
    tpu.vector_store %arg12[%c0_81, %c0_82], %171 {strides = array<i32>} : memref<8x3xf32, #tpu.memory_space<vmem>>, vector<8x3xf32>,
    %173 = vector.shape_cast %162 : vector<8x16x1xf32> to vector<8x16xf32>
    %c0_83 = arith.constant 0 : index
    %c0_84 = arith.constant 0 : index
    %174 = vector.load %arg13[%c0_83, %c0_84] : memref<8x16xf32, #tpu.memory_space<vmem>>, vector<8x16xf32>
    tpu.vector_store %arg13[%c0_83, %c0_84], %173 {strides = array<i32>} : memref<8x16xf32, #tpu.memory_space<vmem>>, vector<8x16xf32>,
    return
  }
  func.func @transform_0(%arg0: i32) -> (i32, i32, i32) {
    %c0_i32 = arith.constant 0 : i32
    %c0_i32_0 = arith.constant 0 : i32
    %c0_i32_1 = arith.constant 0 : i32
    return %arg0, %c0_i32, %c0_i32_0 : i32, i32, i32
  }
  func.func @transform_1(%arg0: i32) -> (i32, i32, i32) {
    %c0_i32 = arith.constant 0 : i32
    %c0_i32_0 = arith.constant 0 : i32
    %c0_i32_1 = arith.constant 0 : i32
    return %arg0, %c0_i32, %c0_i32_0 : i32, i32, i32
  }
  func.func @transform_2(%arg0: i32) -> (i32, i32) {
    %c0_i32 = arith.constant 0 : i32
    %c0_i32_0 = arith.constant 0 : i32
    return %arg0, %c0_i32 : i32, i32
  }
  func.func @transform_3(%arg0: i32) -> (i32, i32) {
    %c0_i32 = arith.constant 0 : i32
    %c0_i32_0 = arith.constant 0 : i32
    return %arg0, %c0_i32 : i32, i32
  }
  func.func @transform_4(%arg0: i32) -> (i32, i32) {
    %c0_i32 = arith.constant 0 : i32
    %c0_i32_0 = arith.constant 0 : i32
    return %arg0, %c0_i32 : i32, i32
  }
  func.func @transform_5(%arg0: i32) -> (i32, i32, i32) {
    %c0_i32 = arith.constant 0 : i32
    %c0_i32_0 = arith.constant 0 : i32
    %c0_i32_1 = arith.constant 0 : i32
    %c0_i32_2 = arith.constant 0 : i32
    return %c0_i32, %c0_i32_0, %c0_i32_1 : i32, i32, i32
  }
  func.func @transform_6(%arg0: i32) -> (i32, i32, i32) {
    %c0_i32 = arith.constant 0 : i32
    %c0_i32_0 = arith.constant 0 : i32
    %c0_i32_1 = arith.constant 0 : i32
    %c0_i32_2 = arith.constant 0 : i32
    return %c0_i32, %c0_i32_0, %c0_i32_1 : i32, i32, i32
  }
  func.func @transform_7(%arg0: i32) -> (i32, i32, i32) {
    %c0_i32 = arith.constant 0 : i32
    %c0_i32_0 = arith.constant 0 : i32
    %c0_i32_1 = arith.constant 0 : i32
    %c0_i32_2 = arith.constant 0 : i32
    return %c0_i32, %c0_i32_0, %c0_i32_1 : i32, i32, i32
  }
  func.func @transform_8(%arg0: i32) -> (i32, i32, i32) {
    %c0_i32 = arith.constant 0 : i32
    %c0_i32_0 = arith.constant 0 : i32
    %c0_i32_1 = arith.constant 0 : i32
    %c0_i32_2 = arith.constant 0 : i32
    return %c0_i32, %c0_i32_0, %c0_i32_1 : i32, i32, i32
  }
  func.func @transform_9(%arg0: i32) -> (i32, i32) {
    %c0_i32 = arith.constant 0 : i32
    %c0_i32_0 = arith.constant 0 : i32
    %c0_i32_1 = arith.constant 0 : i32
    return %c0_i32, %c0_i32_0 : i32, i32
  }
  func.func @transform_10(%arg0: i32) -> (i32, i32) {
    %c0_i32 = arith.constant 0 : i32
    %c0_i32_0 = arith.constant 0 : i32
    %c0_i32_1 = arith.constant 0 : i32
    return %c0_i32, %c0_i32_0 : i32, i32
  }
  func.func @transform_11(%arg0: i32) -> (i32, i32) {
    %c0_i32 = arith.constant 0 : i32
    %c0_i32_0 = arith.constant 0 : i32
    return %arg0, %c0_i32 : i32, i32
  }
  func.func @transform_12(%arg0: i32) -> (i32, i32) {
    %c0_i32 = arith.constant 0 : i32
    %c0_i32_0 = arith.constant 0 : i32
    return %arg0, %c0_i32 : i32, i32
  }
}

</mosaic_0001>

<llo_original>
// kernel: tpu_custom_call.1
$region0: #{tpu_custom_call.1}
  #allocation0 [shape = 'u32[]', space=smem, size = 0x4, offset = 0x4, fixed_abs, tag = 'smem constant byte address 0x4 - core index']
  #allocation1 [shape = 'u32[144,128]{1,0:T(1,128)}', space=vmem, size = 0x12000, scoped, tag = 'internal scratch']
  #allocation2 [shape = 'bf16[128,128]{1,0:T(16,128)(2,1)}', space=vmem, size = 0x8000, scoped, tag = 'scratch operand']
  %s0 = inlined_call_operand.vmem [shape: bf16[8,16,64], index: 0, kind: input, shape index: {}]
  %s1 = inlined_call_operand.vmem [shape: bf16[8,8,64], index: 1, kind: input, shape index: {}]
  %s2 = inlined_call_operand.vmem [shape: f32[8,16], index: 2, kind: input, shape index: {}]
  %s3 = inlined_call_operand.vmem [shape: f32[8,8], index: 3, kind: input, shape index: {}]
  %s4 = inlined_call_operand.vmem [shape: f32[8,16], index: 4, kind: input, shape index: {}]
  %s5 = inlined_call_operand.vmem [shape: bf16[2,128,64], index: 5, kind: input, shape index: {}]
  %s6 = inlined_call_operand.vmem [shape: f32[2,1,64], index: 6, kind: input, shape index: {}]
  %s7 = inlined_call_operand.vmem [shape: f32[2,1,64], index: 7, kind: input, shape index: {}]
  %s8 = inlined_call_operand.vmem [shape: f32[2,1,1], index: 8, kind: input, shape index: {}]
  %s9 = inlined_call_operand.vmem [shape: bf16[64,3], index: 9, kind: input, shape index: {}]
  %s10 = inlined_call_operand.vmem [shape: f32[1,3], index: 10, kind: input, shape index: {}]
  %s11 = inlined_call_operand.vmem [shape: f32[8,3], index: 11, kind: output, shape index: {0}]
  %s12 = inlined_call_operand.hbm [shape: f32[8,16], index: 12, kind: output, shape index: {1}]
  %13 = xla_tuple %s11, %s12
  %s14 = sld [smem:[#allocation0]]
  $region62: #{tpu_custom_call.1} parent=0
    _
  %s16 = ssub.s32 1, %s14
  %s17 = scalar_select 0, %s16, %s14
  $region1: #{tpu_custom_call.1} parent=0
    #allocation3 [shape = 'u8[4096]{0}', space=vmem, size = 0x1000, scoped, tag = 'output window, operand 1, single buffered']
    #allocation4 [shape = 's32[1]{0}', space=sflag, size = 0x4, scoped, tag = 'scoped memory for tpu_custom_call.1']
    %18 = vsyncpa [#allocation4], 0
    // Predicated region
    $region2: #{tpu_custom_call.1} parent=1 // pred_check
      _
    $region3: #{tpu_custom_call.1} parent=1 // pred_check_branch
      %20 = sbr.rel (0) target = $region5
    $region4: #{tpu_custom_call.1} parent=1 // pred_region
      _
    $region5: #{tpu_custom_call.1} parent=1 // pred_fallthru
      _
    // Predicated region
    $region6: #{tpu_custom_call.1} parent=1 // pred_check
      _
    $region7: #{tpu_custom_call.1} parent=1 // pred_check_branch
      %22 = sbr.rel (0) target = $region9
    $region8: #{tpu_custom_call.1} parent=1 // pred_region
      _
    $region9: #{tpu_custom_call.1} parent=1 // pred_fallthru
      _
    // Predicated region
    $region10: #{tpu_custom_call.1} parent=1 // pred_check
      _
    $region11: #{tpu_custom_call.1} parent=1 // pred_check_branch
      %24 = sbr.rel (0) target = $region13
    $region12: #{tpu_custom_call.1} parent=1 // pred_region
      _
    $region13: #{tpu_custom_call.1} parent=1 // pred_fallthru
      _
    // Predicated region
    $region14: #{tpu_custom_call.1} parent=1 // pred_check
      _
    $region15: #{tpu_custom_call.1} parent=1 // pred_check_branch
      %26 = sbr.rel (0) target = $region17
    $region16: #{tpu_custom_call.1} parent=1 // pred_region
      _
    $region17: #{tpu_custom_call.1} parent=1 // pred_fallthru
      _
    // Predicated region
    $region18: #{tpu_custom_call.1} parent=1 // pred_check
      _
    $region19: #{tpu_custom_call.1} parent=1 // pred_check_branch
      %28 = sbr.rel (0) target = $region21
    $region20: #{tpu_custom_call.1} parent=1 // pred_region
      _
    $region21: #{tpu_custom_call.1} parent=1 // pred_fallthru
      _
    // Predicated region
    $region22: #{tpu_custom_call.1} parent=1 // pred_check
      _
    $region23: #{tpu_custom_call.1} parent=1 // pred_check_branch
      %30 = sbr.rel (0) target = $region25
    $region24: #{tpu_custom_call.1} parent=1 // pred_region
      _
    $region25: #{tpu_custom_call.1} parent=1 // pred_fallthru
      _
    // Predicated region
    $region26: #{tpu_custom_call.1} parent=1 // pred_check
      _
    $region27: #{tpu_custom_call.1} parent=1 // pred_check_branch
      %32 = sbr.rel (0) target = $region29
    $region28: #{tpu_custom_call.1} parent=1 // pred_region
      _
    $region29: #{tpu_custom_call.1} parent=1 // pred_fallthru
      _
    // Predicated region
    $region30: #{tpu_custom_call.1} parent=1 // pred_check
      _
    $region31: #{tpu_custom_call.1} parent=1 // pred_check_branch
      %34 = sbr.rel (0) target = $region33
    $region32: #{tpu_custom_call.1} parent=1 // pred_region
      _
    $region33: #{tpu_custom_call.1} parent=1 // pred_fallthru
      _
    // Predicated region
    $region34: #{tpu_custom_call.1} parent=1 // pred_check
      _
    $region35: #{tpu_custom_call.1} parent=1 // pred_check_branch
      %36 = sbr.rel (0) target = $region37
    $region36: #{tpu_custom_call.1} parent=1 // pred_region
      _
    $region37: #{tpu_custom_call.1} parent=1 // pred_fallthru
      _
    // Predicated region
    $region38: #{tpu_custom_call.1} parent=1 // pred_check
      _
    $region39: #{tpu_custom_call.1} parent=1 // pred_check_branch
      %38 = sbr.rel (0) target = $region41
    $region40: #{tpu_custom_call.1} parent=1 // pred_region
      _
    $region41: #{tpu_custom_call.1} parent=1 // pred_fallthru
      _
    // Predicated region
    $region42: #{tpu_custom_call.1} parent=1 // pred_check
      _
    $region43: #{tpu_custom_call.1} parent=1 // pred_check_branch
      %40 = sbr.rel (0) target = $region45
    $region44: #{tpu_custom_call.1} parent=1 // pred_region
      _
    $region45: #{tpu_custom_call.1} parent=1 // pred_fallthru
      _
    %v42 = vld [vmem:[%s1] sm:$0xf]
    %v43 = vld [vmem:[%s1 + $0x4] sm:$0xf]
    %v44 = vld [vmem:[%s1 + $0x8] sm:$0xf]
    %v45 = vld [vmem:[%s1 + $0xc] sm:$0xf]
    %v46 = vld [vmem:[%s1 + $0x10] sm:$0xf]
    %v47 = vld [vmem:[%s1 + $0x14] sm:$0xf]
    %v48 = vld [vmem:[%s1 + $0x18] sm:$0xf]
    %v49 = vld [vmem:[%s1 + $0x1c] sm:$0xf]
    %v50 = vld [vmem:[%s0] sm:$0xf]
    %v51 = vld [vmem:[%s0 + $0x4] sm:$0xf]
    %v52 = vld [vmem:[%s0 + $0x8] sm:$0xf]
    %v53 = vld [vmem:[%s0 + $0xc] sm:$0xf]
    %v54 = vld [vmem:[%s0 + $0x10] sm:$0xf]
    %v55 = vld [vmem:[%s0 + $0x14] sm:$0xf]
    %v56 = vld [vmem:[%s0 + $0x18] sm:$0xf]
    %v57 = vld [vmem:[%s0 + $0x1c] sm:$0xf]
    %v58 = vld [vmem:[%s0 + $0x20] sm:$0xf]
    %v59 = vld [vmem:[%s0 + $0x24] sm:$0xf]
    %v60 = vld [vmem:[%s0 + $0x28] sm:$0xf]
    %v61 = vld [vmem:[%s0 + $0x2c] sm:$0xf]
    %v62 = vld [vmem:[%s0 + $0x30] sm:$0xf]
    %v63 = vld [vmem:[%s0 + $0x34] sm:$0xf]
    %v64 = vld [vmem:[%s0 + $0x38] sm:$0xf]
    %v65 = vld [vmem:[%s0 + $0x3c] sm:$0xf]
    %v66 = vunpack.c.l.bf16 %v50
    %v67 = vunpack.c.l.bf16 %v51
    %v68 = vunpack.c.l.bf16 %v52
    %v69 = vunpack.c.l.bf16 %v53
    %v70 = vunpack.c.l.bf16 %v54
    %v71 = vunpack.c.l.bf16 %v55
    %v72 = vunpack.c.l.bf16 %v56
    %v73 = vunpack.c.l.bf16 %v57
    %v74 = vunpack.c.l.bf16 %v58
    %v75 = vunpack.c.l.bf16 %v59
    %v76 = vunpack.c.l.bf16 %v60
    %v77 = vunpack.c.l.bf16 %v61
    %v78 = vunpack.c.l.bf16 %v62
    %v79 = vunpack.c.l.bf16 %v63
    %v80 = vunpack.c.l.bf16 %v64
    %v81 = vunpack.c.l.bf16 %v65
    %v82 = vld [vmem:[%s2] sm:$0xff]
    %v83 = vld [vmem:[%s3] sm:$0xff]
    %v84 = vlaneseq
    %v85 = vshrl.u32 %v84, 7
    %v86 = vsub.s32 0, %v85
    %v87 = vrot.slane %v82, %v86
    %89 = vbcast.lane.b32.xlu0 %v87, 256
    %v90 = vpop.permute.xlu0 %89
    %s92 = sor.u32 256, 8
    %93 = vbcast.lane.b32.xlu0 %v87, %s92
    %v94 = vpop.permute.xlu0 %93
    %v95 = vlaneseq
    %v96 = vshrl.u32 %v95, 7
    %v97 = vsub.s32 1, %v96
    %v98 = vrot.slane %v82, %v97
    %100 = vbcast.lane.b32.xlu0 %v98, 256
    %v101 = vpop.permute.xlu0 %100
    %s103 = sor.u32 256, 8
    %104 = vbcast.lane.b32.xlu0 %v98, %s103
    %v105 = vpop.permute.xlu0 %104
    %v106 = vlaneseq
    %v107 = vshrl.u32 %v106, 7
    %v108 = vsub.s32 2, %v107
    %v109 = vrot.slane %v82, %v108
    %111 = vbcast.lane.b32.xlu0 %v109, 256
    %v112 = vpop.permute.xlu0 %111
    %s114 = sor.u32 256, 8
    %115 = vbcast.lane.b32.xlu0 %v109, %s114
    %v116 = vpop.permute.xlu0 %115
    %v117 = vlaneseq
    %v118 = vshrl.u32 %v117, 7
    %v119 = vsub.s32 3, %v118
    %v120 = vrot.slane %v82, %v119
    %122 = vbcast.lane.b32.xlu0 %v120, 256
    %v123 = vpop.permute.xlu0 %122
    %s125 = sor.u32 256, 8
    %126 = vbcast.lane.b32.xlu0 %v120, %s125
    %v127 = vpop.permute.xlu0 %126
    %v128 = vlaneseq
    %v129 = vshrl.u32 %v128, 7
    %v130 = vsub.s32 4, %v129
    %v131 = vrot.slane %v82, %v130
    %133 = vbcast.lane.b32.xlu0 %v131, 256
    %v134 = vpop.permute.xlu0 %133
    %s136 = sor.u32 256, 8
    %137 = vbcast.lane.b32.xlu0 %v131, %s136
    %v138 = vpop.permute.xlu0 %137
    %v139 = vlaneseq
    %v140 = vshrl.u32 %v139, 7
    %v141 = vsub.s32 5, %v140
    %v142 = vrot.slane %v82, %v141
    %144 = vbcast.lane.b32.xlu0 %v142, 256
    %v145 = vpop.permute.xlu0 %144
    %s147 = sor.u32 256, 8
    %148 = vbcast.lane.b32.xlu0 %v142, %s147
    %v149 = vpop.permute.xlu0 %148
    %v150 = vlaneseq
    %v151 = vshrl.u32 %v150, 7
    %v152 = vsub.s32 6, %v151
    %v153 = vrot.slane %v82, %v152
    %155 = vbcast.lane.b32.xlu0 %v153, 256
    %v156 = vpop.permute.xlu0 %155
    %s158 = sor.u32 256, 8
    %159 = vbcast.lane.b32.xlu0 %v153, %s158
    %v160 = vpop.permute.xlu0 %159
    %v161 = vlaneseq
    %v162 = vshrl.u32 %v161, 7
    %v163 = vsub.s32 7, %v162
    %v164 = vrot.slane %v82, %v163
    %166 = vbcast.lane.b32.xlu0 %v164, 256
    %v167 = vpop.permute.xlu0 %166
    %s169 = sor.u32 256, 8
    %170 = vbcast.lane.b32.xlu0 %v164, %s169
    %v171 = vpop.permute.xlu0 %170
    %v172 = vld [vmem:[%s4] sm:$0xff]
    %v173 = vlaneseq
    %v174 = vshrl.u32 %v173, 7
    %v175 = vsub.s32 0, %v174
    %v176 = vrot.slane %v172, %v175
    %178 = vbcast.lane.b32.xlu0 %v176, 256
    %v179 = vpop.permute.xlu0 %178
    %s181 = sor.u32 256, 8
    %182 = vbcast.lane.b32.xlu0 %v176, %s181
    %v183 = vpop.permute.xlu0 %182
    %v184 = vlaneseq
    %v185 = vshrl.u32 %v184, 7
    %v186 = vsub.s32 1, %v185
    %v187 = vrot.slane %v172, %v186
    %189 = vbcast.lane.b32.xlu0 %v187, 256
    %v190 = vpop.permute.xlu0 %189
    %s192 = sor.u32 256, 8
    %193 = vbcast.lane.b32.xlu0 %v187, %s192
    %v194 = vpop.permute.xlu0 %193
    %v195 = vlaneseq
    %v196 = vshrl.u32 %v195, 7
    %v197 = vsub.s32 2, %v196
    %v198 = vrot.slane %v172, %v197
    %200 = vbcast.lane.b32.xlu0 %v198, 256
    %v201 = vpop.permute.xlu0 %200
    %s203 = sor.u32 256, 8
    %204 = vbcast.lane.b32.xlu0 %v198, %s203
    %v205 = vpop.permute.xlu0 %204
    %v206 = vlaneseq
    %v207 = vshrl.u32 %v206, 7
    %v208 = vsub.s32 3, %v207
    %v209 = vrot.slane %v172, %v208
    %211 = vbcast.lane.b32.xlu0 %v209, 256
    %v212 = vpop.permute.xlu0 %211
    %s214 = sor.u32 256, 8
    %215 = vbcast.lane.b32.xlu0 %v209, %s214
    %v216 = vpop.permute.xlu0 %215
    %v217 = vlaneseq
    %v218 = vshrl.u32 %v217, 7
    %v219 = vsub.s32 4, %v218
    %v220 = vrot.slane %v172, %v219
    %222 = vbcast.lane.b32.xlu0 %v220, 256
    %v223 = vpop.permute.xlu0 %222
    %s225 = sor.u32 256, 8
    %226 = vbcast.lane.b32.xlu0 %v220, %s225
    %v227 = vpop.permute.xlu0 %226
    %v228 = vlaneseq
    %v229 = vshrl.u32 %v228, 7
    %v230 = vsub.s32 5, %v229
    %v231 = vrot.slane %v172, %v230
    %233 = vbcast.lane.b32.xlu0 %v231, 256
    %v234 = vpop.permute.xlu0 %233
    %s236 = sor.u32 256, 8
    %237 = vbcast.lane.b32.xlu0 %v231, %s236
    %v238 = vpop.permute.xlu0 %237
    %v239 = vlaneseq
    %v240 = vshrl.u32 %v239, 7
    %v241 = vsub.s32 6, %v240
    %v242 = vrot.slane %v172, %v241
    %244 = vbcast.lane.b32.xlu0 %v242, 256
    %v245 = vpop.permute.xlu0 %244
    %s247 = sor.u32 256, 8
    %248 = vbcast.lane.b32.xlu0 %v242, %s247
    %v249 = vpop.permute.xlu0 %248
    %v250 = vlaneseq
    %v251 = vshrl.u32 %v250, 7
    %v252 = vsub.s32 7, %v251
    %v253 = vrot.slane %v172, %v252
    %255 = vbcast.lane.b32.xlu0 %v253, 256
    %v256 = vpop.permute.xlu0 %255
    %s258 = sor.u32 256, 8
    %259 = vbcast.lane.b32.xlu0 %v253, %s258
    %v260 = vpop.permute.xlu0 %259
    %v262 = vcombine.high %v83, %v83
    %v264 = vunpack.c.l.s4 1966171168
    %v265 = vunpack.c.0.s8 %v264
    %v266 = vlaneseq
    %v267 = vshrl.u32 %v266, 7
    %v268 = vsub.s32 %v265, %v267
    %v269 = vrot.slane %v83, %v268
    %v271 = vunpack.c.l.s4 1966171168
    %v272 = vunpack.c.0.s8 %v271
    %v273 = vlaneseq
    %v274 = vshrl.u32 %v273, 7
    %v275 = vsub.s32 %v272, %v274
    %v276 = vrot.slane %v262, %v275
    %v277 = vcombine.high %v269, %v269
    %v278 = vcombine.high %v276, %v276
    %v280 = vunpack.c.l.s4 1966171168
    %v281 = vunpack.c.0.s8 %v280
    %v282 = vlaneseq
    %v283 = vshrl.u32 %v282, 7
    %v284 = vsub.s32 %v281, %v283
    %v285 = vrot.slane %v269, %v284
    %v287 = vunpack.c.l.s4 1966171168
    %v288 = vunpack.c.0.s8 %v287
    %v289 = vlaneseq
    %v290 = vshrl.u32 %v289, 7
    %v291 = vsub.s32 %v288, %v290
    %v292 = vrot.slane %v276, %v291
    %v294 = vunpack.c.l.s4 1966171168
    %v295 = vunpack.c.0.s8 %v294
    %v296 = vlaneseq
    %v297 = vshrl.u32 %v296, 7
    %v298 = vsub.s32 %v295, %v297
    %v299 = vrot.slane %v277, %v298
    %v301 = vunpack.c.l.s4 1966171168
    %v302 = vunpack.c.0.s8 %v301
    %v303 = vlaneseq
    %v304 = vshrl.u32 %v303, 7
    %v305 = vsub.s32 %v302, %v304
    %v306 = vrot.slane %v278, %v305
    %v307 = vcombine.high %v285, %v285
    %v308 = vcombine.high %v292, %v292
    %v309 = vcombine.high %v299, %v299
    %v310 = vcombine.high %v306, %v306
    %v311 = vlaneseq
    %v312 = vshrl.u32 %v311, 7
    %v313 = vsub.s32 0, %v312
    %v314 = vrot.slane %v285, %v313
    %v315 = vlaneseq
    %v316 = vshrl.u32 %v315, 7
    %v317 = vsub.s32 0, %v316
    %v318 = vrot.slane %v299, %v317
    %v319 = vlaneseq
    %v320 = vshrl.u32 %v319, 7
    %v321 = vsub.s32 0, %v320
    %v322 = vrot.slane %v307, %v321
    %v323 = vlaneseq
    %v324 = vshrl.u32 %v323, 7
    %v325 = vsub.s32 0, %v324
    %v326 = vrot.slane %v309, %v325
    %v327 = vlaneseq
    %v328 = vshrl.u32 %v327, 7
    %v329 = vsub.s32 0, %v328
    %v330 = vrot.slane %v292, %v329
    %v331 = vlaneseq
    %v332 = vshrl.u32 %v331, 7
    %v333 = vsub.s32 0, %v332
    %v334 = vrot.slane %v306, %v333
    %v335 = vlaneseq
    %v336 = vshrl.u32 %v335, 7
    %v337 = vsub.s32 0, %v336
    %v338 = vrot.slane %v308, %v337
    %v339 = vlaneseq
    %v340 = vshrl.u32 %v339, 7
    %v341 = vsub.s32 0, %v340
    %v342 = vrot.slane %v310, %v341
    %v351 = vmul.f32 %v90, %v314
    %v352 = vmul.f32 %v94, %v314
    %v353 = vmul.f32 %v101, %v318
    %v354 = vmul.f32 %v105, %v318
    %v355 = vmul.f32 %v112, %v322
    %v356 = vmul.f32 %v116, %v322
    %v357 = vmul.f32 %v123, %v326
    %v358 = vmul.f32 %v127, %v326
    %v359 = vmul.f32 %v134, %v330
    %v360 = vmul.f32 %v138, %v330
    %v361 = vmul.f32 %v145, %v334
    %v362 = vmul.f32 %v149, %v334
    %v363 = vmul.f32 %v156, %v338
    %v364 = vmul.f32 %v160, %v338
    %v365 = vmul.f32 %v167, %v342
    %v366 = vmul.f32 %v171, %v342
    %vm367 = vcmp.eq.f32.partialorder %v351, 0.0
    %vm368 = vcmp.eq.f32.partialorder %v352, 0.0
    %vm369 = vcmp.eq.f32.partialorder %v353, 0.0
    %vm370 = vcmp.eq.f32.partialorder %v354, 0.0
    %vm371 = vcmp.eq.f32.partialorder %v355, 0.0
    %vm372 = vcmp.eq.f32.partialorder %v356, 0.0
    %vm373 = vcmp.eq.f32.partialorder %v357, 0.0
    %vm374 = vcmp.eq.f32.partialorder %v358, 0.0
    %vm375 = vcmp.eq.f32.partialorder %v359, 0.0
    %vm376 = vcmp.eq.f32.partialorder %v360, 0.0
    %vm377 = vcmp.eq.f32.partialorder %v361, 0.0
    %vm378 = vcmp.eq.f32.partialorder %v362, 0.0
    %vm379 = vcmp.eq.f32.partialorder %v363, 0.0
    %vm380 = vcmp.eq.f32.partialorder %v364, 0.0
    %vm381 = vcmp.eq.f32.partialorder %v365, 0.0
    %vm382 = vcmp.eq.f32.partialorder %v366, 0.0
    %v385 = vunpack.c.l.b16 %v50
    %v386 = vunpack.c.l.b16 %v51
    %v387 = vpack.c.b16 %v386, %v385
    %vm388 = vcmask 523264
    %v390 = vsel %vm388, %v387, 0
    %v393 = vsel %vm388, %v42, 0
    %395 = vmatprep.subr.bf16.mxu0 0
    %396 = vmatpush1.bf16.xpose.msra.mxu0 %v393
    %397 = vmatprep.subr.bf16.mxu0 0
    %398 = vmatpush1.bf16.xpose.msra.mxu0 0
    %399 = vmatprep.subr.bf16.mxu0 0
    %400 = vmatpush1.bf16.xpose.msra.mxu0 0
    %401 = vmatprep.subr.bf16.mxu0 0
    %402 = vmatpush1.bf16.xpose.msra.mxu0 0
    %403 = vmatprep.subr.bf16.mxu0 0
    %404 = vmatpush1.bf16.xpose.msra.mxu0 0
    %405 = vmatprep.subr.bf16.mxu0 0
    %406 = vmatpush1.bf16.xpose.msra.mxu0 0
    %407 = vmatprep.subr.bf16.mxu0 0
    %408 = vmatpush1.bf16.xpose.msra.mxu0 0
    %409 = vmatprep.subr.bf16.mxu0 0
    %410 = vmatpush1.bf16.xpose.msra.mxu0 0
    %411 = vmatprep.subr.bf16.mxu0 0
    %412 = vmatpush1.bf16.xpose.msra.mxu0 0
    %413 = vmatprep.subr.bf16.mxu0 0
    %414 = vmatpush1.bf16.xpose.msra.mxu0 0
    %415 = vmatprep.subr.bf16.mxu0 0
    %416 = vmatpush1.bf16.xpose.msra.mxu0 0
    %417 = vmatprep.subr.bf16.mxu0 0
    %418 = vmatpush1.bf16.xpose.msra.mxu0 0
    %419 = vmatprep.subr.bf16.mxu0 0
    %420 = vmatpush1.bf16.xpose.msra.mxu0 0
    %421 = vmatprep.subr.bf16.mxu0 0
    %422 = vmatpush1.bf16.xpose.msra.mxu0 0
    %423 = vmatprep.subr.bf16.mxu0 0
    %424 = vmatpush1.bf16.xpose.msra.mxu0 0
    %425 = vmatprep.subr.bf16.mxu0 0
    %426 = vmatpush1.bf16.xpose.msra.mxu0 0
    %427 = vmatprep.mubr.bf16.mxu0 0
    %428 = vmatmul.mubr.bf16.gmra.mrb[0].mxu0 %v390
    %v429 = vpop.f32.mrb[0].mxu0
    %v430 = vadd.f32 0.0, %v429
    %v431 = vpop.f32.mrb[0].mxu0
    %v432 = vpop.f32.mrb[0].mxu0
    %v433 = vadd.f32 0.0, %v432
    %v434 = vpop.f32.mrb[0].mxu0
    %435 = vdwg.mxu0
    %v438 = vunpack.c.l.b16 %v52
    %v439 = vunpack.c.l.b16 %v53
    %v440 = vpack.c.b16 %v439, %v438
    %v442 = vsel %vm388, %v440, 0
    %v445 = vsel %vm388, %v43, 0
    %447 = vmatprep.subr.bf16.mxu0 0
    %448 = vmatpush1.bf16.xpose.msra.mxu0 %v445
    %449 = vmatprep.subr.bf16.mxu0 0
    %450 = vmatpush1.bf16.xpose.msra.mxu0 0
    %451 = vmatprep.subr.bf16.mxu0 0
    %452 = vmatpush1.bf16.xpose.msra.mxu0 0
    %453 = vmatprep.subr.bf16.mxu0 0
    %454 = vmatpush1.bf16.xpose.msra.mxu0 0
    %455 = vmatprep.subr.bf16.mxu0 0
    %456 = vmatpush1.bf16.xpose.msra.mxu0 0
    %457 = vmatprep.subr.bf16.mxu0 0
    %458 = vmatpush1.bf16.xpose.msra.mxu0 0
    %459 = vmatprep.subr.bf16.mxu0 0
    %460 = vmatpush1.bf16.xpose.msra.mxu0 0
    %461 = vmatprep.subr.bf16.mxu0 0
    %462 = vmatpush1.bf16.xpose.msra.mxu0 0
    %463 = vmatprep.subr.bf16.mxu0 0
    %464 = vmatpush1.bf16.xpose.msra.mxu0 0
    %465 = vmatprep.subr.bf16.mxu0 0
    %466 = vmatpush1.bf16.xpose.msra.mxu0 0
    %467 = vmatprep.subr.bf16.mxu0 0
    %468 = vmatpush1.bf16.xpose.msra.mxu0 0
    %469 = vmatprep.subr.bf16.mxu0 0
    %470 = vmatpush1.bf16.xpose.msra.mxu0 0
    %471 = vmatprep.subr.bf16.mxu0 0
    %472 = vmatpush1.bf16.xpose.msra.mxu0 0
    %473 = vmatprep.subr.bf16.mxu0 0
    %474 = vmatpush1.bf16.xpose.msra.mxu0 0
    %475 = vmatprep.subr.bf16.mxu0 0
    %476 = vmatpush1.bf16.xpose.msra.mxu0 0
    %477 = vmatprep.subr.bf16.mxu0 0
    %478 = vmatpush1.bf16.xpose.msra.mxu0 0
    %479 = vmatprep.mubr.bf16.mxu0 0
    %480 = vmatmul.mubr.bf16.gmra.mrb[0].mxu0 %v442
    %v481 = vpop.f32.mrb[0].mxu0
    %v482 = vadd.f32 0.0, %v481
    %v483 = vpop.f32.mrb[0].mxu0
    %v484 = vpop.f32.mrb[0].mxu0
    %v485 = vadd.f32 0.0, %v484
    %v486 = vpop.f32.mrb[0].mxu0
    %487 = vdwg.mxu0
    %v490 = vunpack.c.l.b16 %v54
    %v491 = vunpack.c.l.b16 %v55
    %v492 = vpack.c.b16 %v491, %v490
    %v494 = vsel %vm388, %v492, 0
    %v497 = vsel %vm388, %v44, 0
    %499 = vmatprep.subr.bf16.mxu0 0
    %500 = vmatpush1.bf16.xpose.msra.mxu0 %v497
    %501 = vmatprep.subr.bf16.mxu0 0
    %502 = vmatpush1.bf16.xpose.msra.mxu0 0
    %503 = vmatprep.subr.bf16.mxu0 0
    %504 = vmatpush1.bf16.xpose.msra.mxu0 0
    %505 = vmatprep.subr.bf16.mxu0 0
    %506 = vmatpush1.bf16.xpose.msra.mxu0 0
    %507 = vmatprep.subr.bf16.mxu0 0
    %508 = vmatpush1.bf16.xpose.msra.mxu0 0
    %509 = vmatprep.subr.bf16.mxu0 0
    %510 = vmatpush1.bf16.xpose.msra.mxu0 0
    %511 = vmatprep.subr.bf16.mxu0 0
    %512 = vmatpush1.bf16.xpose.msra.mxu0 0
    %513 = vmatprep.subr.bf16.mxu0 0
    %514 = vmatpush1.bf16.xpose.msra.mxu0 0
    %515 = vmatprep.subr.bf16.mxu0 0
    %516 = vmatpush1.bf16.xpose.msra.mxu0 0
    %517 = vmatprep.subr.bf16.mxu0 0
    %518 = vmatpush1.bf16.xpose.msra.mxu0 0
    %519 = vmatprep.subr.bf16.mxu0 0
    %520 = vmatpush1.bf16.xpose.msra.mxu0 0
    %521 = vmatprep.subr.bf16.mxu0 0
    %522 = vmatpush1.bf16.xpose.msra.mxu0 0
    %523 = vmatprep.subr.bf16.mxu0 0
    %524 = vmatpush1.bf16.xpose.msra.mxu0 0
    %525 = vmatprep.subr.bf16.mxu0 0
    %526 = vmatpush1.bf16.xpose.msra.mxu0 0
    %527 = vmatprep.subr.bf16.mxu0 0
    %528 = vmatpush1.bf16.xpose.msra.mxu0 0
    %529 = vmatprep.subr.bf16.mxu0 0
    %530 = vmatpush1.bf16.xpose.msra.mxu0 0
    %531 = vmatprep.mubr.bf16.mxu0 0
    %532 = vmatmul.mubr.bf16.gmra.mrb[0].mxu0 %v494
    %v533 = vpop.f32.mrb[0].mxu0
    %v534 = vadd.f32 0.0, %v533
    %v535 = vpop.f32.mrb[0].mxu0
    %v536 = vpop.f32.mrb[0].mxu0
    %v537 = vadd.f32 0.0, %v536
    %v538 = vpop.f32.mrb[0].mxu0
    %539 = vdwg.mxu0
    %v542 = vunpack.c.l.b16 %v56
    %v543 = vunpack.c.l.b16 %v57
    %v544 = vpack.c.b16 %v543, %v542
    %v546 = vsel %vm388, %v544, 0
    %v549 = vsel %vm388, %v45, 0
    %551 = vmatprep.subr.bf16.mxu0 0
    %552 = vmatpush1.bf16.xpose.msra.mxu0 %v549
    %553 = vmatprep.subr.bf16.mxu0 0
    %554 = vmatpush1.bf16.xpose.msra.mxu0 0
    %555 = vmatprep.subr.bf16.mxu0 0
    %556 = vmatpush1.bf16.xpose.msra.mxu0 0
    %557 = vmatprep.subr.bf16.mxu0 0
    %558 = vmatpush1.bf16.xpose.msra.mxu0 0
    %559 = vmatprep.subr.bf16.mxu0 0
    %560 = vmatpush1.bf16.xpose.msra.mxu0 0
    %561 = vmatprep.subr.bf16.mxu0 0
    %562 = vmatpush1.bf16.xpose.msra.mxu0 0
    %563 = vmatprep.subr.bf16.mxu0 0
    %564 = vmatpush1.bf16.xpose.msra.mxu0 0
    %565 = vmatprep.subr.bf16.mxu0 0
    %566 = vmatpush1.bf16.xpose.msra.mxu0 0
    %567 = vmatprep.subr.bf16.mxu0 0
    %568 = vmatpush1.bf16.xpose.msra.mxu0 0
    %569 = vmatprep.subr.bf16.mxu0 0
    %570 = vmatpush1.bf16.xpose.msra.mxu0 0
    %571 = vmatprep.subr.bf16.mxu0 0
    %572 = vmatpush1.bf16.xpose.msra.mxu0 0
    %573 = vmatprep.subr.bf16.mxu0 0
    %574 = vmatpush1.bf16.xpose.msra.mxu0 0
    %575 = vmatprep.subr.bf16.mxu0 0
    %576 = vmatpush1.bf16.xpose.msra.mxu0 0
    %577 = vmatprep.subr.bf16.mxu0 0
    %578 = vmatpush1.bf16.xpose.msra.mxu0 0
    %579 = vmatprep.subr.bf16.mxu0 0
    %580 = vmatpush1.bf16.xpose.msra.mxu0 0
    %581 = vmatprep.subr.bf16.mxu0 0
    %582 = vmatpush1.bf16.xpose.msra.mxu0 0
    %583 = vmatprep.mubr.bf16.mxu0 0
    %584 = vmatmul.mubr.bf16.gmra.mrb[0].mxu0 %v546
    %v585 = vpop.f32.mrb[0].mxu0
    %v586 = vadd.f32 0.0, %v585
    %v587 = vpop.f32.mrb[0].mxu0
    %v588 = vpop.f32.mrb[0].mxu0
    %v589 = vadd.f32 0.0, %v588
    %v590 = vpop.f32.mrb[0].mxu0
    %591 = vdwg.mxu0
    %v594 = vunpack.c.l.b16 %v58
    %v595 = vunpack.c.l.b16 %v59
    %v596 = vpack.c.b16 %v595, %v594
    %v598 = vsel %vm388, %v596, 0
    %v601 = vsel %vm388, %v46, 0
    %603 = vmatprep.subr.bf16.mxu0 0
    %604 = vmatpush1.bf16.xpose.msra.mxu0 %v601
    %605 = vmatprep.subr.bf16.mxu0 0
    %606 = vmatpush1.bf16.xpose.msra.mxu0 0
    %607 = vmatprep.subr.bf16.mxu0 0
    %608 = vmatpush1.bf16.xpose.msra.mxu0 0
    %609 = vmatprep.subr.bf16.mxu0 0
    %610 = vmatpush1.bf16.xpose.msra.mxu0 0
    %611 = vmatprep.subr.bf16.mxu0 0
    %612 = vmatpush1.bf16.xpose.msra.mxu0 0
    %613 = vmatprep.subr.bf16.mxu0 0
    %614 = vmatpush1.bf16.xpose.msra.mxu0 0
    %615 = vmatprep.subr.bf16.mxu0 0
    %616 = vmatpush1.bf16.xpose.msra.mxu0 0
    %617 = vmatprep.subr.bf16.mxu0 0
    %618 = vmatpush1.bf16.xpose.msra.mxu0 0
    %619 = vmatprep.subr.bf16.mxu0 0
    %620 = vmatpush1.bf16.xpose.msra.mxu0 0
    %621 = vmatprep.subr.bf16.mxu0 0
    %622 = vmatpush1.bf16.xpose.msra.mxu0 0
    %623 = vmatprep.subr.bf16.mxu0 0
    %624 = vmatpush1.bf16.xpose.msra.mxu0 0
    %625 = vmatprep.subr.bf16.mxu0 0
    %626 = vmatpush1.bf16.xpose.msra.mxu0 0
    %627 = vmatprep.subr.bf16.mxu0 0
    %628 = vmatpush1.bf16.xpose.msra.mxu0 0
    %629 = vmatprep.subr.bf16.mxu0 0
    %630 = vmatpush1.bf16.xpose.msra.mxu0 0
    %631 = vmatprep.subr.bf16.mxu0 0
    %632 = vmatpush1.bf16.xpose.msra.mxu0 0
    %633 = vmatprep.subr.bf16.mxu0 0
    %634 = vmatpush1.bf16.xpose.msra.mxu0 0
    %635 = vmatprep.mubr.bf16.mxu0 0
    %636 = vmatmul.mubr.bf16.gmra.mrb[0].mxu0 %v598
    %v637 = vpop.f32.mrb[0].mxu0
    %v638 = vadd.f32 0.0, %v637
    %v639 = vpop.f32.mrb[0].mxu0
    %v640 = vpop.f32.mrb[0].mxu0
    %v641 = vadd.f32 0.0, %v640
    %v642 = vpop.f32.mrb[0].mxu0
    %643 = vdwg.mxu0
    %v646 = vunpack.c.l.b16 %v60
    %v647 = vunpack.c.l.b16 %v61
    %v648 = vpack.c.b16 %v647, %v646
    %v650 = vsel %vm388, %v648, 0
    %v653 = vsel %vm388, %v47, 0
    %655 = vmatprep.subr.bf16.mxu0 0
    %656 = vmatpush1.bf16.xpose.msra.mxu0 %v653
    %657 = vmatprep.subr.bf16.mxu0 0
    %658 = vmatpush1.bf16.xpose.msra.mxu0 0
    %659 = vmatprep.subr.bf16.mxu0 0
    %660 = vmatpush1.bf16.xpose.msra.mxu0 0
    %661 = vmatprep.subr.bf16.mxu0 0
    %662 = vmatpush1.bf16.xpose.msra.mxu0 0
    %663 = vmatprep.subr.bf16.mxu0 0
    %664 = vmatpush1.bf16.xpose.msra.mxu0 0
    %665 = vmatprep.subr.bf16.mxu0 0
    %666 = vmatpush1.bf16.xpose.msra.mxu0 0
    %667 = vmatprep.subr.bf16.mxu0 0
    %668 = vmatpush1.bf16.xpose.msra.mxu0 0
    %669 = vmatprep.subr.bf16.mxu0 0
    %670 = vmatpush1.bf16.xpose.msra.mxu0 0
    %671 = vmatprep.subr.bf16.mxu0 0
    %672 = vmatpush1.bf16.xpose.msra.mxu0 0
    %673 = vmatprep.subr.bf16.mxu0 0
    %674 = vmatpush1.bf16.xpose.msra.mxu0 0
    %675 = vmatprep.subr.bf16.mxu0 0
    %676 = vmatpush1.bf16.xpose.msra.mxu0 0
    %677 = vmatprep.subr.bf16.mxu0 0
    %678 = vmatpush1.bf16.xpose.msra.mxu0 0
    %679 = vmatprep.subr.bf16.mxu0 0
    %680 = vmatpush1.bf16.xpose.msra.mxu0 0
    %681 = vmatprep.subr.bf16.mxu0 0
    %682 = vmatpush1.bf16.xpose.msra.mxu0 0
    %683 = vmatprep.subr.bf16.mxu0 0
    %684 = vmatpush1.bf16.xpose.msra.mxu0 0
    %685 = vmatprep.subr.bf16.mxu0 0
    %686 = vmatpush1.bf16.xpose.msra.mxu0 0
    %687 = vmatprep.mubr.bf16.mxu0 0
    %688 = vmatmul.mubr.bf16.gmra.mrb[0].mxu0 %v650
    %v689 = vpop.f32.mrb[0].mxu0
    %v690 = vadd.f32 0.0, %v689
    %v691 = vpop.f32.mrb[0].mxu0
    %v692 = vpop.f32.mrb[0].mxu0
    %v693 = vadd.f32 0.0, %v692
    %v694 = vpop.f32.mrb[0].mxu0
    %695 = vdwg.mxu0
    %v698 = vunpack.c.l.b16 %v62
    %v699 = vunpack.c.l.b16 %v63
    %v700 = vpack.c.b16 %v699, %v698
    %v702 = vsel %vm388, %v700, 0
    %v705 = vsel %vm388, %v48, 0
    %707 = vmatprep.subr.bf16.mxu0 0
    %708 = vmatpush1.bf16.xpose.msra.mxu0 %v705
    %709 = vmatprep.subr.bf16.mxu0 0
    %710 = vmatpush1.bf16.xpose.msra.mxu0 0
    %711 = vmatprep.subr.bf16.mxu0 0
    %712 = vmatpush1.bf16.xpose.msra.mxu0 0
    %713 = vmatprep.subr.bf16.mxu0 0
    %714 = vmatpush1.bf16.xpose.msra.mxu0 0
    %715 = vmatprep.subr.bf16.mxu0 0
    %716 = vmatpush1.bf16.xpose.msra.mxu0 0
    %717 = vmatprep.subr.bf16.mxu0 0
    %718 = vmatpush1.bf16.xpose.msra.mxu0 0
    %719 = vmatprep.subr.bf16.mxu0 0
    %720 = vmatpush1.bf16.xpose.msra.mxu0 0
    %721 = vmatprep.subr.bf16.mxu0 0
    %722 = vmatpush1.bf16.xpose.msra.mxu0 0
    %723 = vmatprep.subr.bf16.mxu0 0
    %724 = vmatpush1.bf16.xpose.msra.mxu0 0
    %725 = vmatprep.subr.bf16.mxu0 0
    %726 = vmatpush1.bf16.xpose.msra.mxu0 0
    %727 = vmatprep.subr.bf16.mxu0 0
    %728 = vmatpush1.bf16.xpose.msra.mxu0 0
    %729 = vmatprep.subr.bf16.mxu0 0
    %730 = vmatpush1.bf16.xpose.msra.mxu0 0
    %731 = vmatprep.subr.bf16.mxu0 0
    %732 = vmatpush1.bf16.xpose.msra.mxu0 0
    %733 = vmatprep.subr.bf16.mxu0 0
    %734 = vmatpush1.bf16.xpose.msra.mxu0 0
    %735 = vmatprep.subr.bf16.mxu0 0
    %736 = vmatpush1.bf16.xpose.msra.mxu0 0
    %737 = vmatprep.subr.bf16.mxu0 0
    %738 = vmatpush1.bf16.xpose.msra.mxu0 0
    %739 = vmatprep.mubr.bf16.mxu0 0
    %740 = vmatmul.mubr.bf16.gmra.mrb[0].mxu0 %v702
    %v741 = vpop.f32.mrb[0].mxu0
    %v742 = vadd.f32 0.0, %v741
    %v743 = vpop.f32.mrb[0].mxu0
    %v744 = vpop.f32.mrb[0].mxu0
    %v745 = vadd.f32 0.0, %v744
    %v746 = vpop.f32.mrb[0].mxu0
    %747 = vdwg.mxu0
    %v750 = vunpack.c.l.b16 %v64
    %v751 = vunpack.c.l.b16 %v65
    %v752 = vpack.c.b16 %v751, %v750
    %v754 = vsel %vm388, %v752, 0
    %v757 = vsel %vm388, %v49, 0
    %759 = vmatprep.subr.bf16.mxu0 0
    %760 = vmatpush1.bf16.xpose.msra.mxu0 %v757
    %761 = vmatprep.subr.bf16.mxu0 0
    %762 = vmatpush1.bf16.xpose.msra.mxu0 0
    %763 = vmatprep.subr.bf16.mxu0 0
    %764 = vmatpush1.bf16.xpose.msra.mxu0 0
    %765 = vmatprep.subr.bf16.mxu0 0
    %766 = vmatpush1.bf16.xpose.msra.mxu0 0
    %767 = vmatprep.subr.bf16.mxu0 0
    %768 = vmatpush1.bf16.xpose.msra.mxu0 0
    %769 = vmatprep.subr.bf16.mxu0 0
    %770 = vmatpush1.bf16.xpose.msra.mxu0 0
    %771 = vmatprep.subr.bf16.mxu0 0
    %772 = vmatpush1.bf16.xpose.msra.mxu0 0
    %773 = vmatprep.subr.bf16.mxu0 0
    %774 = vmatpush1.bf16.xpose.msra.mxu0 0
    %775 = vmatprep.subr.bf16.mxu0 0
    %776 = vmatpush1.bf16.xpose.msra.mxu0 0
    %777 = vmatprep.subr.bf16.mxu0 0
    %778 = vmatpush1.bf16.xpose.msra.mxu0 0
    %779 = vmatprep.subr.bf16.mxu0 0
    %780 = vmatpush1.bf16.xpose.msra.mxu0 0
    %781 = vmatprep.subr.bf16.mxu0 0
    %782 = vmatpush1.bf16.xpose.msra.mxu0 0
    %783 = vmatprep.subr.bf16.mxu0 0
    %784 = vmatpush1.bf16.xpose.msra.mxu0 0
    %785 = vmatprep.subr.bf16.mxu0 0
    %786 = vmatpush1.bf16.xpose.msra.mxu0 0
    %787 = vmatprep.subr.bf16.mxu0 0
    %788 = vmatpush1.bf16.xpose.msra.mxu0 0
    %789 = vmatprep.subr.bf16.mxu0 0
    %790 = vmatpush1.bf16.xpose.msra.mxu0 0
    %791 = vmatprep.mubr.bf16.mxu0 0
    %792 = vmatmul.mubr.bf16.gmra.mrb[0].mxu0 %v754
    %v793 = vpop.f32.mrb[0].mxu0
    %v794 = vadd.f32 0.0, %v793
    %v795 = vpop.f32.mrb[0].mxu0
    %v796 = vpop.f32.mrb[0].mxu0
    %v797 = vadd.f32 0.0, %v796
    %v798 = vpop.f32.mrb[0].mxu0
    %799 = vdwg.mxu0
    %v800 = vsel %vm367, -1e+09, %v430
    %v801 = vsel %vm368, -1e+09, %v433
    %v802 = vsel %vm369, -1e+09, %v482
    %v803 = vsel %vm370, -1e+09, %v485
    %v804 = vsel %vm371, -1e+09, %v534
    %v805 = vsel %vm372, -1e+09, %v537
    %v806 = vsel %vm373, -1e+09, %v586
    %v807 = vsel %vm374, -1e+09, %v589
    %v808 = vsel %vm375, -1e+09, %v638
    %v809 = vsel %vm376, -1e+09, %v641
    %v810 = vsel %vm377, -1e+09, %v690
    %v811 = vsel %vm378, -1e+09, %v693
    %v812 = vsel %vm379, -1e+09, %v742
    %v813 = vsel %vm380, -1e+09, %v745
    %v814 = vsel %vm381, -1e+09, %v794
    %v815 = vsel %vm382, -1e+09, %v797
    %vm816 = vcmask 64512
    %v817 = vsel %vm816, %v800, -inf
    %818 = vmax.xlane.f32.xlu0 %v817
    %v819 = vpop.xlane.xlu0 %818
    %v820 = vsel %vm816, %v801, -inf
    %821 = vmax.xlane.f32.xlu0 %v820
    %v822 = vpop.xlane.xlu0 %821
    %v823 = vsel %vm816, %v802, -inf
    %824 = vmax.xlane.f32.xlu0 %v823
    %v825 = vpop.xlane.xlu0 %824
    %v826 = vsel %vm816, %v803, -inf
    %827 = vmax.xlane.f32.xlu0 %v826
    %v828 = vpop.xlane.xlu0 %827
    %v829 = vsel %vm816, %v804, -inf
    %830 = vmax.xlane.f32.xlu0 %v829
    %v831 = vpop.xlane.xlu0 %830
    %v832 = vsel %vm816, %v805, -inf
    %833 = vmax.xlane.f32.xlu0 %v832
    %v834 = vpop.xlane.xlu0 %833
    %v835 = vsel %vm816, %v806, -inf
    %836 = vmax.xlane.f32.xlu0 %v835
    %v837 = vpop.xlane.xlu0 %836
    %v838 = vsel %vm816, %v807, -inf
    %839 = vmax.xlane.f32.xlu0 %v838
    %v840 = vpop.xlane.xlu0 %839
    %v841 = vsel %vm816, %v808, -inf
    %842 = vmax.xlane.f32.xlu0 %v841
    %v843 = vpop.xlane.xlu0 %842
    %v844 = vsel %vm816, %v809, -inf
    %845 = vmax.xlane.f32.xlu0 %v844
    %v846 = vpop.xlane.xlu0 %845
    %v847 = vsel %vm816, %v810, -inf
    %848 = vmax.xlane.f32.xlu0 %v847
    %v849 = vpop.xlane.xlu0 %848
    %v850 = vsel %vm816, %v811, -inf
    %851 = vmax.xlane.f32.xlu0 %v850
    %v852 = vpop.xlane.xlu0 %851
    %v853 = vsel %vm816, %v812, -inf
    %854 = vmax.xlane.f32.xlu0 %v853
    %v855 = vpop.xlane.xlu0 %854
    %v856 = vsel %vm816, %v813, -inf
    %857 = vmax.xlane.f32.xlu0 %v856
    %v858 = vpop.xlane.xlu0 %857
    %v859 = vsel %vm816, %v814, -inf
    %860 = vmax.xlane.f32.xlu0 %v859
    %v861 = vpop.xlane.xlu0 %860
    %v862 = vsel %vm816, %v815, -inf
    %863 = vmax.xlane.f32.xlu0 %v862
    %v864 = vpop.xlane.xlu0 %863
    %v865 = vsub.f32 %v800, %v819
    %v866 = vsub.f32 %v801, %v822
    %v867 = vsub.f32 %v802, %v825
    %v868 = vsub.f32 %v803, %v828
    %v869 = vsub.f32 %v804, %v831
    %v870 = vsub.f32 %v805, %v834
    %v871 = vsub.f32 %v806, %v837
    %v872 = vsub.f32 %v807, %v840
    %v873 = vsub.f32 %v808, %v843
    %v874 = vsub.f32 %v809, %v846
    %v875 = vsub.f32 %v810, %v849
    %v876 = vsub.f32 %v811, %v852
    %v877 = vsub.f32 %v812, %v855
    %v878 = vsub.f32 %v813, %v858
    %v879 = vsub.f32 %v814, %v861
    %v880 = vsub.f32 %v815, %v864
    %v881 = vmul.f32 %v865, 1.442695
    %v882 = vpow.pop %v881
    %v883 = vmul.f32 %v866, 1.442695
    %v884 = vpow.pop %v883
    %v885 = vmul.f32 %v867, 1.442695
    %v886 = vpow.pop %v885
    %v887 = vmul.f32 %v868, 1.442695
    %v888 = vpow.pop %v887
    %v889 = vmul.f32 %v869, 1.442695
    %v890 = vpow.pop %v889
    %v891 = vmul.f32 %v870, 1.442695
    %v892 = vpow.pop %v891
    %v893 = vmul.f32 %v871, 1.442695
    %v894 = vpow.pop %v893
    %v895 = vmul.f32 %v872, 1.442695
    %v896 = vpow.pop %v895
    %v897 = vmul.f32 %v873, 1.442695
    %v898 = vpow.pop %v897
    %v899 = vmul.f32 %v874, 1.442695
    %v900 = vpow.pop %v899
    %v901 = vmul.f32 %v875, 1.442695
    %v902 = vpow.pop %v901
    %v903 = vmul.f32 %v876, 1.442695
    %v904 = vpow.pop %v903
    %v905 = vmul.f32 %v877, 1.442695
    %v906 = vpow.pop %v905
    %v907 = vmul.f32 %v878, 1.442695
    %v908 = vpow.pop %v907
    %v909 = vmul.f32 %v879, 1.442695
    %v910 = vpow.pop %v909
    %v911 = vmul.f32 %v880, 1.442695
    %v912 = vpow.pop %v911
    %v913 = vsel %vm816, %v882, 0.0
    %914 = vadd.xlane.f32.xlu0 %v913
    %v915 = vpop.xlane.xlu0 %914
    %v916 = vsel %vm816, %v884, 0.0
    %917 = vadd.xlane.f32.xlu0 %v916
    %v918 = vpop.xlane.xlu0 %917
    %v919 = vsel %vm816, %v886, 0.0
    %920 = vadd.xlane.f32.xlu0 %v919
    %v921 = vpop.xlane.xlu0 %920
    %v922 = vsel %vm816, %v888, 0.0
    %923 = vadd.xlane.f32.xlu0 %v922
    %v924 = vpop.xlane.xlu0 %923
    %v925 = vsel %vm816, %v890, 0.0
    %926 = vadd.xlane.f32.xlu0 %v925
    %v927 = vpop.xlane.xlu0 %926
    %v928 = vsel %vm816, %v892, 0.0
    %929 = vadd.xlane.f32.xlu0 %v928
    %v930 = vpop.xlane.xlu0 %929
    %v931 = vsel %vm816, %v894, 0.0
    %932 = vadd.xlane.f32.xlu0 %v931
    %v933 = vpop.xlane.xlu0 %932
    %v934 = vsel %vm816, %v896, 0.0
    %935 = vadd.xlane.f32.xlu0 %v934
    %v936 = vpop.xlane.xlu0 %935
    %v937 = vsel %vm816, %v898, 0.0
    %938 = vadd.xlane.f32.xlu0 %v937
    %v939 = vpop.xlane.xlu0 %938
    %v940 = vsel %vm816, %v900, 0.0
    %941 = vadd.xlane.f32.xlu0 %v940
    %v942 = vpop.xlane.xlu0 %941
    %v943 = vsel %vm816, %v902, 0.0
    %944 = vadd.xlane.f32.xlu0 %v943
    %v945 = vpop.xlane.xlu0 %944
    %v946 = vsel %vm816, %v904, 0.0
    %947 = vadd.xlane.f32.xlu0 %v946
    %v948 = vpop.xlane.xlu0 %947
    %v949 = vsel %vm816, %v906, 0.0
    %950 = vadd.xlane.f32.xlu0 %v949
    %v951 = vpop.xlane.xlu0 %950
    %v952 = vsel %vm816, %v908, 0.0
    %953 = vadd.xlane.f32.xlu0 %v952
    %v954 = vpop.xlane.xlu0 %953
    %v955 = vsel %vm816, %v910, 0.0
    %956 = vadd.xlane.f32.xlu0 %v955
    %v957 = vpop.xlane.xlu0 %956
    %v958 = vsel %vm816, %v912, 0.0
    %959 = vadd.xlane.f32.xlu0 %v958
    %v960 = vpop.xlane.xlu0 %959
    %v961 = vrcp.pop %v915
    %v962 = vrcp.pop %v918
    %v963 = vrcp.pop %v921
    %v964 = vrcp.pop %v924
    %v965 = vrcp.pop %v927
    %v966 = vrcp.pop %v930
    %v967 = vrcp.pop %v933
    %v968 = vrcp.pop %v936
    %v969 = vrcp.pop %v939
    %v970 = vrcp.pop %v942
    %v971 = vrcp.pop %v945
    %v972 = vrcp.pop %v948
    %v973 = vrcp.pop %v951
    %v974 = vrcp.pop %v954
    %v975 = vrcp.pop %v957
    %v976 = vrcp.pop %v960
    %v977 = vmul.f32 %v882, %v961
    %v978 = vmul.f32 %v884, %v962
    %v979 = vmul.f32 %v886, %v963
    %v980 = vmul.f32 %v888, %v964
    %v981 = vmul.f32 %v890, %v965
    %v982 = vmul.f32 %v892, %v966
    %v983 = vmul.f32 %v894, %v967
    %v984 = vmul.f32 %v896, %v968
    %v985 = vmul.f32 %v898, %v969
    %v986 = vmul.f32 %v900, %v970
    %v987 = vmul.f32 %v902, %v971
    %v988 = vmul.f32 %v904, %v972
    %v989 = vmul.f32 %v906, %v973
    %v990 = vmul.f32 %v908, %v974
    %v991 = vmul.f32 %v910, %v975
    %v992 = vmul.f32 %v912, %v976
    %v993 = vpack.c.bf16 %v978, %v977
    %v994 = vpack.c.bf16 %v980, %v979
    %v995 = vpack.c.bf16 %v982, %v981
    %v996 = vpack.c.bf16 %v984, %v983
    %v997 = vpack.c.bf16 %v986, %v985
    %v998 = vpack.c.bf16 %v988, %v987
    %v999 = vpack.c.bf16 %v990, %v989
    %v1000 = vpack.c.bf16 %v992, %v991
    %v1002 = vsel %vm816, %v993, 0
    %vm1004 = vcmask 1043456
    %v1005 = vsel %vm1004, %v42, 0
    %1007 = vmatprep.subr.bf16.mxu0 0
    %1008 = vmatpush1.bf16.msra.mxu0 %v1005
    %1009 = vmatprep.subr.bf16.mxu0 0
    %1010 = vmatpush1.bf16.msra.mxu0 0
    %1011 = vmatprep.subr.bf16.mxu0 0
    %1012 = vmatpush1.bf16.msra.mxu0 0
    %1013 = vmatprep.subr.bf16.mxu0 0
    %1014 = vmatpush1.bf16.msra.mxu0 0
    %1015 = vmatprep.subr.bf16.mxu0 0
    %1016 = vmatpush1.bf16.msra.mxu0 0
    %1017 = vmatprep.subr.bf16.mxu0 0
    %1018 = vmatpush1.bf16.msra.mxu0 0
    %1019 = vmatprep.subr.bf16.mxu0 0
    %1020 = vmatpush1.bf16.msra.mxu0 0
    %1021 = vmatprep.subr.bf16.mxu0 0
    %1022 = vmatpush1.bf16.msra.mxu0 0
    %1023 = vmatprep.subr.bf16.mxu0 0
    %1024 = vmatpush1.bf16.msra.mxu0 0
    %1025 = vmatprep.subr.bf16.mxu0 0
    %1026 = vmatpush1.bf16.msra.mxu0 0
    %1027 = vmatprep.subr.bf16.mxu0 0
    %1028 = vmatpush1.bf16.msra.mxu0 0
    %1029 = vmatprep.subr.bf16.mxu0 0
    %1030 = vmatpush1.bf16.msra.mxu0 0
    %1031 = vmatprep.subr.bf16.mxu0 0
    %1032 = vmatpush1.bf16.msra.mxu0 0
    %1033 = vmatprep.subr.bf16.mxu0 0
    %1034 = vmatpush1.bf16.msra.mxu0 0
    %1035 = vmatprep.subr.bf16.mxu0 0
    %1036 = vmatpush1.bf16.msra.mxu0 0
    %1037 = vmatprep.subr.bf16.mxu0 0
    %1038 = vmatpush1.bf16.msra.mxu0 0
    %1039 = vmatprep.mubr.bf16.mxu0 0
    %1040 = vmatmul.mubr.bf16.gmra.mrb[0].mxu0 %v1002
    %v1041 = vpop.f32.mrb[0].mxu0
    %v1042 = vadd.f32 0.0, %v1041
    %v1043 = vpop.f32.mrb[0].mxu0
    %v1044 = vpop.f32.mrb[0].mxu0
    %v1045 = vadd.f32 0.0, %v1044
    %v1046 = vpop.f32.mrb[0].mxu0
    %1047 = vdwg.mxu0
    %v1049 = vsel %vm816, %v994, 0
    %v1051 = vsel %vm1004, %v43, 0
    %1053 = vmatprep.subr.bf16.mxu0 0
    %1054 = vmatpush1.bf16.msra.mxu0 %v1051
    %1055 = vmatprep.subr.bf16.mxu0 0
    %1056 = vmatpush1.bf16.msra.mxu0 0
    %1057 = vmatprep.subr.bf16.mxu0 0
    %1058 = vmatpush1.bf16.msra.mxu0 0
    %1059 = vmatprep.subr.bf16.mxu0 0
    %1060 = vmatpush1.bf16.msra.mxu0 0
    %1061 = vmatprep.subr.bf16.mxu0 0
    %1062 = vmatpush1.bf16.msra.mxu0 0
    %1063 = vmatprep.subr.bf16.mxu0 0
    %1064 = vmatpush1.bf16.msra.mxu0 0
    %1065 = vmatprep.subr.bf16.mxu0 0
    %1066 = vmatpush1.bf16.msra.mxu0 0
    %1067 = vmatprep.subr.bf16.mxu0 0
    %1068 = vmatpush1.bf16.msra.mxu0 0
    %1069 = vmatprep.subr.bf16.mxu0 0
    %1070 = vmatpush1.bf16.msra.mxu0 0
    %1071 = vmatprep.subr.bf16.mxu0 0
    %1072 = vmatpush1.bf16.msra.mxu0 0
    %1073 = vmatprep.subr.bf16.mxu0 0
    %1074 = vmatpush1.bf16.msra.mxu0 0
    %1075 = vmatprep.subr.bf16.mxu0 0
    %1076 = vmatpush1.bf16.msra.mxu0 0
    %1077 = vmatprep.subr.bf16.mxu0 0
    %1078 = vmatpush1.bf16.msra.mxu0 0
    %1079 = vmatprep.subr.bf16.mxu0 0
    %1080 = vmatpush1.bf16.msra.mxu0 0
    %1081 = vmatprep.subr.bf16.mxu0 0
    %1082 = vmatpush1.bf16.msra.mxu0 0
    %1083 = vmatprep.subr.bf16.mxu0 0
    %1084 = vmatpush1.bf16.msra.mxu0 0
    %1085 = vmatprep.mubr.bf16.mxu0 0
    %1086 = vmatmul.mubr.bf16.gmra.mrb[0].mxu0 %v1049
    %v1087 = vpop.f32.mrb[0].mxu0
    %v1088 = vadd.f32 0.0, %v1087
    %v1089 = vpop.f32.mrb[0].mxu0
    %v1090 = vpop.f32.mrb[0].mxu0
    %v1091 = vadd.f32 0.0, %v1090
    %v1092 = vpop.f32.mrb[0].mxu0
    %1093 = vdwg.mxu0
    %v1095 = vsel %vm816, %v995, 0
    %v1097 = vsel %vm1004, %v44, 0
    %1099 = vmatprep.subr.bf16.mxu0 0
    %1100 = vmatpush1.bf16.msra.mxu0 %v1097
    %1101 = vmatprep.subr.bf16.mxu0 0
    %1102 = vmatpush1.bf16.msra.mxu0 0
    %1103 = vmatprep.subr.bf16.mxu0 0
    %1104 = vmatpush1.bf16.msra.mxu0 0
    %1105 = vmatprep.subr.bf16.mxu0 0
    %1106 = vmatpush1.bf16.msra.mxu0 0
    %1107 = vmatprep.subr.bf16.mxu0 0
    %1108 = vmatpush1.bf16.msra.mxu0 0
    %1109 = vmatprep.subr.bf16.mxu0 0
    %1110 = vmatpush1.bf16.msra.mxu0 0
    %1111 = vmatprep.subr.bf16.mxu0 0
    %1112 = vmatpush1.bf16.msra.mxu0 0
    %1113 = vmatprep.subr.bf16.mxu0 0
    %1114 = vmatpush1.bf16.msra.mxu0 0
    %1115 = vmatprep.subr.bf16.mxu0 0
    %1116 = vmatpush1.bf16.msra.mxu0 0
    %1117 = vmatprep.subr.bf16.mxu0 0
    %1118 = vmatpush1.bf16.msra.mxu0 0
    %1119 = vmatprep.subr.bf16.mxu0 0
    %1120 = vmatpush1.bf16.msra.mxu0 0
    %1121 = vmatprep.subr.bf16.mxu0 0
    %1122 = vmatpush1.bf16.msra.mxu0 0
    %1123 = vmatprep.subr.bf16.mxu0 0
    %1124 = vmatpush1.bf16.msra.mxu0 0
    %1125 = vmatprep.subr.bf16.mxu0 0
    %1126 = vmatpush1.bf16.msra.mxu0 0
    %1127 = vmatprep.subr.bf16.mxu0 0
    %1128 = vmatpush1.bf16.msra.mxu0 0
    %1129 = vmatprep.subr.bf16.mxu0 0
    %1130 = vmatpush1.bf16.msra.mxu0 0
    %1131 = vmatprep.mubr.bf16.mxu0 0
    %1132 = vmatmul.mubr.bf16.gmra.mrb[0].mxu0 %v1095
    %v1133 = vpop.f32.mrb[0].mxu0
    %v1134 = vadd.f32 0.0, %v1133
    %v1135 = vpop.f32.mrb[0].mxu0
    %v1136 = vpop.f32.mrb[0].mxu0
    %v1137 = vadd.f32 0.0, %v1136
    %v1138 = vpop.f32.mrb[0].mxu0
    %1139 = vdwg.mxu0
    %v1141 = vsel %vm816, %v996, 0
    %v1143 = vsel %vm1004, %v45, 0
    %1145 = vmatprep.subr.bf16.mxu0 0
    %1146 = vmatpush1.bf16.msra.mxu0 %v1143
    %1147 = vmatprep.subr.bf16.mxu0 0
    %1148 = vmatpush1.bf16.msra.mxu0 0
    %1149 = vmatprep.subr.bf16.mxu0 0
    %1150 = vmatpush1.bf16.msra.mxu0 0
    %1151 = vmatprep.subr.bf16.mxu0 0
    %1152 = vmatpush1.bf16.msra.mxu0 0
    %1153 = vmatprep.subr.bf16.mxu0 0
    %1154 = vmatpush1.bf16.msra.mxu0 0
    %1155 = vmatprep.subr.bf16.mxu0 0
    %1156 = vmatpush1.bf16.msra.mxu0 0
    %1157 = vmatprep.subr.bf16.mxu0 0
    %1158 = vmatpush1.bf16.msra.mxu0 0
    %1159 = vmatprep.subr.bf16.mxu0 0
    %1160 = vmatpush1.bf16.msra.mxu0 0
    %1161 = vmatprep.subr.bf16.mxu0 0
    %1162 = vmatpush1.bf16.msra.mxu0 0
    %1163 = vmatprep.subr.bf16.mxu0 0
    %1164 = vmatpush1.bf16.msra.mxu0 0
    %1165 = vmatprep.subr.bf16.mxu0 0
    %1166 = vmatpush1.bf16.msra.mxu0 0
    %1167 = vmatprep.subr.bf16.mxu0 0
    %1168 = vmatpush1.bf16.msra.mxu0 0
    %1169 = vmatprep.subr.bf16.mxu0 0
    %1170 = vmatpush1.bf16.msra.mxu0 0
    %1171 = vmatprep.subr.bf16.mxu0 0
    %1172 = vmatpush1.bf16.msra.mxu0 0
    %1173 = vmatprep.subr.bf16.mxu0 0
    %1174 = vmatpush1.bf16.msra.mxu0 0
    %1175 = vmatprep.subr.bf16.mxu0 0
    %1176 = vmatpush1.bf16.msra.mxu0 0
    %1177 = vmatprep.mubr.bf16.mxu0 0
    %1178 = vmatmul.mubr.bf16.gmra.mrb[0].mxu0 %v1141
    %v1179 = vpop.f32.mrb[0].mxu0
    %v1180 = vadd.f32 0.0, %v1179
    %v1181 = vpop.f32.mrb[0].mxu0
    %v1182 = vpop.f32.mrb[0].mxu0
    %v1183 = vadd.f32 0.0, %v1182
    %v1184 = vpop.f32.mrb[0].mxu0
    %1185 = vdwg.mxu0
    %v1187 = vsel %vm816, %v997, 0
    %v1189 = vsel %vm1004, %v46, 0
    %1191 = vmatprep.subr.bf16.mxu0 0
    %1192 = vmatpush1.bf16.msra.mxu0 %v1189
    %1193 = vmatprep.subr.bf16.mxu0 0
    %1194 = vmatpush1.bf16.msra.mxu0 0
    %1195 = vmatprep.subr.bf16.mxu0 0
    %1196 = vmatpush1.bf16.msra.mxu0 0
    %1197 = vmatprep.subr.bf16.mxu0 0
    %1198 = vmatpush1.bf16.msra.mxu0 0
    %1199 = vmatprep.subr.bf16.mxu0 0
    %1200 = vmatpush1.bf16.msra.mxu0 0
    %1201 = vmatprep.subr.bf16.mxu0 0
    %1202 = vmatpush1.bf16.msra.mxu0 0
    %1203 = vmatprep.subr.bf16.mxu0 0
    %1204 = vmatpush1.bf16.msra.mxu0 0
    %1205 = vmatprep.subr.bf16.mxu0 0
    %1206 = vmatpush1.bf16.msra.mxu0 0
    %1207 = vmatprep.subr.bf16.mxu0 0
    %1208 = vmatpush1.bf16.msra.mxu0 0
    %1209 = vmatprep.subr.bf16.mxu0 0
    %1210 = vmatpush1.bf16.msra.mxu0 0
    %1211 = vmatprep.subr.bf16.mxu0 0
    %1212 = vmatpush1.bf16.msra.mxu0 0
    %1213 = vmatprep.subr.bf16.mxu0 0
    %1214 = vmatpush1.bf16.msra.mxu0 0
    %1215 = vmatprep.subr.bf16.mxu0 0
    %1216 = vmatpush1.bf16.msra.mxu0 0
    %1217 = vmatprep.subr.bf16.mxu0 0
    %1218 = vmatpush1.bf16.msra.mxu0 0
    %1219 = vmatprep.subr.bf16.mxu0 0
    %1220 = vmatpush1.bf16.msra.mxu0 0
    %1221 = vmatprep.subr.bf16.mxu0 0
    %1222 = vmatpush1.bf16.msra.mxu0 0
    %1223 = vmatprep.mubr.bf16.mxu0 0
    %1224 = vmatmul.mubr.bf16.gmra.mrb[0].mxu0 %v1187
    %v1225 = vpop.f32.mrb[0].mxu0
    %v1226 = vadd.f32 0.0, %v1225
    %v1227 = vpop.f32.mrb[0].mxu0
    %v1228 = vpop.f32.mrb[0].mxu0
    %v1229 = vadd.f32 0.0, %v1228
    %v1230 = vpop.f32.mrb[0].mxu0
    %1231 = vdwg.mxu0
    %v1233 = vsel %vm816, %v998, 0
    %v1235 = vsel %vm1004, %v47, 0
    %1237 = vmatprep.subr.bf16.mxu0 0
    %1238 = vmatpush1.bf16.msra.mxu0 %v1235
    %1239 = vmatprep.subr.bf16.mxu0 0
    %1240 = vmatpush1.bf16.msra.mxu0 0
    %1241 = vmatprep.subr.bf16.mxu0 0
    %1242 = vmatpush1.bf16.msra.mxu0 0
    %1243 = vmatprep.subr.bf16.mxu0 0
    %1244 = vmatpush1.bf16.msra.mxu0 0
    %1245 = vmatprep.subr.bf16.mxu0 0
    %1246 = vmatpush1.bf16.msra.mxu0 0
    %1247 = vmatprep.subr.bf16.mxu0 0
    %1248 = vmatpush1.bf16.msra.mxu0 0
    %1249 = vmatprep.subr.bf16.mxu0 0
    %1250 = vmatpush1.bf16.msra.mxu0 0
    %1251 = vmatprep.subr.bf16.mxu0 0
    %1252 = vmatpush1.bf16.msra.mxu0 0
    %1253 = vmatprep.subr.bf16.mxu0 0
    %1254 = vmatpush1.bf16.msra.mxu0 0
    %1255 = vmatprep.subr.bf16.mxu0 0
    %1256 = vmatpush1.bf16.msra.mxu0 0
    %1257 = vmatprep.subr.bf16.mxu0 0
    %1258 = vmatpush1.bf16.msra.mxu0 0
    %1259 = vmatprep.subr.bf16.mxu0 0
    %1260 = vmatpush1.bf16.msra.mxu0 0
    %1261 = vmatprep.subr.bf16.mxu0 0
    %1262 = vmatpush1.bf16.msra.mxu0 0
    %1263 = vmatprep.subr.bf16.mxu0 0
    %1264 = vmatpush1.bf16.msra.mxu0 0
    %1265 = vmatprep.subr.bf16.mxu0 0
    %1266 = vmatpush1.bf16.msra.mxu0 0
    %1267 = vmatprep.subr.bf16.mxu0 0
    %1268 = vmatpush1.bf16.msra.mxu0 0
    %1269 = vmatprep.mubr.bf16.mxu0 0
    %1270 = vmatmul.mubr.bf16.gmra.mrb[0].mxu0 %v1233
    %v1271 = vpop.f32.mrb[0].mxu0
    %v1272 = vadd.f32 0.0, %v1271
    %v1273 = vpop.f32.mrb[0].mxu0
    %v1274 = vpop.f32.mrb[0].mxu0
    %v1275 = vadd.f32 0.0, %v1274
    %v1276 = vpop.f32.mrb[0].mxu0
    %1277 = vdwg.mxu0
    %v1279 = vsel %vm816, %v999, 0
    %v1281 = vsel %vm1004, %v48, 0
    %1283 = vmatprep.subr.bf16.mxu0 0
    %1284 = vmatpush1.bf16.msra.mxu0 %v1281
    %1285 = vmatprep.subr.bf16.mxu0 0
    %1286 = vmatpush1.bf16.msra.mxu0 0
    %1287 = vmatprep.subr.bf16.mxu0 0
    %1288 = vmatpush1.bf16.msra.mxu0 0
    %1289 = vmatprep.subr.bf16.mxu0 0
    %1290 = vmatpush1.bf16.msra.mxu0 0
    %1291 = vmatprep.subr.bf16.mxu0 0
    %1292 = vmatpush1.bf16.msra.mxu0 0
    %1293 = vmatprep.subr.bf16.mxu0 0
    %1294 = vmatpush1.bf16.msra.mxu0 0
    %1295 = vmatprep.subr.bf16.mxu0 0
    %1296 = vmatpush1.bf16.msra.mxu0 0
    %1297 = vmatprep.subr.bf16.mxu0 0
    %1298 = vmatpush1.bf16.msra.mxu0 0
    %1299 = vmatprep.subr.bf16.mxu0 0
    %1300 = vmatpush1.bf16.msra.mxu0 0
    %1301 = vmatprep.subr.bf16.mxu0 0
    %1302 = vmatpush1.bf16.msra.mxu0 0
    %1303 = vmatprep.subr.bf16.mxu0 0
    %1304 = vmatpush1.bf16.msra.mxu0 0
    %1305 = vmatprep.subr.bf16.mxu0 0
    %1306 = vmatpush1.bf16.msra.mxu0 0
    %1307 = vmatprep.subr.bf16.mxu0 0
    %1308 = vmatpush1.bf16.msra.mxu0 0
    %1309 = vmatprep.subr.bf16.mxu0 0
    %1310 = vmatpush1.bf16.msra.mxu0 0
    %1311 = vmatprep.subr.bf16.mxu0 0
    %1312 = vmatpush1.bf16.msra.mxu0 0
    %1313 = vmatprep.subr.bf16.mxu0 0
    %1314 = vmatpush1.bf16.msra.mxu0 0
    %1315 = vmatprep.mubr.bf16.mxu0 0
    %1316 = vmatmul.mubr.bf16.gmra.mrb[0].mxu0 %v1279
    %v1317 = vpop.f32.mrb[0].mxu0
    %v1318 = vadd.f32 0.0, %v1317
    %v1319 = vpop.f32.mrb[0].mxu0
    %v1320 = vpop.f32.mrb[0].mxu0
    %v1321 = vadd.f32 0.0, %v1320
    %v1322 = vpop.f32.mrb[0].mxu0
    %1323 = vdwg.mxu0
    %v1325 = vsel %vm816, %v1000, 0
    %v1327 = vsel %vm1004, %v49, 0
    %1329 = vmatprep.subr.bf16.mxu0 0
    %1330 = vmatpush1.bf16.msra.mxu0 %v1327
    %1331 = vmatprep.subr.bf16.mxu0 0
    %1332 = vmatpush1.bf16.msra.mxu0 0
    %1333 = vmatprep.subr.bf16.mxu0 0
    %1334 = vmatpush1.bf16.msra.mxu0 0
    %1335 = vmatprep.subr.bf16.mxu0 0
    %1336 = vmatpush1.bf16.msra.mxu0 0
    %1337 = vmatprep.subr.bf16.mxu0 0
    %1338 = vmatpush1.bf16.msra.mxu0 0
    %1339 = vmatprep.subr.bf16.mxu0 0
    %1340 = vmatpush1.bf16.msra.mxu0 0
    %1341 = vmatprep.subr.bf16.mxu0 0
    %1342 = vmatpush1.bf16.msra.mxu0 0
    %1343 = vmatprep.subr.bf16.mxu0 0
    %1344 = vmatpush1.bf16.msra.mxu0 0
    %1345 = vmatprep.subr.bf16.mxu0 0
    %1346 = vmatpush1.bf16.msra.mxu0 0
    %1347 = vmatprep.subr.bf16.mxu0 0
    %1348 = vmatpush1.bf16.msra.mxu0 0
    %1349 = vmatprep.subr.bf16.mxu0 0
    %1350 = vmatpush1.bf16.msra.mxu0 0
    %1351 = vmatprep.subr.bf16.mxu0 0
    %1352 = vmatpush1.bf16.msra.mxu0 0
    %1353 = vmatprep.subr.bf16.mxu0 0
    %1354 = vmatpush1.bf16.msra.mxu0 0
    %1355 = vmatprep.subr.bf16.mxu0 0
    %1356 = vmatpush1.bf16.msra.mxu0 0
    %1357 = vmatprep.subr.bf16.mxu0 0
    %1358 = vmatpush1.bf16.msra.mxu0 0
    %1359 = vmatprep.subr.bf16.mxu0 0
    %1360 = vmatpush1.bf16.msra.mxu0 0
    %1361 = vmatprep.mubr.bf16.mxu0 0
    %1362 = vmatmul.mubr.bf16.gmra.mrb[0].mxu0 %v1325
    %v1363 = vpop.f32.mrb[0].mxu0
    %v1364 = vadd.f32 0.0, %v1363
    %v1365 = vpop.f32.mrb[0].mxu0
    %v1366 = vpop.f32.mrb[0].mxu0
    %v1367 = vadd.f32 0.0, %v1366
    %v1368 = vpop.f32.mrb[0].mxu0
    %1369 = vdwg.mxu0
    %v1370 = vpack.c.bf16 %v1045, %v1042
    %v1371 = vpack.c.bf16 %v1091, %v1088
    %v1372 = vpack.c.bf16 %v1137, %v1134
    %v1373 = vpack.c.bf16 %v1183, %v1180
    %v1374 = vpack.c.bf16 %v1229, %v1226
    %v1375 = vpack.c.bf16 %v1275, %v1272
    %v1376 = vpack.c.bf16 %v1321, %v1318
    %v1377 = vpack.c.bf16 %v1367, %v1364
    %1378 = vst.msk [vmem:[#allocation2] sm:$0xff] %vm388, %v1370
    %1379 = vst.msk [vmem:[#allocation2 + $0x8] sm:$0xff] %vm388, %v1371
    %1380 = vst.msk [vmem:[#allocation2 + $0x10] sm:$0xff] %vm388, %v1372
    %1381 = vst.msk [vmem:[#allocation2 + $0x18] sm:$0xff] %vm388, %v1373
    %1382 = vst.msk [vmem:[#allocation2 + $0x20] sm:$0xff] %vm388, %v1374
    %1383 = vst.msk [vmem:[#allocation2 + $0x28] sm:$0xff] %vm388, %v1375
    %1384 = vst.msk [vmem:[#allocation2 + $0x30] sm:$0xff] %vm388, %v1376
    %1385 = vst.msk [vmem:[#allocation2 + $0x38] sm:$0xff] %vm388, %v1377
    %1386 = vrot.lane.b32.xlu0 %v387, 64
    %v1387 = vpop.permute.xlu0 %1386
    %1388 = vrot.lane.b32.xlu0 %v440, 64
    %v1389 = vpop.permute.xlu0 %1388
    %1390 = vrot.lane.b32.xlu0 %v492, 64
    %v1391 = vpop.permute.xlu0 %1390
    %1392 = vrot.lane.b32.xlu0 %v544, 64
    %v1393 = vpop.permute.xlu0 %1392
    %1394 = vrot.lane.b32.xlu0 %v596, 64
    %v1395 = vpop.permute.xlu0 %1394
    %1396 = vrot.lane.b32.xlu0 %v648, 64
    %v1397 = vpop.permute.xlu0 %1396
    %1398 = vrot.lane.b32.xlu0 %v700, 64
    %v1399 = vpop.permute.xlu0 %1398
    %1400 = vrot.lane.b32.xlu0 %v752, 64
    %v1401 = vpop.permute.xlu0 %1400
    %vm1410 = vcmask 1048064
    %1411 = vst.msk [vmem:[#allocation2] sm:$0xff] %vm1410, %v1387
    %1412 = vst.msk [vmem:[#allocation2 + $0x8] sm:$0xff] %vm1410, %v1389
    %1413 = vst.msk [vmem:[#allocation2 + $0x10] sm:$0xff] %vm1410, %v1391
    %1414 = vst.msk [vmem:[#allocation2 + $0x18] sm:$0xff] %vm1410, %v1393
    %1415 = vst.msk [vmem:[#allocation2 + $0x20] sm:$0xff] %vm1410, %v1395
    %1416 = vst.msk [vmem:[#allocation2 + $0x28] sm:$0xff] %vm1410, %v1397
    %1417 = vst.msk [vmem:[#allocation2 + $0x30] sm:$0xff] %vm1410, %v1399
    %1418 = vst.msk [vmem:[#allocation2 + $0x38] sm:$0xff] %vm1410, %v1401
    %v1419 = vld [vmem:[#allocation2] sm:$0xff]
    %v1420 = vld [vmem:[#allocation2 + $0x8] sm:$0xff]
    %v1421 = vld [vmem:[#allocation2 + $0x10] sm:$0xff]
    %v1422 = vld [vmem:[#allocation2 + $0x18] sm:$0xff]
    %v1423 = vld [vmem:[#allocation2 + $0x20] sm:$0xff]
    %v1424 = vld [vmem:[#allocation2 + $0x28] sm:$0xff]
    %v1425 = vld [vmem:[#allocation2 + $0x30] sm:$0xff]
    %v1426 = vld [vmem:[#allocation2 + $0x38] sm:$0xff]
    %v1427 = vld [vmem:[%s5] sm:$0xf]
    %v1428 = vld [vmem:[%s5 + $0x4] sm:$0xf]
    %v1429 = vld [vmem:[%s5 + $0x8] sm:$0xf]
    %v1430 = vld [vmem:[%s5 + $0xc] sm:$0xf]
    %v1431 = vld [vmem:[%s5 + $0x10] sm:$0xf]
    %v1432 = vld [vmem:[%s5 + $0x14] sm:$0xf]
    %v1433 = vld [vmem:[%s5 + $0x18] sm:$0xf]
    %v1434 = vld [vmem:[%s5 + $0x1c] sm:$0xf]
    %v1435 = vld [vmem:[%s5 + $0x20] sm:$0xf]
    %v1436 = vld [vmem:[%s5 + $0x24] sm:$0xf]
    %v1437 = vld [vmem:[%s5 + $0x28] sm:$0xf]
    %v1438 = vld [vmem:[%s5 + $0x2c] sm:$0xf]
    %v1439 = vld [vmem:[%s5 + $0x30] sm:$0xf]
    %v1440 = vld [vmem:[%s5 + $0x34] sm:$0xf]
    %v1441 = vld [vmem:[%s5 + $0x38] sm:$0xf]
    %v1442 = vld [vmem:[%s5 + $0x3c] sm:$0xf]
    %v1443 = vld [vmem:[%s6] sm:$0x1]
    %v1445 = vlaneseq
    %v1446 = vshrl.u32 %v1445, 7
    %v1447 = vsub.s32 0, %v1446
    %v1448 = vrot.slane %v1443, %v1447
    %v1466 = vunpack.c.l.b16 %v1427
    %v1467 = vunpack.c.l.b16 %v1428
    %v1468 = vunpack.c.l.b16 %v1429
    %v1469 = vunpack.c.l.b16 %v1430
    %v1470 = vunpack.c.l.b16 %v1431
    %v1471 = vunpack.c.l.b16 %v1432
    %v1472 = vunpack.c.l.b16 %v1433
    %v1473 = vunpack.c.l.b16 %v1434
    %v1474 = vunpack.c.l.b16 %v1435
    %v1475 = vunpack.c.l.b16 %v1436
    %v1476 = vunpack.c.l.b16 %v1437
    %v1477 = vunpack.c.l.b16 %v1438
    %v1478 = vunpack.c.l.b16 %v1439
    %v1479 = vunpack.c.l.b16 %v1440
    %v1480 = vunpack.c.l.b16 %v1441
    %v1481 = vunpack.c.l.b16 %v1442
    %v1482 = vpack.c.b16 %v1467, %v1466
    %v1483 = vpack.c.b16 %v1469, %v1468
    %v1484 = vpack.c.b16 %v1471, %v1470
    %v1485 = vpack.c.b16 %v1473, %v1472
    %v1486 = vpack.c.b16 %v1475, %v1474
    %v1487 = vpack.c.b16 %v1477, %v1476
    %v1488 = vpack.c.b16 %v1479, %v1478
    %v1489 = vpack.c.b16 %v1481, %v1480
    %1498 = vmatprep.subr.bf16.mxu0 0
    %1499 = vmatpush1.bf16.msra.mxu0 %v1482
    %1500 = vmatprep.subr.bf16.mxu0 0
    %1501 = vmatpush1.bf16.msra.mxu0 %v1483
    %1502 = vmatprep.subr.bf16.mxu0 0
    %1503 = vmatpush1.bf16.msra.mxu0 %v1484
    %1504 = vmatprep.subr.bf16.mxu0 0
    %1505 = vmatpush1.bf16.msra.mxu0 %v1485
    %1506 = vmatprep.subr.bf16.mxu0 0
    %1507 = vmatpush1.bf16.msra.mxu0 %v1486
    %1508 = vmatprep.subr.bf16.mxu0 0
    %1509 = vmatpush1.bf16.msra.mxu0 %v1487
    %1510 = vmatprep.subr.bf16.mxu0 0
    %1511 = vmatpush1.bf16.msra.mxu0 %v1488
    %1512 = vmatprep.subr.bf16.mxu0 0
    %1513 = vmatpush1.bf16.msra.mxu0 %v1489
    %1514 = vmatprep.subr.bf16.mxu0 0
    %1515 = vmatpush1.bf16.msra.mxu0 0
    %1516 = vmatprep.subr.bf16.mxu0 0
    %1517 = vmatpush1.bf16.msra.mxu0 0
    %1518 = vmatprep.subr.bf16.mxu0 0
    %1519 = vmatpush1.bf16.msra.mxu0 0
    %1520 = vmatprep.subr.bf16.mxu0 0
    %1521 = vmatpush1.bf16.msra.mxu0 0
    %1522 = vmatprep.subr.bf16.mxu0 0
    %1523 = vmatpush1.bf16.msra.mxu0 0
    %1524 = vmatprep.subr.bf16.mxu0 0
    %1525 = vmatpush1.bf16.msra.mxu0 0
    %1526 = vmatprep.subr.bf16.mxu0 0
    %1527 = vmatpush1.bf16.msra.mxu0 0
    %1528 = vmatprep.subr.bf16.mxu0 0
    %1529 = vmatpush1.bf16.msra.mxu0 0
    %1530 = vmatprep.mubr.bf16.mxu0 0
    %1531 = vmatmul.mubr.bf16.gmra.mrb[0].mxu0 %v1419
    %v1532 = vpop.f32.mrb[0].mxu0
    %v1533 = vadd.f32 %v1448, %v1532
    %v1534 = vpop.f32.mrb[0].mxu0
    %v1535 = vpop.f32.mrb[0].mxu0
    %v1536 = vadd.f32 %v1448, %v1535
    %v1537 = vpop.f32.mrb[0].mxu0
    %1538 = vmatprep.mubr.bf16.mxu0 0
    %1539 = vmatmul.mubr.bf16.gmra.mrb[0].mxu0 %v1420
    %v1540 = vpop.f32.mrb[0].mxu0
    %v1541 = vadd.f32 %v1448, %v1540
    %v1542 = vpop.f32.mrb[0].mxu0
    %v1543 = vpop.f32.mrb[0].mxu0
    %v1544 = vadd.f32 %v1448, %v1543
    %v1545 = vpop.f32.mrb[0].mxu0
    %1546 = vmatprep.mubr.bf16.mxu0 0
    %1547 = vmatmul.mubr.bf16.gmra.mrb[0].mxu0 %v1421
    %v1548 = vpop.f32.mrb[0].mxu0
    %v1549 = vadd.f32 %v1448, %v1548
    %v1550 = vpop.f32.mrb[0].mxu0
    %v1551 = vpop.f32.mrb[0].mxu0
    %v1552 = vadd.f32 %v1448, %v1551
    %v1553 = vpop.f32.mrb[0].mxu0
    %1554 = vmatprep.mubr.bf16.mxu0 0
    %1555 = vmatmul.mubr.bf16.gmra.mrb[0].mxu0 %v1422
    %v1556 = vpop.f32.mrb[0].mxu0
    %v1557 = vadd.f32 %v1448, %v1556
    %v1558 = vpop.f32.mrb[0].mxu0
    %v1559 = vpop.f32.mrb[0].mxu0
    %v1560 = vadd.f32 %v1448, %v1559
    %v1561 = vpop.f32.mrb[0].mxu0
    %1562 = vmatprep.mubr.bf16.mxu0 0
    %1563 = vmatmul.mubr.bf16.gmra.mrb[0].mxu0 %v1423
    %v1564 = vpop.f32.mrb[0].mxu0
    %v1565 = vadd.f32 %v1448, %v1564
    %v1566 = vpop.f32.mrb[0].mxu0
    %v1567 = vpop.f32.mrb[0].mxu0
    %v1568 = vadd.f32 %v1448, %v1567
    %v1569 = vpop.f32.mrb[0].mxu0
    %1570 = vmatprep.mubr.bf16.mxu0 0
    %1571 = vmatmul.mubr.bf16.gmra.mrb[0].mxu0 %v1424
    %v1572 = vpop.f32.mrb[0].mxu0
    %v1573 = vadd.f32 %v1448, %v1572
    %v1574 = vpop.f32.mrb[0].mxu0
    %v1575 = vpop.f32.mrb[0].mxu0
    %v1576 = vadd.f32 %v1448, %v1575
    %v1577 = vpop.f32.mrb[0].mxu0
    %1578 = vmatprep.mubr.bf16.mxu0 0
    %1579 = vmatmul.mubr.bf16.gmra.mrb[0].mxu0 %v1425
    %v1580 = vpop.f32.mrb[0].mxu0
    %v1581 = vadd.f32 %v1448, %v1580
    %v1582 = vpop.f32.mrb[0].mxu0
    %v1583 = vpop.f32.mrb[0].mxu0
    %v1584 = vadd.f32 %v1448, %v1583
    %v1585 = vpop.f32.mrb[0].mxu0
    %1586 = vmatprep.mubr.bf16.mxu0 0
    %1587 = vmatmul.mubr.bf16.gmra.mrb[0].mxu0 %v1426
    %v1588 = vpop.f32.mrb[0].mxu0
    %v1589 = vadd.f32 %v1448, %v1588
    %v1590 = vpop.f32.mrb[0].mxu0
    %v1591 = vpop.f32.mrb[0].mxu0
    %v1592 = vadd.f32 %v1448, %v1591
    %v1593 = vpop.f32.mrb[0].mxu0
    %1594 = vdwg.mxu0
    %vm1595 = vcmp.gt.f32.partialorder %v1533, 0.0
    %vm1596 = vcmp.gt.f32.partialorder %v1536, 0.0
    %vm1597 = vcmp.gt.f32.partialorder %v1541, 0.0
    %vm1598 = vcmp.gt.f32.partialorder %v1544, 0.0
    %vm1599 = vcmp.gt.f32.partialorder %v1549, 0.0
    %vm1600 = vcmp.gt.f32.partialorder %v1552, 0.0
    %vm1601 = vcmp.gt.f32.partialorder %v1557, 0.0
    %vm1602 = vcmp.gt.f32.partialorder %v1560, 0.0
    %vm1603 = vcmp.gt.f32.partialorder %v1565, 0.0
    %vm1604 = vcmp.gt.f32.partialorder %v1568, 0.0
    %vm1605 = vcmp.gt.f32.partialorder %v1573, 0.0
    %vm1606 = vcmp.gt.f32.partialorder %v1576, 0.0
    %vm1607 = vcmp.gt.f32.partialorder %v1581, 0.0
    %vm1608 = vcmp.gt.f32.partialorder %v1584, 0.0
    %vm1609 = vcmp.gt.f32.partialorder %v1589, 0.0
    %vm1610 = vcmp.gt.f32.partialorder %v1592, 0.0
    %v1611 = vmul.f32 %v1533, 0.01
    %v1612 = vmul.f32 %v1536, 0.01
    %v1613 = vmul.f32 %v1541, 0.01
    %v1614 = vmul.f32 %v1544, 0.01
    %v1615 = vmul.f32 %v1549, 0.01
    %v1616 = vmul.f32 %v1552, 0.01
    %v1617 = vmul.f32 %v1557, 0.01
    %v1618 = vmul.f32 %v1560, 0.01
    %v1619 = vmul.f32 %v1565, 0.01
    %v1620 = vmul.f32 %v1568, 0.01
    %v1621 = vmul.f32 %v1573, 0.01
    %v1622 = vmul.f32 %v1576, 0.01
    %v1623 = vmul.f32 %v1581, 0.01
    %v1624 = vmul.f32 %v1584, 0.01
    %v1625 = vmul.f32 %v1589, 0.01
    %v1626 = vmul.f32 %v1592, 0.01
    %v1627 = vsel %vm1595, %v1533, %v1611
    %v1628 = vsel %vm1596, %v1536, %v1612
    %v1629 = vsel %vm1597, %v1541, %v1613
    %v1630 = vsel %vm1598, %v1544, %v1614
    %v1631 = vsel %vm1599, %v1549, %v1615
    %v1632 = vsel %vm1600, %v1552, %v1616
    %v1633 = vsel %vm1601, %v1557, %v1617
    %v1634 = vsel %vm1602, %v1560, %v1618
    %v1635 = vsel %vm1603, %v1565, %v1619
    %v1636 = vsel %vm1604, %v1568, %v1620
    %v1637 = vsel %vm1605, %v1573, %v1621
    %v1638 = vsel %vm1606, %v1576, %v1622
    %v1639 = vsel %vm1607, %v1581, %v1623
    %v1640 = vsel %vm1608, %v1584, %v1624
    %v1641 = vsel %vm1609, %v1589, %v1625
    %v1642 = vsel %vm1610, %v1592, %v1626
    %v1643 = vld [vmem:[%s7] sm:$0x1]
    %v1645 = vlaneseq
    %v1646 = vshrl.u32 %v1645, 7
    %v1647 = vsub.s32 0, %v1646
    %v1648 = vrot.slane %v1643, %v1647
    %v1650 = vmul.f32 %v66, %v1648
    %v1651 = vmul.f32 %v67, %v1648
    %v1652 = vmul.f32 %v68, %v1648
    %v1653 = vmul.f32 %v69, %v1648
    %v1654 = vmul.f32 %v70, %v1648
    %v1655 = vmul.f32 %v71, %v1648
    %v1656 = vmul.f32 %v72, %v1648
    %v1657 = vmul.f32 %v73, %v1648
    %v1658 = vmul.f32 %v74, %v1648
    %v1659 = vmul.f32 %v75, %v1648
    %v1660 = vmul.f32 %v76, %v1648
    %v1661 = vmul.f32 %v77, %v1648
    %v1662 = vmul.f32 %v78, %v1648
    %v1663 = vmul.f32 %v79, %v1648
    %v1664 = vmul.f32 %v80, %v1648
    %v1665 = vmul.f32 %v81, %v1648
    %v1666 = vsel %vm388, %v1650, 0.0
    %1667 = vadd.xlane.f32.xlu0 %v1666
    %v1668 = vpop.xlane.xlu0 %1667
    %v1669 = vsel %vm388, %v1651, 0.0
    %1670 = vadd.xlane.f32.xlu0 %v1669
    %v1671 = vpop.xlane.xlu0 %1670
    %v1672 = vsel %vm388, %v1652, 0.0
    %1673 = vadd.xlane.f32.xlu0 %v1672
    %v1674 = vpop.xlane.xlu0 %1673
    %v1675 = vsel %vm388, %v1653, 0.0
    %1676 = vadd.xlane.f32.xlu0 %v1675
    %v1677 = vpop.xlane.xlu0 %1676
    %v1678 = vsel %vm388, %v1654, 0.0
    %1679 = vadd.xlane.f32.xlu0 %v1678
    %v1680 = vpop.xlane.xlu0 %1679
    %v1681 = vsel %vm388, %v1655, 0.0
    %1682 = vadd.xlane.f32.xlu0 %v1681
    %v1683 = vpop.xlane.xlu0 %1682
    %v1684 = vsel %vm388, %v1656, 0.0
    %1685 = vadd.xlane.f32.xlu0 %v1684
    %v1686 = vpop.xlane.xlu0 %1685
    %v1687 = vsel %vm388, %v1657, 0.0
    %1688 = vadd.xlane.f32.xlu0 %v1687
    %v1689 = vpop.xlane.xlu0 %1688
    %v1690 = vsel %vm388, %v1658, 0.0
    %1691 = vadd.xlane.f32.xlu0 %v1690
    %v1692 = vpop.xlane.xlu0 %1691
    %v1693 = vsel %vm388, %v1659, 0.0
    %1694 = vadd.xlane.f32.xlu0 %v1693
    %v1695 = vpop.xlane.xlu0 %1694
    %v1696 = vsel %vm388, %v1660, 0.0
    %1697 = vadd.xlane.f32.xlu0 %v1696
    %v1698 = vpop.xlane.xlu0 %1697
    %v1699 = vsel %vm388, %v1661, 0.0
    %1700 = vadd.xlane.f32.xlu0 %v1699
    %v1701 = vpop.xlane.xlu0 %1700
    %v1702 = vsel %vm388, %v1662, 0.0
    %1703 = vadd.xlane.f32.xlu0 %v1702
    %v1704 = vpop.xlane.xlu0 %1703
    %v1705 = vsel %vm388, %v1663, 0.0
    %1706 = vadd.xlane.f32.xlu0 %v1705
    %v1707 = vpop.xlane.xlu0 %1706
    %v1708 = vsel %vm388, %v1664, 0.0
    %1709 = vadd.xlane.f32.xlu0 %v1708
    %v1710 = vpop.xlane.xlu0 %1709
    %v1711 = vsel %vm388, %v1665, 0.0
    %1712 = vadd.xlane.f32.xlu0 %v1711
    %v1713 = vpop.xlane.xlu0 %1712
    %v1714 = vld [vmem:[%s8] sm:$0x1]
    %v1716 = vlaneseq
    %v1717 = vshrl.u32 %v1716, 7
    %v1718 = vsub.s32 0, %v1717
    %v1719 = vrot.slane %v1714, %v1718
    %v1721 = vadd.f32 %v1668, %v1719
    %v1722 = vadd.f32 %v1671, %v1719
    %v1723 = vadd.f32 %v1674, %v1719
    %v1724 = vadd.f32 %v1677, %v1719
    %v1725 = vadd.f32 %v1680, %v1719
    %v1726 = vadd.f32 %v1683, %v1719
    %v1727 = vadd.f32 %v1686, %v1719
    %v1728 = vadd.f32 %v1689, %v1719
    %v1729 = vadd.f32 %v1692, %v1719
    %v1730 = vadd.f32 %v1695, %v1719
    %v1731 = vadd.f32 %v1698, %v1719
    %v1732 = vadd.f32 %v1701, %v1719
    %v1733 = vadd.f32 %v1704, %v1719
    %v1734 = vadd.f32 %v1707, %v1719
    %v1735 = vadd.f32 %v1710, %v1719
    %v1736 = vadd.f32 %v1713, %v1719
    %v1737 = vxor.u32 %v1721, 2147483648
    %v1738 = vxor.u32 %v1722, 2147483648
    %v1739 = vxor.u32 %v1723, 2147483648
    %v1740 = vxor.u32 %v1724, 2147483648
    %v1741 = vxor.u32 %v1725, 2147483648
    %v1742 = vxor.u32 %v1726, 2147483648
    %v1743 = vxor.u32 %v1727, 2147483648
    %v1744 = vxor.u32 %v1728, 2147483648
    %v1745 = vxor.u32 %v1729, 2147483648
    %v1746 = vxor.u32 %v1730, 2147483648
    %v1747 = vxor.u32 %v1731, 2147483648
    %v1748 = vxor.u32 %v1732, 2147483648
    %v1749 = vxor.u32 %v1733, 2147483648
    %v1750 = vxor.u32 %v1734, 2147483648
    %v1751 = vxor.u32 %v1735, 2147483648
    %v1752 = vxor.u32 %v1736, 2147483648
    %v1753 = vmul.f32 %v1737, 1.442695
    %v1754 = vpow.pop %v1753
    %v1755 = vmul.f32 %v1738, 1.442695
    %v1756 = vpow.pop %v1755
    %v1757 = vmul.f32 %v1739, 1.442695
    %v1758 = vpow.pop %v1757
    %v1759 = vmul.f32 %v1740, 1.442695
    %v1760 = vpow.pop %v1759
    %v1761 = vmul.f32 %v1741, 1.442695
    %v1762 = vpow.pop %v1761
    %v1763 = vmul.f32 %v1742, 1.442695
    %v1764 = vpow.pop %v1763
    %v1765 = vmul.f32 %v1743, 1.442695
    %v1766 = vpow.pop %v1765
    %v1767 = vmul.f32 %v1744, 1.442695
    %v1768 = vpow.pop %v1767
    %v1769 = vmul.f32 %v1745, 1.442695
    %v1770 = vpow.pop %v1769
    %v1771 = vmul.f32 %v1746, 1.442695
    %v1772 = vpow.pop %v1771
    %v1773 = vmul.f32 %v1747, 1.442695
    %v1774 = vpow.pop %v1773
    %v1775 = vmul.f32 %v1748, 1.442695
    %v1776 = vpow.pop %v1775
    %v1777 = vmul.f32 %v1749, 1.442695
    %v1778 = vpow.pop %v1777
    %v1779 = vmul.f32 %v1750, 1.442695
    %v1780 = vpow.pop %v1779
    %v1781 = vmul.f32 %v1751, 1.442695
    %v1782 = vpow.pop %v1781
    %v1783 = vmul.f32 %v1752, 1.442695
    %v1784 = vpow.pop %v1783
    %v1785 = vadd.f32 %v1754, 1.0
    %v1786 = vadd.f32 %v1756, 1.0
    %v1787 = vadd.f32 %v1758, 1.0
    %v1788 = vadd.f32 %v1760, 1.0
    %v1789 = vadd.f32 %v1762, 1.0
    %v1790 = vadd.f32 %v1764, 1.0
    %v1791 = vadd.f32 %v1766, 1.0
    %v1792 = vadd.f32 %v1768, 1.0
    %v1793 = vadd.f32 %v1770, 1.0
    %v1794 = vadd.f32 %v1772, 1.0
    %v1795 = vadd.f32 %v1774, 1.0
    %v1796 = vadd.f32 %v1776, 1.0
    %v1797 = vadd.f32 %v1778, 1.0
    %v1798 = vadd.f32 %v1780, 1.0
    %v1799 = vadd.f32 %v1782, 1.0
    %v1800 = vadd.f32 %v1784, 1.0
    %v1801 = vrcp.pop %v1785
    %v1802 = vmul.f32 1.0, %v1801
    %v1803 = vrcp.pop %v1786
    %v1804 = vmul.f32 1.0, %v1803
    %v1805 = vrcp.pop %v1787
    %v1806 = vmul.f32 1.0, %v1805
    %v1807 = vrcp.pop %v1788
    %v1808 = vmul.f32 1.0, %v1807
    %v1809 = vrcp.pop %v1789
    %v1810 = vmul.f32 1.0, %v1809
    %v1811 = vrcp.pop %v1790
    %v1812 = vmul.f32 1.0, %v1811
    %v1813 = vrcp.pop %v1791
    %v1814 = vmul.f32 1.0, %v1813
    %v1815 = vrcp.pop %v1792
    %v1816 = vmul.f32 1.0, %v1815
    %v1817 = vrcp.pop %v1793
    %v1818 = vmul.f32 1.0, %v1817
    %v1819 = vrcp.pop %v1794
    %v1820 = vmul.f32 1.0, %v1819
    %v1821 = vrcp.pop %v1795
    %v1822 = vmul.f32 1.0, %v1821
    %v1823 = vrcp.pop %v1796
    %v1824 = vmul.f32 1.0, %v1823
    %v1825 = vrcp.pop %v1797
    %v1826 = vmul.f32 1.0, %v1825
    %v1827 = vrcp.pop %v1798
    %v1828 = vmul.f32 1.0, %v1827
    %v1829 = vrcp.pop %v1799
    %v1830 = vmul.f32 1.0, %v1829
    %v1831 = vrcp.pop %v1800
    %v1832 = vmul.f32 1.0, %v1831
    %v1833 = vsub.f32 1.0, %v1802
    %v1834 = vsub.f32 1.0, %v1804
    %v1835 = vsub.f32 1.0, %v1806
    %v1836 = vsub.f32 1.0, %v1808
    %v1837 = vsub.f32 1.0, %v1810
    %v1838 = vsub.f32 1.0, %v1812
    %v1839 = vsub.f32 1.0, %v1814
    %v1840 = vsub.f32 1.0, %v1816
    %v1841 = vsub.f32 1.0, %v1818
    %v1842 = vsub.f32 1.0, %v1820
    %v1843 = vsub.f32 1.0, %v1822
    %v1844 = vsub.f32 1.0, %v1824
    %v1845 = vsub.f32 1.0, %v1826
    %v1846 = vsub.f32 1.0, %v1828
    %v1847 = vsub.f32 1.0, %v1830
    %v1848 = vsub.f32 1.0, %v1832
    %1850 = vset.pattern.permute.xlu0 0
    %1851 = vperm.xlu0 %1850, %v1833
    %v1852 = vpop.permute.xlu0 %1851
    %1855 = vset.pattern.permute.xlu0 0
    %1856 = vperm.xlu0 %1855, %v1834
    %v1857 = vpop.permute.xlu0 %1856
    %1860 = vset.pattern.permute.xlu0 0
    %1861 = vperm.xlu0 %1860, %v1835
    %v1862 = vpop.permute.xlu0 %1861
    %1865 = vset.pattern.permute.xlu0 0
    %1866 = vperm.xlu0 %1865, %v1836
    %v1867 = vpop.permute.xlu0 %1866
    %1870 = vset.pattern.permute.xlu0 0
    %1871 = vperm.xlu0 %1870, %v1837
    %v1872 = vpop.permute.xlu0 %1871
    %1875 = vset.pattern.permute.xlu0 0
    %1876 = vperm.xlu0 %1875, %v1838
    %v1877 = vpop.permute.xlu0 %1876
    %1880 = vset.pattern.permute.xlu0 0
    %1881 = vperm.xlu0 %1880, %v1839
    %v1882 = vpop.permute.xlu0 %1881
    %1885 = vset.pattern.permute.xlu0 0
    %1886 = vperm.xlu0 %1885, %v1840
    %v1887 = vpop.permute.xlu0 %1886
    %1890 = vset.pattern.permute.xlu0 0
    %1891 = vperm.xlu0 %1890, %v1841
    %v1892 = vpop.permute.xlu0 %1891
    %1895 = vset.pattern.permute.xlu0 0
    %1896 = vperm.xlu0 %1895, %v1842
    %v1897 = vpop.permute.xlu0 %1896
    %1900 = vset.pattern.permute.xlu0 0
    %1901 = vperm.xlu0 %1900, %v1843
    %v1902 = vpop.permute.xlu0 %1901
    %1905 = vset.pattern.permute.xlu0 0
    %1906 = vperm.xlu0 %1905, %v1844
    %v1907 = vpop.permute.xlu0 %1906
    %1910 = vset.pattern.permute.xlu0 0
    %1911 = vperm.xlu0 %1910, %v1845
    %v1912 = vpop.permute.xlu0 %1911
    %1915 = vset.pattern.permute.xlu0 0
    %1916 = vperm.xlu0 %1915, %v1846
    %v1917 = vpop.permute.xlu0 %1916
    %1920 = vset.pattern.permute.xlu0 0
    %1921 = vperm.xlu0 %1920, %v1847
    %v1922 = vpop.permute.xlu0 %1921
    %1925 = vset.pattern.permute.xlu0 0
    %1926 = vperm.xlu0 %1925, %v1848
    %v1927 = vpop.permute.xlu0 %1926
    %v1929 = vmul.f32 %v1852, %v1627
    %v1930 = vmul.f32 %v1857, %v1628
    %v1931 = vmul.f32 %v1862, %v1629
    %v1932 = vmul.f32 %v1867, %v1630
    %v1933 = vmul.f32 %v1872, %v1631
    %v1934 = vmul.f32 %v1877, %v1632
    %v1935 = vmul.f32 %v1882, %v1633
    %v1936 = vmul.f32 %v1887, %v1634
    %v1937 = vmul.f32 %v1892, %v1635
    %v1938 = vmul.f32 %v1897, %v1636
    %v1939 = vmul.f32 %v1902, %v1637
    %v1940 = vmul.f32 %v1907, %v1638
    %v1941 = vmul.f32 %v1912, %v1639
    %v1942 = vmul.f32 %v1917, %v1640
    %v1943 = vmul.f32 %v1922, %v1641
    %v1944 = vmul.f32 %v1927, %v1642
    %1946 = vset.pattern.permute.xlu0 0
    %1947 = vperm.xlu0 %1946, %v1802
    %v1948 = vpop.permute.xlu0 %1947
    %1951 = vset.pattern.permute.xlu0 0
    %1952 = vperm.xlu0 %1951, %v1804
    %v1953 = vpop.permute.xlu0 %1952
    %1956 = vset.pattern.permute.xlu0 0
    %1957 = vperm.xlu0 %1956, %v1806
    %v1958 = vpop.permute.xlu0 %1957
    %1961 = vset.pattern.permute.xlu0 0
    %1962 = vperm.xlu0 %1961, %v1808
    %v1963 = vpop.permute.xlu0 %1962
    %1966 = vset.pattern.permute.xlu0 0
    %1967 = vperm.xlu0 %1966, %v1810
    %v1968 = vpop.permute.xlu0 %1967
    %1971 = vset.pattern.permute.xlu0 0
    %1972 = vperm.xlu0 %1971, %v1812
    %v1973 = vpop.permute.xlu0 %1972
    %1976 = vset.pattern.permute.xlu0 0
    %1977 = vperm.xlu0 %1976, %v1814
    %v1978 = vpop.permute.xlu0 %1977
    %1981 = vset.pattern.permute.xlu0 0
    %1982 = vperm.xlu0 %1981, %v1816
    %v1983 = vpop.permute.xlu0 %1982
    %1986 = vset.pattern.permute.xlu0 0
    %1987 = vperm.xlu0 %1986, %v1818
    %v1988 = vpop.permute.xlu0 %1987
    %1991 = vset.pattern.permute.xlu0 0
    %1992 = vperm.xlu0 %1991, %v1820
    %v1993 = vpop.permute.xlu0 %1992
    %1996 = vset.pattern.permute.xlu0 0
    %1997 = vperm.xlu0 %1996, %v1822
    %v1998 = vpop.permute.xlu0 %1997
    %2001 = vset.pattern.permute.xlu0 0
    %2002 = vperm.xlu0 %2001, %v1824
    %v2003 = vpop.permute.xlu0 %2002
    %2006 = vset.pattern.permute.xlu0 0
    %2007 = vperm.xlu0 %2006, %v1826
    %v2008 = vpop.permute.xlu0 %2007
    %2011 = vset.pattern.permute.xlu0 0
    %2012 = vperm.xlu0 %2011, %v1828
    %v2013 = vpop.permute.xlu0 %2012
    %2016 = vset.pattern.permute.xlu0 0
    %2017 = vperm.xlu0 %2016, %v1830
    %v2018 = vpop.permute.xlu0 %2017
    %2021 = vset.pattern.permute.xlu0 0
    %2022 = vperm.xlu0 %2021, %v1832
    %v2023 = vpop.permute.xlu0 %2022
    %v2025 = vmul.f32 %v1948, %v66
    %v2026 = vmul.f32 %v1953, %v67
    %v2027 = vmul.f32 %v1958, %v68
    %v2028 = vmul.f32 %v1963, %v69
    %v2029 = vmul.f32 %v1968, %v70
    %v2030 = vmul.f32 %v1973, %v71
    %v2031 = vmul.f32 %v1978, %v72
    %v2032 = vmul.f32 %v1983, %v73
    %v2033 = vmul.f32 %v1988, %v74
    %v2034 = vmul.f32 %v1993, %v75
    %v2035 = vmul.f32 %v1998, %v76
    %v2036 = vmul.f32 %v2003, %v77
    %v2037 = vmul.f32 %v2008, %v78
    %v2038 = vmul.f32 %v2013, %v79
    %v2039 = vmul.f32 %v2018, %v80
    %v2040 = vmul.f32 %v2023, %v81
    %v2041 = vadd.f32 %v1929, %v2025
    %v2042 = vadd.f32 %v1930, %v2026
    %v2043 = vadd.f32 %v1931, %v2027
    %v2044 = vadd.f32 %v1932, %v2028
    %v2045 = vadd.f32 %v1933, %v2029
    %v2046 = vadd.f32 %v1934, %v2030
    %v2047 = vadd.f32 %v1935, %v2031
    %v2048 = vadd.f32 %v1936, %v2032
    %v2049 = vadd.f32 %v1937, %v2033
    %v2050 = vadd.f32 %v1938, %v2034
    %v2051 = vadd.f32 %v1939, %v2035
    %v2052 = vadd.f32 %v1940, %v2036
    %v2053 = vadd.f32 %v1941, %v2037
    %v2054 = vadd.f32 %v1942, %v2038
    %v2055 = vadd.f32 %v1943, %v2039
    %v2056 = vadd.f32 %v1944, %v2040
    %v2057 = vmul.f32 %v179, %v2041
    %v2058 = vmul.f32 %v183, %v2042
    %v2059 = vmul.f32 %v190, %v2043
    %v2060 = vmul.f32 %v194, %v2044
    %v2061 = vmul.f32 %v201, %v2045
    %v2062 = vmul.f32 %v205, %v2046
    %v2063 = vmul.f32 %v212, %v2047
    %v2064 = vmul.f32 %v216, %v2048
    %v2065 = vmul.f32 %v223, %v2049
    %v2066 = vmul.f32 %v227, %v2050
    %v2067 = vmul.f32 %v234, %v2051
    %v2068 = vmul.f32 %v238, %v2052
    %v2069 = vmul.f32 %v245, %v2053
    %v2070 = vmul.f32 %v249, %v2054
    %v2071 = vmul.f32 %v256, %v2055
    %v2072 = vmul.f32 %v260, %v2056
    %v2073 = vpack.c.bf16 %v2058, %v2057
    %v2074 = vpack.c.bf16 %v2060, %v2059
    %v2075 = vpack.c.bf16 %v2062, %v2061
    %v2076 = vpack.c.bf16 %v2064, %v2063
    %v2077 = vpack.c.bf16 %v2066, %v2065
    %v2078 = vpack.c.bf16 %v2068, %v2067
    %v2079 = vpack.c.bf16 %v2070, %v2069
    %v2080 = vpack.c.bf16 %v2072, %v2071
    %v2082 = vsel %vm388, %v2073, 0
    %2084 = vmatprep.subr.bf16.mxu0 0
    %2085 = vmatpush1.bf16.xpose.msra.mxu0 %v393
    %2086 = vmatprep.subr.bf16.mxu0 0
    %2087 = vmatpush1.bf16.xpose.msra.mxu0 0
    %2088 = vmatprep.subr.bf16.mxu0 0
    %2089 = vmatpush1.bf16.xpose.msra.mxu0 0
    %2090 = vmatprep.subr.bf16.mxu0 0
    %2091 = vmatpush1.bf16.xpose.msra.mxu0 0
    %2092 = vmatprep.subr.bf16.mxu0 0
    %2093 = vmatpush1.bf16.xpose.msra.mxu0 0
    %2094 = vmatprep.subr.bf16.mxu0 0
    %2095 = vmatpush1.bf16.xpose.msra.mxu0 0
    %2096 = vmatprep.subr.bf16.mxu0 0
    %2097 = vmatpush1.bf16.xpose.msra.mxu0 0
    %2098 = vmatprep.subr.bf16.mxu0 0
    %2099 = vmatpush1.bf16.xpose.msra.mxu0 0
    %2100 = vmatprep.subr.bf16.mxu0 0
    %2101 = vmatpush1.bf16.xpose.msra.mxu0 0
    %2102 = vmatprep.subr.bf16.mxu0 0
    %2103 = vmatpush1.bf16.xpose.msra.mxu0 0
    %2104 = vmatprep.subr.bf16.mxu0 0
    %2105 = vmatpush1.bf16.xpose.msra.mxu0 0
    %2106 = vmatprep.subr.bf16.mxu0 0
    %2107 = vmatpush1.bf16.xpose.msra.mxu0 0
    %2108 = vmatprep.subr.bf16.mxu0 0
    %2109 = vmatpush1.bf16.xpose.msra.mxu0 0
    %2110 = vmatprep.subr.bf16.mxu0 0
    %2111 = vmatpush1.bf16.xpose.msra.mxu0 0
    %2112 = vmatprep.subr.bf16.mxu0 0
    %2113 = vmatpush1.bf16.xpose.msra.mxu0 0
    %2114 = vmatprep.subr.bf16.mxu0 0
    %2115 = vmatpush1.bf16.xpose.msra.mxu0 0
    %2116 = vmatprep.mubr.bf16.mxu0 0
    %2117 = vmatmul.mubr.bf16.gmra.mrb[0].mxu0 %v2082
    %v2118 = vpop.f32.mrb[0].mxu0
    %v2119 = vadd.f32 0.0, %v2118
    %v2120 = vpop.f32.mrb[0].mxu0
    %v2121 = vpop.f32.mrb[0].mxu0
    %v2122 = vadd.f32 0.0, %v2121
    %v2123 = vpop.f32.mrb[0].mxu0
    %2124 = vdwg.mxu0
    %v2126 = vsel %vm388, %v2074, 0
    %2128 = vmatprep.subr.bf16.mxu0 0
    %2129 = vmatpush1.bf16.xpose.msra.mxu0 %v445
    %2130 = vmatprep.subr.bf16.mxu0 0
    %2131 = vmatpush1.bf16.xpose.msra.mxu0 0
    %2132 = vmatprep.subr.bf16.mxu0 0
    %2133 = vmatpush1.bf16.xpose.msra.mxu0 0
    %2134 = vmatprep.subr.bf16.mxu0 0
    %2135 = vmatpush1.bf16.xpose.msra.mxu0 0
    %2136 = vmatprep.subr.bf16.mxu0 0
    %2137 = vmatpush1.bf16.xpose.msra.mxu0 0
    %2138 = vmatprep.subr.bf16.mxu0 0
    %2139 = vmatpush1.bf16.xpose.msra.mxu0 0
    %2140 = vmatprep.subr.bf16.mxu0 0
    %2141 = vmatpush1.bf16.xpose.msra.mxu0 0
    %2142 = vmatprep.subr.bf16.mxu0 0
    %2143 = vmatpush1.bf16.xpose.msra.mxu0 0
    %2144 = vmatprep.subr.bf16.mxu0 0
    %2145 = vmatpush1.bf16.xpose.msra.mxu0 0
    %2146 = vmatprep.subr.bf16.mxu0 0
    %2147 = vmatpush1.bf16.xpose.msra.mxu0 0
    %2148 = vmatprep.subr.bf16.mxu0 0
    %2149 = vmatpush1.bf16.xpose.msra.mxu0 0
    %2150 = vmatprep.subr.bf16.mxu0 0
    %2151 = vmatpush1.bf16.xpose.msra.mxu0 0
    %2152 = vmatprep.subr.bf16.mxu0 0
    %2153 = vmatpush1.bf16.xpose.msra.mxu0 0
    %2154 = vmatprep.subr.bf16.mxu0 0
    %2155 = vmatpush1.bf16.xpose.msra.mxu0 0
    %2156 = vmatprep.subr.bf16.mxu0 0
    %2157 = vmatpush1.bf16.xpose.msra.mxu0 0
    %2158 = vmatprep.subr.bf16.mxu0 0
    %2159 = vmatpush1.bf16.xpose.msra.mxu0 0
    %2160 = vmatprep.mubr.bf16.mxu0 0
    %2161 = vmatmul.mubr.bf16.gmra.mrb[0].mxu0 %v2126
    %v2162 = vpop.f32.mrb[0].mxu0
    %v2163 = vadd.f32 0.0, %v2162
    %v2164 = vpop.f32.mrb[0].mxu0
    %v2165 = vpop.f32.mrb[0].mxu0
    %v2166 = vadd.f32 0.0, %v2165
    %v2167 = vpop.f32.mrb[0].mxu0
    %2168 = vdwg.mxu0
    %v2170 = vsel %vm388, %v2075, 0
    %2172 = vmatprep.subr.bf16.mxu0 0
    %2173 = vmatpush1.bf16.xpose.msra.mxu0 %v497
    %2174 = vmatprep.subr.bf16.mxu0 0
    %2175 = vmatpush1.bf16.xpose.msra.mxu0 0
    %2176 = vmatprep.subr.bf16.mxu0 0
    %2177 = vmatpush1.bf16.xpose.msra.mxu0 0
    %2178 = vmatprep.subr.bf16.mxu0 0
    %2179 = vmatpush1.bf16.xpose.msra.mxu0 0
    %2180 = vmatprep.subr.bf16.mxu0 0
    %2181 = vmatpush1.bf16.xpose.msra.mxu0 0
    %2182 = vmatprep.subr.bf16.mxu0 0
    %2183 = vmatpush1.bf16.xpose.msra.mxu0 0
    %2184 = vmatprep.subr.bf16.mxu0 0
    %2185 = vmatpush1.bf16.xpose.msra.mxu0 0
    %2186 = vmatprep.subr.bf16.mxu0 0
    %2187 = vmatpush1.bf16.xpose.msra.mxu0 0
    %2188 = vmatprep.subr.bf16.mxu0 0
    %2189 = vmatpush1.bf16.xpose.msra.mxu0 0
    %2190 = vmatprep.subr.bf16.mxu0 0
    %2191 = vmatpush1.bf16.xpose.msra.mxu0 0
    %2192 = vmatprep.subr.bf16.mxu0 0
    %2193 = vmatpush1.bf16.xpose.msra.mxu0 0
    %2194 = vmatprep.subr.bf16.mxu0 0
    %2195 = vmatpush1.bf16.xpose.msra.mxu0 0
    %2196 = vmatprep.subr.bf16.mxu0 0
    %2197 = vmatpush1.bf16.xpose.msra.mxu0 0
    %2198 = vmatprep.subr.bf16.mxu0 0
    %2199 = vmatpush1.bf16.xpose.msra.mxu0 0
    %2200 = vmatprep.subr.bf16.mxu0 0
    %2201 = vmatpush1.bf16.xpose.msra.mxu0 0
    %2202 = vmatprep.subr.bf16.mxu0 0
    %2203 = vmatpush1.bf16.xpose.msra.mxu0 0
    %2204 = vmatprep.mubr.bf16.mxu0 0
    %2205 = vmatmul.mubr.bf16.gmra.mrb[0].mxu0 %v2170
    %v2206 = vpop.f32.mrb[0].mxu0
    %v2207 = vadd.f32 0.0, %v2206
    %v2208 = vpop.f32.mrb[0].mxu0
    %v2209 = vpop.f32.mrb[0].mxu0
    %v2210 = vadd.f32 0.0, %v2209
    %v2211 = vpop.f32.mrb[0].mxu0
    %2212 = vdwg.mxu0
    %v2214 = vsel %vm388, %v2076, 0
    %2216 = vmatprep.subr.bf16.mxu0 0
    %2217 = vmatpush1.bf16.xpose.msra.mxu0 %v549
    %2218 = vmatprep.subr.bf16.mxu0 0
    %2219 = vmatpush1.bf16.xpose.msra.mxu0 0
    %2220 = vmatprep.subr.bf16.mxu0 0
    %2221 = vmatpush1.bf16.xpose.msra.mxu0 0
    %2222 = vmatprep.subr.bf16.mxu0 0
    %2223 = vmatpush1.bf16.xpose.msra.mxu0 0
    %2224 = vmatprep.subr.bf16.mxu0 0
    %2225 = vmatpush1.bf16.xpose.msra.mxu0 0
    %2226 = vmatprep.subr.bf16.mxu0 0
    %2227 = vmatpush1.bf16.xpose.msra.mxu0 0
    %2228 = vmatprep.subr.bf16.mxu0 0
    %2229 = vmatpush1.bf16.xpose.msra.mxu0 0
    %2230 = vmatprep.subr.bf16.mxu0 0
    %2231 = vmatpush1.bf16.xpose.msra.mxu0 0
    %2232 = vmatprep.subr.bf16.mxu0 0
    %2233 = vmatpush1.bf16.xpose.msra.mxu0 0
    %2234 = vmatprep.subr.bf16.mxu0 0
    %2235 = vmatpush1.bf16.xpose.msra.mxu0 0
    %2236 = vmatprep.subr.bf16.mxu0 0
    %2237 = vmatpush1.bf16.xpose.msra.mxu0 0
    %2238 = vmatprep.subr.bf16.mxu0 0
    %2239 = vmatpush1.bf16.xpose.msra.mxu0 0
    %2240 = vmatprep.subr.bf16.mxu0 0
    %2241 = vmatpush1.bf16.xpose.msra.mxu0 0
    %2242 = vmatprep.subr.bf16.mxu0 0
    %2243 = vmatpush1.bf16.xpose.msra.mxu0 0
    %2244 = vmatprep.subr.bf16.mxu0 0
    %2245 = vmatpush1.bf16.xpose.msra.mxu0 0
    %2246 = vmatprep.subr.bf16.mxu0 0
    %2247 = vmatpush1.bf16.xpose.msra.mxu0 0
    %2248 = vmatprep.mubr.bf16.mxu0 0
    %2249 = vmatmul.mubr.bf16.gmra.mrb[0].mxu0 %v2214
    %v2250 = vpop.f32.mrb[0].mxu0
    %v2251 = vadd.f32 0.0, %v2250
    %v2252 = vpop.f32.mrb[0].mxu0
    %v2253 = vpop.f32.mrb[0].mxu0
    %v2254 = vadd.f32 0.0, %v2253
    %v2255 = vpop.f32.mrb[0].mxu0
    %2256 = vdwg.mxu0
    %v2258 = vsel %vm388, %v2077, 0
    %2260 = vmatprep.subr.bf16.mxu0 0
    %2261 = vmatpush1.bf16.xpose.msra.mxu0 %v601
    %2262 = vmatprep.subr.bf16.mxu0 0
    %2263 = vmatpush1.bf16.xpose.msra.mxu0 0
    %2264 = vmatprep.subr.bf16.mxu0 0
    %2265 = vmatpush1.bf16.xpose.msra.mxu0 0
    %2266 = vmatprep.subr.bf16.mxu0 0
    %2267 = vmatpush1.bf16.xpose.msra.mxu0 0
    %2268 = vmatprep.subr.bf16.mxu0 0
    %2269 = vmatpush1.bf16.xpose.msra.mxu0 0
    %2270 = vmatprep.subr.bf16.mxu0 0
    %2271 = vmatpush1.bf16.xpose.msra.mxu0 0
    %2272 = vmatprep.subr.bf16.mxu0 0
    %2273 = vmatpush1.bf16.xpose.msra.mxu0 0
    %2274 = vmatprep.subr.bf16.mxu0 0
    %2275 = vmatpush1.bf16.xpose.msra.mxu0 0
    %2276 = vmatprep.subr.bf16.mxu0 0
    %2277 = vmatpush1.bf16.xpose.msra.mxu0 0
    %2278 = vmatprep.subr.bf16.mxu0 0
    %2279 = vmatpush1.bf16.xpose.msra.mxu0 0
    %2280 = vmatprep.subr.bf16.mxu0 0
    %2281 = vmatpush1.bf16.xpose.msra.mxu0 0
    %2282 = vmatprep.subr.bf16.mxu0 0
    %2283 = vmatpush1.bf16.xpose.msra.mxu0 0
    %2284 = vmatprep.subr.bf16.mxu0 0
    %2285 = vmatpush1.bf16.xpose.msra.mxu0 0
    %2286 = vmatprep.subr.bf16.mxu0 0
    %2287 = vmatpush1.bf16.xpose.msra.mxu0 0
    %2288 = vmatprep.subr.bf16.mxu0 0
    %2289 = vmatpush1.bf16.xpose.msra.mxu0 0
    %2290 = vmatprep.subr.bf16.mxu0 0
    %2291 = vmatpush1.bf16.xpose.msra.mxu0 0
    %2292 = vmatprep.mubr.bf16.mxu0 0
    %2293 = vmatmul.mubr.bf16.gmra.mrb[0].mxu0 %v2258
    %v2294 = vpop.f32.mrb[0].mxu0
    %v2295 = vadd.f32 0.0, %v2294
    %v2296 = vpop.f32.mrb[0].mxu0
    %v2297 = vpop.f32.mrb[0].mxu0
    %v2298 = vadd.f32 0.0, %v2297
    %v2299 = vpop.f32.mrb[0].mxu0
    %2300 = vdwg.mxu0
    %v2302 = vsel %vm388, %v2078, 0
    %2304 = vmatprep.subr.bf16.mxu0 0
    %2305 = vmatpush1.bf16.xpose.msra.mxu0 %v653
    %2306 = vmatprep.subr.bf16.mxu0 0
    %2307 = vmatpush1.bf16.xpose.msra.mxu0 0
    %2308 = vmatprep.subr.bf16.mxu0 0
    %2309 = vmatpush1.bf16.xpose.msra.mxu0 0
    %2310 = vmatprep.subr.bf16.mxu0 0
    %2311 = vmatpush1.bf16.xpose.msra.mxu0 0
    %2312 = vmatprep.subr.bf16.mxu0 0
    %2313 = vmatpush1.bf16.xpose.msra.mxu0 0
    %2314 = vmatprep.subr.bf16.mxu0 0
    %2315 = vmatpush1.bf16.xpose.msra.mxu0 0
    %2316 = vmatprep.subr.bf16.mxu0 0
    %2317 = vmatpush1.bf16.xpose.msra.mxu0 0
    %2318 = vmatprep.subr.bf16.mxu0 0
    %2319 = vmatpush1.bf16.xpose.msra.mxu0 0
    %2320 = vmatprep.subr.bf16.mxu0 0
    %2321 = vmatpush1.bf16.xpose.msra.mxu0 0
    %2322 = vmatprep.subr.bf16.mxu0 0
    %2323 = vmatpush1.bf16.xpose.msra.mxu0 0
    %2324 = vmatprep.subr.bf16.mxu0 0
    %2325 = vmatpush1.bf16.xpose.msra.mxu0 0
    %2326 = vmatprep.subr.bf16.mxu0 0
    %2327 = vmatpush1.bf16.xpose.msra.mxu0 0
    %2328 = vmatprep.subr.bf16.mxu0 0
    %2329 = vmatpush1.bf16.xpose.msra.mxu0 0
    %2330 = vmatprep.subr.bf16.mxu0 0
    %2331 = vmatpush1.bf16.xpose.msra.mxu0 0
    %2332 = vmatprep.subr.bf16.mxu0 0
    %2333 = vmatpush1.bf16.xpose.msra.mxu0 0
    %2334 = vmatprep.subr.bf16.mxu0 0
    %2335 = vmatpush1.bf16.xpose.msra.mxu0 0
    %2336 = vmatprep.mubr.bf16.mxu0 0
    %2337 = vmatmul.mubr.bf16.gmra.mrb[0].mxu0 %v2302
    %v2338 = vpop.f32.mrb[0].mxu0
    %v2339 = vadd.f32 0.0, %v2338
    %v2340 = vpop.f32.mrb[0].mxu0
    %v2341 = vpop.f32.mrb[0].mxu0
    %v2342 = vadd.f32 0.0, %v2341
    %v2343 = vpop.f32.mrb[0].mxu0
    %2344 = vdwg.mxu0
    %v2346 = vsel %vm388, %v2079, 0
    %2348 = vmatprep.subr.bf16.mxu0 0
    %2349 = vmatpush1.bf16.xpose.msra.mxu0 %v705
    %2350 = vmatprep.subr.bf16.mxu0 0
    %2351 = vmatpush1.bf16.xpose.msra.mxu0 0
    %2352 = vmatprep.subr.bf16.mxu0 0
    %2353 = vmatpush1.bf16.xpose.msra.mxu0 0
    %2354 = vmatprep.subr.bf16.mxu0 0
    %2355 = vmatpush1.bf16.xpose.msra.mxu0 0
    %2356 = vmatprep.subr.bf16.mxu0 0
    %2357 = vmatpush1.bf16.xpose.msra.mxu0 0
    %2358 = vmatprep.subr.bf16.mxu0 0
    %2359 = vmatpush1.bf16.xpose.msra.mxu0 0
    %2360 = vmatprep.subr.bf16.mxu0 0
    %2361 = vmatpush1.bf16.xpose.msra.mxu0 0
    %2362 = vmatprep.subr.bf16.mxu0 0
    %2363 = vmatpush1.bf16.xpose.msra.mxu0 0
    %2364 = vmatprep.subr.bf16.mxu0 0
    %2365 = vmatpush1.bf16.xpose.msra.mxu0 0
    %2366 = vmatprep.subr.bf16.mxu0 0
    %2367 = vmatpush1.bf16.xpose.msra.mxu0 0
    %2368 = vmatprep.subr.bf16.mxu0 0
    %2369 = vmatpush1.bf16.xpose.msra.mxu0 0
    %2370 = vmatprep.subr.bf16.mxu0 0
    %2371 = vmatpush1.bf16.xpose.msra.mxu0 0
    %2372 = vmatprep.subr.bf16.mxu0 0
    %2373 = vmatpush1.bf16.xpose.msra.mxu0 0
    %2374 = vmatprep.subr.bf16.mxu0 0
    %2375 = vmatpush1.bf16.xpose.msra.mxu0 0
    %2376 = vmatprep.subr.bf16.mxu0 0
    %2377 = vmatpush1.bf16.xpose.msra.mxu0 0
    %2378 = vmatprep.subr.bf16.mxu0 0
    %2379 = vmatpush1.bf16.xpose.msra.mxu0 0
    %2380 = vmatprep.mubr.bf16.mxu0 0
    %2381 = vmatmul.mubr.bf16.gmra.mrb[0].mxu0 %v2346
    %v2382 = vpop.f32.mrb[0].mxu0
    %v2383 = vadd.f32 0.0, %v2382
    %v2384 = vpop.f32.mrb[0].mxu0
    %v2385 = vpop.f32.mrb[0].mxu0
    %v2386 = vadd.f32 0.0, %v2385
    %v2387 = vpop.f32.mrb[0].mxu0
    %2388 = vdwg.mxu0
    %v2390 = vsel %vm388, %v2080, 0
    %2392 = vmatprep.subr.bf16.mxu0 0
    %2393 = vmatpush1.bf16.xpose.msra.mxu0 %v757
    %2394 = vmatprep.subr.bf16.mxu0 0
    %2395 = vmatpush1.bf16.xpose.msra.mxu0 0
    %2396 = vmatprep.subr.bf16.mxu0 0
    %2397 = vmatpush1.bf16.xpose.msra.mxu0 0
    %2398 = vmatprep.subr.bf16.mxu0 0
    %2399 = vmatpush1.bf16.xpose.msra.mxu0 0
    %2400 = vmatprep.subr.bf16.mxu0 0
    %2401 = vmatpush1.bf16.xpose.msra.mxu0 0
    %2402 = vmatprep.subr.bf16.mxu0 0
    %2403 = vmatpush1.bf16.xpose.msra.mxu0 0
    %2404 = vmatprep.subr.bf16.mxu0 0
    %2405 = vmatpush1.bf16.xpose.msra.mxu0 0
    %2406 = vmatprep.subr.bf16.mxu0 0
    %2407 = vmatpush1.bf16.xpose.msra.mxu0 0
    %2408 = vmatprep.subr.bf16.mxu0 0
    %2409 = vmatpush1.bf16.xpose.msra.mxu0 0
    %2410 = vmatprep.subr.bf16.mxu0 0
    %2411 = vmatpush1.bf16.xpose.msra.mxu0 0
    %2412 = vmatprep.subr.bf16.mxu0 0
    %2413 = vmatpush1.bf16.xpose.msra.mxu0 0
    %2414 = vmatprep.subr.bf16.mxu0 0
    %2415 = vmatpush1.bf16.xpose.msra.mxu0 0
    %2416 = vmatprep.subr.bf16.mxu0 0
    %2417 = vmatpush1.bf16.xpose.msra.mxu0 0
    %2418 = vmatprep.subr.bf16.mxu0 0
    %2419 = vmatpush1.bf16.xpose.msra.mxu0 0
    %2420 = vmatprep.subr.bf16.mxu0 0
    %2421 = vmatpush1.bf16.xpose.msra.mxu0 0
    %2422 = vmatprep.subr.bf16.mxu0 0
    %2423 = vmatpush1.bf16.xpose.msra.mxu0 0
    %2424 = vmatprep.mubr.bf16.mxu0 0
    %2425 = vmatmul.mubr.bf16.gmra.mrb[0].mxu0 %v2390
    %v2426 = vpop.f32.mrb[0].mxu0
    %v2427 = vadd.f32 0.0, %v2426
    %v2428 = vpop.f32.mrb[0].mxu0
    %v2429 = vpop.f32.mrb[0].mxu0
    %v2430 = vadd.f32 0.0, %v2429
    %v2431 = vpop.f32.mrb[0].mxu0
    %2432 = vdwg.mxu0
    %v2433 = vsel %vm367, -1e+09, %v2119
    %v2434 = vsel %vm368, -1e+09, %v2122
    %v2435 = vsel %vm369, -1e+09, %v2163
    %v2436 = vsel %vm370, -1e+09, %v2166
    %v2437 = vsel %vm371, -1e+09, %v2207
    %v2438 = vsel %vm372, -1e+09, %v2210
    %v2439 = vsel %vm373, -1e+09, %v2251
    %v2440 = vsel %vm374, -1e+09, %v2254
    %v2441 = vsel %vm375, -1e+09, %v2295
    %v2442 = vsel %vm376, -1e+09, %v2298
    %v2443 = vsel %vm377, -1e+09, %v2339
    %v2444 = vsel %vm378, -1e+09, %v2342
    %v2445 = vsel %vm379, -1e+09, %v2383
    %v2446 = vsel %vm380, -1e+09, %v2386
    %v2447 = vsel %vm381, -1e+09, %v2427
    %v2448 = vsel %vm382, -1e+09, %v2430
    %v2449 = vsel %vm816, %v2433, -inf
    %2450 = vmax.xlane.f32.xlu0 %v2449
    %v2451 = vpop.xlane.xlu0 %2450
    %v2452 = vsel %vm816, %v2434, -inf
    %2453 = vmax.xlane.f32.xlu0 %v2452
    %v2454 = vpop.xlane.xlu0 %2453
    %v2455 = vsel %vm816, %v2435, -inf
    %2456 = vmax.xlane.f32.xlu0 %v2455
    %v2457 = vpop.xlane.xlu0 %2456
    %v2458 = vsel %vm816, %v2436, -inf
    %2459 = vmax.xlane.f32.xlu0 %v2458
    %v2460 = vpop.xlane.xlu0 %2459
    %v2461 = vsel %vm816, %v2437, -inf
    %2462 = vmax.xlane.f32.xlu0 %v2461
    %v2463 = vpop.xlane.xlu0 %2462
    %v2464 = vsel %vm816, %v2438, -inf
    %2465 = vmax.xlane.f32.xlu0 %v2464
    %v2466 = vpop.xlane.xlu0 %2465
    %v2467 = vsel %vm816, %v2439, -inf
    %2468 = vmax.xlane.f32.xlu0 %v2467
    %v2469 = vpop.xlane.xlu0 %2468
    %v2470 = vsel %vm816, %v2440, -inf
    %2471 = vmax.xlane.f32.xlu0 %v2470
    %v2472 = vpop.xlane.xlu0 %2471
    %v2473 = vsel %vm816, %v2441, -inf
    %2474 = vmax.xlane.f32.xlu0 %v2473
    %v2475 = vpop.xlane.xlu0 %2474
    %v2476 = vsel %vm816, %v2442, -inf
    %2477 = vmax.xlane.f32.xlu0 %v2476
    %v2478 = vpop.xlane.xlu0 %2477
    %v2479 = vsel %vm816, %v2443, -inf
    %2480 = vmax.xlane.f32.xlu0 %v2479
    %v2481 = vpop.xlane.xlu0 %2480
    %v2482 = vsel %vm816, %v2444, -inf
    %2483 = vmax.xlane.f32.xlu0 %v2482
    %v2484 = vpop.xlane.xlu0 %2483
    %v2485 = vsel %vm816, %v2445, -inf
    %2486 = vmax.xlane.f32.xlu0 %v2485
    %v2487 = vpop.xlane.xlu0 %2486
    %v2488 = vsel %vm816, %v2446, -inf
    %2489 = vmax.xlane.f32.xlu0 %v2488
    %v2490 = vpop.xlane.xlu0 %2489
    %v2491 = vsel %vm816, %v2447, -inf
    %2492 = vmax.xlane.f32.xlu0 %v2491
    %v2493 = vpop.xlane.xlu0 %2492
    %v2494 = vsel %vm816, %v2448, -inf
    %2495 = vmax.xlane.f32.xlu0 %v2494
    %v2496 = vpop.xlane.xlu0 %2495
    %v2497 = vsub.f32 %v2433, %v2451
    %v2498 = vsub.f32 %v2434, %v2454
    %v2499 = vsub.f32 %v2435, %v2457
    %v2500 = vsub.f32 %v2436, %v2460
    %v2501 = vsub.f32 %v2437, %v2463
    %v2502 = vsub.f32 %v2438, %v2466
    %v2503 = vsub.f32 %v2439, %v2469
    %v2504 = vsub.f32 %v2440, %v2472
    %v2505 = vsub.f32 %v2441, %v2475
    %v2506 = vsub.f32 %v2442, %v2478
    %v2507 = vsub.f32 %v2443, %v2481
    %v2508 = vsub.f32 %v2444, %v2484
    %v2509 = vsub.f32 %v2445, %v2487
    %v2510 = vsub.f32 %v2446, %v2490
    %v2511 = vsub.f32 %v2447, %v2493
    %v2512 = vsub.f32 %v2448, %v2496
    %v2513 = vmul.f32 %v2497, 1.442695
    %v2514 = vpow.pop %v2513
    %v2515 = vmul.f32 %v2498, 1.442695
    %v2516 = vpow.pop %v2515
    %v2517 = vmul.f32 %v2499, 1.442695
    %v2518 = vpow.pop %v2517
    %v2519 = vmul.f32 %v2500, 1.442695
    %v2520 = vpow.pop %v2519
    %v2521 = vmul.f32 %v2501, 1.442695
    %v2522 = vpow.pop %v2521
    %v2523 = vmul.f32 %v2502, 1.442695
    %v2524 = vpow.pop %v2523
    %v2525 = vmul.f32 %v2503, 1.442695
    %v2526 = vpow.pop %v2525
    %v2527 = vmul.f32 %v2504, 1.442695
    %v2528 = vpow.pop %v2527
    %v2529 = vmul.f32 %v2505, 1.442695
    %v2530 = vpow.pop %v2529
    %v2531 = vmul.f32 %v2506, 1.442695
    %v2532 = vpow.pop %v2531
    %v2533 = vmul.f32 %v2507, 1.442695
    %v2534 = vpow.pop %v2533
    %v2535 = vmul.f32 %v2508, 1.442695
    %v2536 = vpow.pop %v2535
    %v2537 = vmul.f32 %v2509, 1.442695
    %v2538 = vpow.pop %v2537
    %v2539 = vmul.f32 %v2510, 1.442695
    %v2540 = vpow.pop %v2539
    %v2541 = vmul.f32 %v2511, 1.442695
    %v2542 = vpow.pop %v2541
    %v2543 = vmul.f32 %v2512, 1.442695
    %v2544 = vpow.pop %v2543
    %v2545 = vsel %vm816, %v2514, 0.0
    %2546 = vadd.xlane.f32.xlu0 %v2545
    %v2547 = vpop.xlane.xlu0 %2546
    %v2548 = vsel %vm816, %v2516, 0.0
    %2549 = vadd.xlane.f32.xlu0 %v2548
    %v2550 = vpop.xlane.xlu0 %2549
    %v2551 = vsel %vm816, %v2518, 0.0
    %2552 = vadd.xlane.f32.xlu0 %v2551
    %v2553 = vpop.xlane.xlu0 %2552
    %v2554 = vsel %vm816, %v2520, 0.0
    %2555 = vadd.xlane.f32.xlu0 %v2554
    %v2556 = vpop.xlane.xlu0 %2555
    %v2557 = vsel %vm816, %v2522, 0.0
    %2558 = vadd.xlane.f32.xlu0 %v2557
    %v2559 = vpop.xlane.xlu0 %2558
    %v2560 = vsel %vm816, %v2524, 0.0
    %2561 = vadd.xlane.f32.xlu0 %v2560
    %v2562 = vpop.xlane.xlu0 %2561
    %v2563 = vsel %vm816, %v2526, 0.0
    %2564 = vadd.xlane.f32.xlu0 %v2563
    %v2565 = vpop.xlane.xlu0 %2564
    %v2566 = vsel %vm816, %v2528, 0.0
    %2567 = vadd.xlane.f32.xlu0 %v2566
    %v2568 = vpop.xlane.xlu0 %2567
    %v2569 = vsel %vm816, %v2530, 0.0
    %2570 = vadd.xlane.f32.xlu0 %v2569
    %v2571 = vpop.xlane.xlu0 %2570
    %v2572 = vsel %vm816, %v2532, 0.0
    %2573 = vadd.xlane.f32.xlu0 %v2572
    %v2574 = vpop.xlane.xlu0 %2573
    %v2575 = vsel %vm816, %v2534, 0.0
    %2576 = vadd.xlane.f32.xlu0 %v2575
    %v2577 = vpop.xlane.xlu0 %2576
    %v2578 = vsel %vm816, %v2536, 0.0
    %2579 = vadd.xlane.f32.xlu0 %v2578
    %v2580 = vpop.xlane.xlu0 %2579
    %v2581 = vsel %vm816, %v2538, 0.0
    %2582 = vadd.xlane.f32.xlu0 %v2581
    %v2583 = vpop.xlane.xlu0 %2582
    %v2584 = vsel %vm816, %v2540, 0.0
    %2585 = vadd.xlane.f32.xlu0 %v2584
    %v2586 = vpop.xlane.xlu0 %2585
    %v2587 = vsel %vm816, %v2542, 0.0
    %2588 = vadd.xlane.f32.xlu0 %v2587
    %v2589 = vpop.xlane.xlu0 %2588
    %v2590 = vsel %vm816, %v2544, 0.0
    %2591 = vadd.xlane.f32.xlu0 %v2590
    %v2592 = vpop.xlane.xlu0 %2591
    %v2593 = vrcp.pop %v2547
    %v2594 = vrcp.pop %v2550
    %v2595 = vrcp.pop %v2553
    %v2596 = vrcp.pop %v2556
    %v2597 = vrcp.pop %v2559
    %v2598 = vrcp.pop %v2562
    %v2599 = vrcp.pop %v2565
    %v2600 = vrcp.pop %v2568
    %v2601 = vrcp.pop %v2571
    %v2602 = vrcp.pop %v2574
    %v2603 = vrcp.pop %v2577
    %v2604 = vrcp.pop %v2580
    %v2605 = vrcp.pop %v2583
    %v2606 = vrcp.pop %v2586
    %v2607 = vrcp.pop %v2589
    %v2608 = vrcp.pop %v2592
    %v2609 = vmul.f32 %v2514, %v2593
    %v2610 = vmul.f32 %v2516, %v2594
    %v2611 = vmul.f32 %v2518, %v2595
    %v2612 = vmul.f32 %v2520, %v2596
    %v2613 = vmul.f32 %v2522, %v2597
    %v2614 = vmul.f32 %v2524, %v2598
    %v2615 = vmul.f32 %v2526, %v2599
    %v2616 = vmul.f32 %v2528, %v2600
    %v2617 = vmul.f32 %v2530, %v2601
    %v2618 = vmul.f32 %v2532, %v2602
    %v2619 = vmul.f32 %v2534, %v2603
    %v2620 = vmul.f32 %v2536, %v2604
    %v2621 = vmul.f32 %v2538, %v2605
    %v2622 = vmul.f32 %v2540, %v2606
    %v2623 = vmul.f32 %v2542, %v2607
    %v2624 = vmul.f32 %v2544, %v2608
    %v2625 = vpack.c.bf16 %v2610, %v2609
    %v2626 = vpack.c.bf16 %v2612, %v2611
    %v2627 = vpack.c.bf16 %v2614, %v2613
    %v2628 = vpack.c.bf16 %v2616, %v2615
    %v2629 = vpack.c.bf16 %v2618, %v2617
    %v2630 = vpack.c.bf16 %v2620, %v2619
    %v2631 = vpack.c.bf16 %v2622, %v2621
    %v2632 = vpack.c.bf16 %v2624, %v2623
    %v2634 = vsel %vm816, %v2625, 0
    %2636 = vmatprep.subr.bf16.mxu0 0
    %2637 = vmatpush1.bf16.msra.mxu0 %v1005
    %2638 = vmatprep.subr.bf16.mxu0 0
    %2639 = vmatpush1.bf16.msra.mxu0 0
    %2640 = vmatprep.subr.bf16.mxu0 0
    %2641 = vmatpush1.bf16.msra.mxu0 0
    %2642 = vmatprep.subr.bf16.mxu0 0
    %2643 = vmatpush1.bf16.msra.mxu0 0
    %2644 = vmatprep.subr.bf16.mxu0 0
    %2645 = vmatpush1.bf16.msra.mxu0 0
    %2646 = vmatprep.subr.bf16.mxu0 0
    %2647 = vmatpush1.bf16.msra.mxu0 0
    %2648 = vmatprep.subr.bf16.mxu0 0
    %2649 = vmatpush1.bf16.msra.mxu0 0
    %2650 = vmatprep.subr.bf16.mxu0 0
    %2651 = vmatpush1.bf16.msra.mxu0 0
    %2652 = vmatprep.subr.bf16.mxu0 0
    %2653 = vmatpush1.bf16.msra.mxu0 0
    %2654 = vmatprep.subr.bf16.mxu0 0
    %2655 = vmatpush1.bf16.msra.mxu0 0
    %2656 = vmatprep.subr.bf16.mxu0 0
    %2657 = vmatpush1.bf16.msra.mxu0 0
    %2658 = vmatprep.subr.bf16.mxu0 0
    %2659 = vmatpush1.bf16.msra.mxu0 0
    %2660 = vmatprep.subr.bf16.mxu0 0
    %2661 = vmatpush1.bf16.msra.mxu0 0
    %2662 = vmatprep.subr.bf16.mxu0 0
    %2663 = vmatpush1.bf16.msra.mxu0 0
    %2664 = vmatprep.subr.bf16.mxu0 0
    %2665 = vmatpush1.bf16.msra.mxu0 0
    %2666 = vmatprep.subr.bf16.mxu0 0
    %2667 = vmatpush1.bf16.msra.mxu0 0
    %2668 = vmatprep.mubr.bf16.mxu0 0
    %2669 = vmatmul.mubr.bf16.gmra.mrb[0].mxu0 %v2634
    %v2670 = vpop.f32.mrb[0].mxu0
    %v2671 = vadd.f32 0.0, %v2670
    %v2672 = vpop.f32.mrb[0].mxu0
    %v2673 = vpop.f32.mrb[0].mxu0
    %v2674 = vadd.f32 0.0, %v2673
    %v2675 = vpop.f32.mrb[0].mxu0
    %2676 = vdwg.mxu0
    %v2678 = vsel %vm816, %v2626, 0
    %2680 = vmatprep.subr.bf16.mxu0 0
    %2681 = vmatpush1.bf16.msra.mxu0 %v1051
    %2682 = vmatprep.subr.bf16.mxu0 0
    %2683 = vmatpush1.bf16.msra.mxu0 0
    %2684 = vmatprep.subr.bf16.mxu0 0
    %2685 = vmatpush1.bf16.msra.mxu0 0
    %2686 = vmatprep.subr.bf16.mxu0 0
    %2687 = vmatpush1.bf16.msra.mxu0 0
    %2688 = vmatprep.subr.bf16.mxu0 0
    %2689 = vmatpush1.bf16.msra.mxu0 0
    %2690 = vmatprep.subr.bf16.mxu0 0
    %2691 = vmatpush1.bf16.msra.mxu0 0
    %2692 = vmatprep.subr.bf16.mxu0 0
    %2693 = vmatpush1.bf16.msra.mxu0 0
    %2694 = vmatprep.subr.bf16.mxu0 0
    %2695 = vmatpush1.bf16.msra.mxu0 0
    %2696 = vmatprep.subr.bf16.mxu0 0
    %2697 = vmatpush1.bf16.msra.mxu0 0
    %2698 = vmatprep.subr.bf16.mxu0 0
    %2699 = vmatpush1.bf16.msra.mxu0 0
    %2700 = vmatprep.subr.bf16.mxu0 0
    %2701 = vmatpush1.bf16.msra.mxu0 0
    %2702 = vmatprep.subr.bf16.mxu0 0
    %2703 = vmatpush1.bf16.msra.mxu0 0
    %2704 = vmatprep.subr.bf16.mxu0 0
    %2705 = vmatpush1.bf16.msra.mxu0 0
    %2706 = vmatprep.subr.bf16.mxu0 0
    %2707 = vmatpush1.bf16.msra.mxu0 0
    %2708 = vmatprep.subr.bf16.mxu0 0
    %2709 = vmatpush1.bf16.msra.mxu0 0
    %2710 = vmatprep.subr.bf16.mxu0 0
    %2711 = vmatpush1.bf16.msra.mxu0 0
    %2712 = vmatprep.mubr.bf16.mxu0 0
    %2713 = vmatmul.mubr.bf16.gmra.mrb[0].mxu0 %v2678
    %v2714 = vpop.f32.mrb[0].mxu0
    %v2715 = vadd.f32 0.0, %v2714
    %v2716 = vpop.f32.mrb[0].mxu0
    %v2717 = vpop.f32.mrb[0].mxu0
    %v2718 = vadd.f32 0.0, %v2717
    %v2719 = vpop.f32.mrb[0].mxu0
    %2720 = vdwg.mxu0
    %v2722 = vsel %vm816, %v2627, 0
    %2724 = vmatprep.subr.bf16.mxu0 0
    %2725 = vmatpush1.bf16.msra.mxu0 %v1097
    %2726 = vmatprep.subr.bf16.mxu0 0
    %2727 = vmatpush1.bf16.msra.mxu0 0
    %2728 = vmatprep.subr.bf16.mxu0 0
    %2729 = vmatpush1.bf16.msra.mxu0 0
    %2730 = vmatprep.subr.bf16.mxu0 0
    %2731 = vmatpush1.bf16.msra.mxu0 0
    %2732 = vmatprep.subr.bf16.mxu0 0
    %2733 = vmatpush1.bf16.msra.mxu0 0
    %2734 = vmatprep.subr.bf16.mxu0 0
    %2735 = vmatpush1.bf16.msra.mxu0 0
    %2736 = vmatprep.subr.bf16.mxu0 0
    %2737 = vmatpush1.bf16.msra.mxu0 0
    %2738 = vmatprep.subr.bf16.mxu0 0
    %2739 = vmatpush1.bf16.msra.mxu0 0
    %2740 = vmatprep.subr.bf16.mxu0 0
    %2741 = vmatpush1.bf16.msra.mxu0 0
    %2742 = vmatprep.subr.bf16.mxu0 0
    %2743 = vmatpush1.bf16.msra.mxu0 0
    %2744 = vmatprep.subr.bf16.mxu0 0
    %2745 = vmatpush1.bf16.msra.mxu0 0
    %2746 = vmatprep.subr.bf16.mxu0 0
    %2747 = vmatpush1.bf16.msra.mxu0 0
    %2748 = vmatprep.subr.bf16.mxu0 0
    %2749 = vmatpush1.bf16.msra.mxu0 0
    %2750 = vmatprep.subr.bf16.mxu0 0
    %2751 = vmatpush1.bf16.msra.mxu0 0
    %2752 = vmatprep.subr.bf16.mxu0 0
    %2753 = vmatpush1.bf16.msra.mxu0 0
    %2754 = vmatprep.subr.bf16.mxu0 0
    %2755 = vmatpush1.bf16.msra.mxu0 0
    %2756 = vmatprep.mubr.bf16.mxu0 0
    %2757 = vmatmul.mubr.bf16.gmra.mrb[0].mxu0 %v2722
    %v2758 = vpop.f32.mrb[0].mxu0
    %v2759 = vadd.f32 0.0, %v2758
    %v2760 = vpop.f32.mrb[0].mxu0
    %v2761 = vpop.f32.mrb[0].mxu0
    %v2762 = vadd.f32 0.0, %v2761
    %v2763 = vpop.f32.mrb[0].mxu0
    %2764 = vdwg.mxu0
    %v2766 = vsel %vm816, %v2628, 0
    %2768 = vmatprep.subr.bf16.mxu0 0
    %2769 = vmatpush1.bf16.msra.mxu0 %v1143
    %2770 = vmatprep.subr.bf16.mxu0 0
    %2771 = vmatpush1.bf16.msra.mxu0 0
    %2772 = vmatprep.subr.bf16.mxu0 0
    %2773 = vmatpush1.bf16.msra.mxu0 0
    %2774 = vmatprep.subr.bf16.mxu0 0
    %2775 = vmatpush1.bf16.msra.mxu0 0
    %2776 = vmatprep.subr.bf16.mxu0 0
    %2777 = vmatpush1.bf16.msra.mxu0 0
    %2778 = vmatprep.subr.bf16.mxu0 0
    %2779 = vmatpush1.bf16.msra.mxu0 0
    %2780 = vmatprep.subr.bf16.mxu0 0
    %2781 = vmatpush1.bf16.msra.mxu0 0
    %2782 = vmatprep.subr.bf16.mxu0 0
    %2783 = vmatpush1.bf16.msra.mxu0 0
    %2784 = vmatprep.subr.bf16.mxu0 0
    %2785 = vmatpush1.bf16.msra.mxu0 0
    %2786 = vmatprep.subr.bf16.mxu0 0
    %2787 = vmatpush1.bf16.msra.mxu0 0
    %2788 = vmatprep.subr.bf16.mxu0 0
    %2789 = vmatpush1.bf16.msra.mxu0 0
    %2790 = vmatprep.subr.bf16.mxu0 0
    %2791 = vmatpush1.bf16.msra.mxu0 0
    %2792 = vmatprep.subr.bf16.mxu0 0
    %2793 = vmatpush1.bf16.msra.mxu0 0
    %2794 = vmatprep.subr.bf16.mxu0 0
    %2795 = vmatpush1.bf16.msra.mxu0 0
    %2796 = vmatprep.subr.bf16.mxu0 0
    %2797 = vmatpush1.bf16.msra.mxu0 0
    %2798 = vmatprep.subr.bf16.mxu0 0
    %2799 = vmatpush1.bf16.msra.mxu0 0
    %2800 = vmatprep.mubr.bf16.mxu0 0
    %2801 = vmatmul.mubr.bf16.gmra.mrb[0].mxu0 %v2766
    %v2802 = vpop.f32.mrb[0].mxu0
    %v2803 = vadd.f32 0.0, %v2802
    %v2804 = vpop.f32.mrb[0].mxu0
    %v2805 = vpop.f32.mrb[0].mxu0
    %v2806 = vadd.f32 0.0, %v2805
    %v2807 = vpop.f32.mrb[0].mxu0
    %2808 = vdwg.mxu0
    %v2810 = vsel %vm816, %v2629, 0
    %2812 = vmatprep.subr.bf16.mxu0 0
    %2813 = vmatpush1.bf16.msra.mxu0 %v1189
    %2814 = vmatprep.subr.bf16.mxu0 0
    %2815 = vmatpush1.bf16.msra.mxu0 0
    %2816 = vmatprep.subr.bf16.mxu0 0
    %2817 = vmatpush1.bf16.msra.mxu0 0
    %2818 = vmatprep.subr.bf16.mxu0 0
    %2819 = vmatpush1.bf16.msra.mxu0 0
    %2820 = vmatprep.subr.bf16.mxu0 0
    %2821 = vmatpush1.bf16.msra.mxu0 0
    %2822 = vmatprep.subr.bf16.mxu0 0
    %2823 = vmatpush1.bf16.msra.mxu0 0
    %2824 = vmatprep.subr.bf16.mxu0 0
    %2825 = vmatpush1.bf16.msra.mxu0 0
    %2826 = vmatprep.subr.bf16.mxu0 0
    %2827 = vmatpush1.bf16.msra.mxu0 0
    %2828 = vmatprep.subr.bf16.mxu0 0
    %2829 = vmatpush1.bf16.msra.mxu0 0
    %2830 = vmatprep.subr.bf16.mxu0 0
    %2831 = vmatpush1.bf16.msra.mxu0 0
    %2832 = vmatprep.subr.bf16.mxu0 0
    %2833 = vmatpush1.bf16.msra.mxu0 0
    %2834 = vmatprep.subr.bf16.mxu0 0
    %2835 = vmatpush1.bf16.msra.mxu0 0
    %2836 = vmatprep.subr.bf16.mxu0 0
    %2837 = vmatpush1.bf16.msra.mxu0 0
    %2838 = vmatprep.subr.bf16.mxu0 0
    %2839 = vmatpush1.bf16.msra.mxu0 0
    %2840 = vmatprep.subr.bf16.mxu0 0
    %2841 = vmatpush1.bf16.msra.mxu0 0
    %2842 = vmatprep.subr.bf16.mxu0 0
    %2843 = vmatpush1.bf16.msra.mxu0 0
    %2844 = vmatprep.mubr.bf16.mxu0 0
    %2845 = vmatmul.mubr.bf16.gmra.mrb[0].mxu0 %v2810
    %v2846 = vpop.f32.mrb[0].mxu0
    %v2847 = vadd.f32 0.0, %v2846
    %v2848 = vpop.f32.mrb[0].mxu0
    %v2849 = vpop.f32.mrb[0].mxu0
    %v2850 = vadd.f32 0.0, %v2849
    %v2851 = vpop.f32.mrb[0].mxu0
    %2852 = vdwg.mxu0
    %v2854 = vsel %vm816, %v2630, 0
    %2856 = vmatprep.subr.bf16.mxu0 0
    %2857 = vmatpush1.bf16.msra.mxu0 %v1235
    %2858 = vmatprep.subr.bf16.mxu0 0
    %2859 = vmatpush1.bf16.msra.mxu0 0
    %2860 = vmatprep.subr.bf16.mxu0 0
    %2861 = vmatpush1.bf16.msra.mxu0 0
    %2862 = vmatprep.subr.bf16.mxu0 0
    %2863 = vmatpush1.bf16.msra.mxu0 0
    %2864 = vmatprep.subr.bf16.mxu0 0
    %2865 = vmatpush1.bf16.msra.mxu0 0
    %2866 = vmatprep.subr.bf16.mxu0 0
    %2867 = vmatpush1.bf16.msra.mxu0 0
    %2868 = vmatprep.subr.bf16.mxu0 0
    %2869 = vmatpush1.bf16.msra.mxu0 0
    %2870 = vmatprep.subr.bf16.mxu0 0
    %2871 = vmatpush1.bf16.msra.mxu0 0
    %2872 = vmatprep.subr.bf16.mxu0 0
    %2873 = vmatpush1.bf16.msra.mxu0 0
    %2874 = vmatprep.subr.bf16.mxu0 0
    %2875 = vmatpush1.bf16.msra.mxu0 0
    %2876 = vmatprep.subr.bf16.mxu0 0
    %2877 = vmatpush1.bf16.msra.mxu0 0
    %2878 = vmatprep.subr.bf16.mxu0 0
    %2879 = vmatpush1.bf16.msra.mxu0 0
    %2880 = vmatprep.subr.bf16.mxu0 0
    %2881 = vmatpush1.bf16.msra.mxu0 0
    %2882 = vmatprep.subr.bf16.mxu0 0
    %2883 = vmatpush1.bf16.msra.mxu0 0
    %2884 = vmatprep.subr.bf16.mxu0 0
    %2885 = vmatpush1.bf16.msra.mxu0 0
    %2886 = vmatprep.subr.bf16.mxu0 0
    %2887 = vmatpush1.bf16.msra.mxu0 0
    %2888 = vmatprep.mubr.bf16.mxu0 0
    %2889 = vmatmul.mubr.bf16.gmra.mrb[0].mxu0 %v2854
    %v2890 = vpop.f32.mrb[0].mxu0
    %v2891 = vadd.f32 0.0, %v2890
    %v2892 = vpop.f32.mrb[0].mxu0
    %v2893 = vpop.f32.mrb[0].mxu0
    %v2894 = vadd.f32 0.0, %v2893
    %v2895 = vpop.f32.mrb[0].mxu0
    %2896 = vdwg.mxu0
    %v2898 = vsel %vm816, %v2631, 0
    %2900 = vmatprep.subr.bf16.mxu0 0
    %2901 = vmatpush1.bf16.msra.mxu0 %v1281
    %2902 = vmatprep.subr.bf16.mxu0 0
    %2903 = vmatpush1.bf16.msra.mxu0 0
    %2904 = vmatprep.subr.bf16.mxu0 0
    %2905 = vmatpush1.bf16.msra.mxu0 0
    %2906 = vmatprep.subr.bf16.mxu0 0
    %2907 = vmatpush1.bf16.msra.mxu0 0
    %2908 = vmatprep.subr.bf16.mxu0 0
    %2909 = vmatpush1.bf16.msra.mxu0 0
    %2910 = vmatprep.subr.bf16.mxu0 0
    %2911 = vmatpush1.bf16.msra.mxu0 0
    %2912 = vmatprep.subr.bf16.mxu0 0
    %2913 = vmatpush1.bf16.msra.mxu0 0
    %2914 = vmatprep.subr.bf16.mxu0 0
    %2915 = vmatpush1.bf16.msra.mxu0 0
    %2916 = vmatprep.subr.bf16.mxu0 0
    %2917 = vmatpush1.bf16.msra.mxu0 0
    %2918 = vmatprep.subr.bf16.mxu0 0
    %2919 = vmatpush1.bf16.msra.mxu0 0
    %2920 = vmatprep.subr.bf16.mxu0 0
    %2921 = vmatpush1.bf16.msra.mxu0 0
    %2922 = vmatprep.subr.bf16.mxu0 0
    %2923 = vmatpush1.bf16.msra.mxu0 0
    %2924 = vmatprep.subr.bf16.mxu0 0
    %2925 = vmatpush1.bf16.msra.mxu0 0
    %2926 = vmatprep.subr.bf16.mxu0 0
    %2927 = vmatpush1.bf16.msra.mxu0 0
    %2928 = vmatprep.subr.bf16.mxu0 0
    %2929 = vmatpush1.bf16.msra.mxu0 0
    %2930 = vmatprep.subr.bf16.mxu0 0
    %2931 = vmatpush1.bf16.msra.mxu0 0
    %2932 = vmatprep.mubr.bf16.mxu0 0
    %2933 = vmatmul.mubr.bf16.gmra.mrb[0].mxu0 %v2898
    %v2934 = vpop.f32.mrb[0].mxu0
    %v2935 = vadd.f32 0.0, %v2934
    %v2936 = vpop.f32.mrb[0].mxu0
    %v2937 = vpop.f32.mrb[0].mxu0
    %v2938 = vadd.f32 0.0, %v2937
    %v2939 = vpop.f32.mrb[0].mxu0
    %2940 = vdwg.mxu0
    %v2942 = vsel %vm816, %v2632, 0
    %2944 = vmatprep.subr.bf16.mxu0 0
    %2945 = vmatpush1.bf16.msra.mxu0 %v1327
    %2946 = vmatprep.subr.bf16.mxu0 0
    %2947 = vmatpush1.bf16.msra.mxu0 0
    %2948 = vmatprep.subr.bf16.mxu0 0
    %2949 = vmatpush1.bf16.msra.mxu0 0
    %2950 = vmatprep.subr.bf16.mxu0 0
    %2951 = vmatpush1.bf16.msra.mxu0 0
    %2952 = vmatprep.subr.bf16.mxu0 0
    %2953 = vmatpush1.bf16.msra.mxu0 0
    %2954 = vmatprep.subr.bf16.mxu0 0
    %2955 = vmatpush1.bf16.msra.mxu0 0
    %2956 = vmatprep.subr.bf16.mxu0 0
    %2957 = vmatpush1.bf16.msra.mxu0 0
    %2958 = vmatprep.subr.bf16.mxu0 0
    %2959 = vmatpush1.bf16.msra.mxu0 0
    %2960 = vmatprep.subr.bf16.mxu0 0
    %2961 = vmatpush1.bf16.msra.mxu0 0
    %2962 = vmatprep.subr.bf16.mxu0 0
    %2963 = vmatpush1.bf16.msra.mxu0 0
    %2964 = vmatprep.subr.bf16.mxu0 0
    %2965 = vmatpush1.bf16.msra.mxu0 0
    %2966 = vmatprep.subr.bf16.mxu0 0
    %2967 = vmatpush1.bf16.msra.mxu0 0
    %2968 = vmatprep.subr.bf16.mxu0 0
    %2969 = vmatpush1.bf16.msra.mxu0 0
    %2970 = vmatprep.subr.bf16.mxu0 0
    %2971 = vmatpush1.bf16.msra.mxu0 0
    %2972 = vmatprep.subr.bf16.mxu0 0
    %2973 = vmatpush1.bf16.msra.mxu0 0
    %2974 = vmatprep.subr.bf16.mxu0 0
    %2975 = vmatpush1.bf16.msra.mxu0 0
    %2976 = vmatprep.mubr.bf16.mxu0 0
    %2977 = vmatmul.mubr.bf16.gmra.mrb[0].mxu0 %v2942
    %v2978 = vpop.f32.mrb[0].mxu0
    %v2979 = vadd.f32 0.0, %v2978
    %v2980 = vpop.f32.mrb[0].mxu0
    %v2981 = vpop.f32.mrb[0].mxu0
    %v2982 = vadd.f32 0.0, %v2981
    %v2983 = vpop.f32.mrb[0].mxu0
    %2984 = vdwg.mxu0
    %v2985 = vpack.c.bf16 %v2674, %v2671
    %v2986 = vpack.c.bf16 %v2718, %v2715
    %v2987 = vpack.c.bf16 %v2762, %v2759
    %v2988 = vpack.c.bf16 %v2806, %v2803
    %v2989 = vpack.c.bf16 %v2850, %v2847
    %v2990 = vpack.c.bf16 %v2894, %v2891
    %v2991 = vpack.c.bf16 %v2938, %v2935
    %v2992 = vpack.c.bf16 %v2982, %v2979
    %2993 = vst.msk [vmem:[#allocation2] sm:$0xff] %vm388, %v2985
    %2994 = vst.msk [vmem:[#allocation2 + $0x8] sm:$0xff] %vm388, %v2986
    %2995 = vst.msk [vmem:[#allocation2 + $0x10] sm:$0xff] %vm388, %v2987
    %2996 = vst.msk [vmem:[#allocation2 + $0x18] sm:$0xff] %vm388, %v2988
    %2997 = vst.msk [vmem:[#allocation2 + $0x20] sm:$0xff] %vm388, %v2989
    %2998 = vst.msk [vmem:[#allocation2 + $0x28] sm:$0xff] %vm388, %v2990
    %2999 = vst.msk [vmem:[#allocation2 + $0x30] sm:$0xff] %vm388, %v2991
    %3000 = vst.msk [vmem:[#allocation2 + $0x38] sm:$0xff] %vm388, %v2992
    %3009 = vrot.lane.b32.xlu0 %v2073, 64
    %v3010 = vpop.permute.xlu0 %3009
    %3011 = vrot.lane.b32.xlu0 %v2074, 64
    %v3012 = vpop.permute.xlu0 %3011
    %3013 = vrot.lane.b32.xlu0 %v2075, 64
    %v3014 = vpop.permute.xlu0 %3013
    %3015 = vrot.lane.b32.xlu0 %v2076, 64
    %v3016 = vpop.permute.xlu0 %3015
    %3017 = vrot.lane.b32.xlu0 %v2077, 64
    %v3018 = vpop.permute.xlu0 %3017
    %3019 = vrot.lane.b32.xlu0 %v2078, 64
    %v3020 = vpop.permute.xlu0 %3019
    %3021 = vrot.lane.b32.xlu0 %v2079, 64
    %v3022 = vpop.permute.xlu0 %3021
    %3023 = vrot.lane.b32.xlu0 %v2080, 64
    %v3024 = vpop.permute.xlu0 %3023
    %3033 = vst.msk [vmem:[#allocation2] sm:$0xff] %vm1410, %v3010
    %3034 = vst.msk [vmem:[#allocation2 + $0x8] sm:$0xff] %vm1410, %v3012
    %3035 = vst.msk [vmem:[#allocation2 + $0x10] sm:$0xff] %vm1410, %v3014
    %3036 = vst.msk [vmem:[#allocation2 + $0x18] sm:$0xff] %vm1410, %v3016
    %3037 = vst.msk [vmem:[#allocation2 + $0x20] sm:$0xff] %vm1410, %v3018
    %3038 = vst.msk [vmem:[#allocation2 + $0x28] sm:$0xff] %vm1410, %v3020
    %3039 = vst.msk [vmem:[#allocation2 + $0x30] sm:$0xff] %vm1410, %v3022
    %3040 = vst.msk [vmem:[#allocation2 + $0x38] sm:$0xff] %vm1410, %v3024
    %v3041 = vld [vmem:[#allocation2] sm:$0xff]
    %v3042 = vld [vmem:[#allocation2 + $0x8] sm:$0xff]
    %v3043 = vld [vmem:[#allocation2 + $0x10] sm:$0xff]
    %v3044 = vld [vmem:[#allocation2 + $0x18] sm:$0xff]
    %v3045 = vld [vmem:[#allocation2 + $0x20] sm:$0xff]
    %v3046 = vld [vmem:[#allocation2 + $0x28] sm:$0xff]
    %v3047 = vld [vmem:[#allocation2 + $0x30] sm:$0xff]
    %v3048 = vld [vmem:[#allocation2 + $0x38] sm:$0xff]
    %s3049 = scalar_lea.vmem %s5, 64
    %v3050 = vld [vmem:[%s3049] sm:$0xf]
    %v3051 = vld [vmem:[%s3049 + $0x4] sm:$0xf]
    %v3052 = vld [vmem:[%s3049 + $0x8] sm:$0xf]
    %v3053 = vld [vmem:[%s3049 + $0xc] sm:$0xf]
    %v3054 = vld [vmem:[%s3049 + $0x10] sm:$0xf]
    %v3055 = vld [vmem:[%s3049 + $0x14] sm:$0xf]
    %v3056 = vld [vmem:[%s3049 + $0x18] sm:$0xf]
    %v3057 = vld [vmem:[%s3049 + $0x1c] sm:$0xf]
    %v3058 = vld [vmem:[%s3049 + $0x20] sm:$0xf]
    %v3059 = vld [vmem:[%s3049 + $0x24] sm:$0xf]
    %v3060 = vld [vmem:[%s3049 + $0x28] sm:$0xf]
    %v3061 = vld [vmem:[%s3049 + $0x2c] sm:$0xf]
    %v3062 = vld [vmem:[%s3049 + $0x30] sm:$0xf]
    %v3063 = vld [vmem:[%s3049 + $0x34] sm:$0xf]
    %v3064 = vld [vmem:[%s3049 + $0x38] sm:$0xf]
    %v3065 = vld [vmem:[%s3049 + $0x3c] sm:$0xf]
    %s3066 = scalar_lea.vmem %s6, 1
    %v3067 = vld [vmem:[%s3066] sm:$0x1]
    %v3069 = vlaneseq
    %v3070 = vshrl.u32 %v3069, 7
    %v3071 = vsub.s32 0, %v3070
    %v3072 = vrot.slane %v3067, %v3071
    %v3090 = vunpack.c.l.b16 %v3050
    %v3091 = vunpack.c.l.b16 %v3051
    %v3092 = vunpack.c.l.b16 %v3052
    %v3093 = vunpack.c.l.b16 %v3053
    %v3094 = vunpack.c.l.b16 %v3054
    %v3095 = vunpack.c.l.b16 %v3055
    %v3096 = vunpack.c.l.b16 %v3056
    %v3097 = vunpack.c.l.b16 %v3057
    %v3098 = vunpack.c.l.b16 %v3058
    %v3099 = vunpack.c.l.b16 %v3059
    %v3100 = vunpack.c.l.b16 %v3060
    %v3101 = vunpack.c.l.b16 %v3061
    %v3102 = vunpack.c.l.b16 %v3062
    %v3103 = vunpack.c.l.b16 %v3063
    %v3104 = vunpack.c.l.b16 %v3064
    %v3105 = vunpack.c.l.b16 %v3065
    %v3106 = vpack.c.b16 %v3091, %v3090
    %v3107 = vpack.c.b16 %v3093, %v3092
    %v3108 = vpack.c.b16 %v3095, %v3094
    %v3109 = vpack.c.b16 %v3097, %v3096
    %v3110 = vpack.c.b16 %v3099, %v3098
    %v3111 = vpack.c.b16 %v3101, %v3100
    %v3112 = vpack.c.b16 %v3103, %v3102
    %v3113 = vpack.c.b16 %v3105, %v3104
    %3122 = vmatprep.subr.bf16.mxu0 0
    %3123 = vmatpush1.bf16.msra.mxu0 %v3106
    %3124 = vmatprep.subr.bf16.mxu0 0
    %3125 = vmatpush1.bf16.msra.mxu0 %v3107
    %3126 = vmatprep.subr.bf16.mxu0 0
    %3127 = vmatpush1.bf16.msra.mxu0 %v3108
    %3128 = vmatprep.subr.bf16.mxu0 0
    %3129 = vmatpush1.bf16.msra.mxu0 %v3109
    %3130 = vmatprep.subr.bf16.mxu0 0
    %3131 = vmatpush1.bf16.msra.mxu0 %v3110
    %3132 = vmatprep.subr.bf16.mxu0 0
    %3133 = vmatpush1.bf16.msra.mxu0 %v3111
    %3134 = vmatprep.subr.bf16.mxu0 0
    %3135 = vmatpush1.bf16.msra.mxu0 %v3112
    %3136 = vmatprep.subr.bf16.mxu0 0
    %3137 = vmatpush1.bf16.msra.mxu0 %v3113
    %3138 = vmatprep.subr.bf16.mxu0 0
    %3139 = vmatpush1.bf16.msra.mxu0 0
    %3140 = vmatprep.subr.bf16.mxu0 0
    %3141 = vmatpush1.bf16.msra.mxu0 0
    %3142 = vmatprep.subr.bf16.mxu0 0
    %3143 = vmatpush1.bf16.msra.mxu0 0
    %3144 = vmatprep.subr.bf16.mxu0 0
    %3145 = vmatpush1.bf16.msra.mxu0 0
    %3146 = vmatprep.subr.bf16.mxu0 0
    %3147 = vmatpush1.bf16.msra.mxu0 0
    %3148 = vmatprep.subr.bf16.mxu0 0
    %3149 = vmatpush1.bf16.msra.mxu0 0
    %3150 = vmatprep.subr.bf16.mxu0 0
    %3151 = vmatpush1.bf16.msra.mxu0 0
    %3152 = vmatprep.subr.bf16.mxu0 0
    %3153 = vmatpush1.bf16.msra.mxu0 0
    %3154 = vmatprep.mubr.bf16.mxu0 0
    %3155 = vmatmul.mubr.bf16.gmra.mrb[0].mxu0 %v3041
    %v3156 = vpop.f32.mrb[0].mxu0
    %v3157 = vadd.f32 %v3072, %v3156
    %v3158 = vpop.f32.mrb[0].mxu0
    %v3159 = vpop.f32.mrb[0].mxu0
    %v3160 = vadd.f32 %v3072, %v3159
    %v3161 = vpop.f32.mrb[0].mxu0
    %3162 = vmatprep.mubr.bf16.mxu0 0
    %3163 = vmatmul.mubr.bf16.gmra.mrb[0].mxu0 %v3042
    %v3164 = vpop.f32.mrb[0].mxu0
    %v3165 = vadd.f32 %v3072, %v3164
    %v3166 = vpop.f32.mrb[0].mxu0
    %v3167 = vpop.f32.mrb[0].mxu0
    %v3168 = vadd.f32 %v3072, %v3167
    %v3169 = vpop.f32.mrb[0].mxu0
    %3170 = vmatprep.mubr.bf16.mxu0 0
    %3171 = vmatmul.mubr.bf16.gmra.mrb[0].mxu0 %v3043
    %v3172 = vpop.f32.mrb[0].mxu0
    %v3173 = vadd.f32 %v3072, %v3172
    %v3174 = vpop.f32.mrb[0].mxu0
    %v3175 = vpop.f32.mrb[0].mxu0
    %v3176 = vadd.f32 %v3072, %v3175
    %v3177 = vpop.f32.mrb[0].mxu0
    %3178 = vmatprep.mubr.bf16.mxu0 0
    %3179 = vmatmul.mubr.bf16.gmra.mrb[0].mxu0 %v3044
    %v3180 = vpop.f32.mrb[0].mxu0
    %v3181 = vadd.f32 %v3072, %v3180
    %v3182 = vpop.f32.mrb[0].mxu0
    %v3183 = vpop.f32.mrb[0].mxu0
    %v3184 = vadd.f32 %v3072, %v3183
    %v3185 = vpop.f32.mrb[0].mxu0
    %3186 = vmatprep.mubr.bf16.mxu0 0
    %3187 = vmatmul.mubr.bf16.gmra.mrb[0].mxu0 %v3045
    %v3188 = vpop.f32.mrb[0].mxu0
    %v3189 = vadd.f32 %v3072, %v3188
    %v3190 = vpop.f32.mrb[0].mxu0
    %v3191 = vpop.f32.mrb[0].mxu0
    %v3192 = vadd.f32 %v3072, %v3191
    %v3193 = vpop.f32.mrb[0].mxu0
    %3194 = vmatprep.mubr.bf16.mxu0 0
    %3195 = vmatmul.mubr.bf16.gmra.mrb[0].mxu0 %v3046
    %v3196 = vpop.f32.mrb[0].mxu0
    %v3197 = vadd.f32 %v3072, %v3196
    %v3198 = vpop.f32.mrb[0].mxu0
    %v3199 = vpop.f32.mrb[0].mxu0
    %v3200 = vadd.f32 %v3072, %v3199
    %v3201 = vpop.f32.mrb[0].mxu0
    %3202 = vmatprep.mubr.bf16.mxu0 0
    %3203 = vmatmul.mubr.bf16.gmra.mrb[0].mxu0 %v3047
    %v3204 = vpop.f32.mrb[0].mxu0
    %v3205 = vadd.f32 %v3072, %v3204
    %v3206 = vpop.f32.mrb[0].mxu0
    %v3207 = vpop.f32.mrb[0].mxu0
    %v3208 = vadd.f32 %v3072, %v3207
    %v3209 = vpop.f32.mrb[0].mxu0
    %3210 = vmatprep.mubr.bf16.mxu0 0
    %3211 = vmatmul.mubr.bf16.gmra.mrb[0].mxu0 %v3048
    %v3212 = vpop.f32.mrb[0].mxu0
    %v3213 = vadd.f32 %v3072, %v3212
    %v3214 = vpop.f32.mrb[0].mxu0
    %v3215 = vpop.f32.mrb[0].mxu0
    %v3216 = vadd.f32 %v3072, %v3215
    %v3217 = vpop.f32.mrb[0].mxu0
    %3218 = vdwg.mxu0
    %vm3219 = vcmp.gt.f32.partialorder %v3157, 0.0
    %vm3220 = vcmp.gt.f32.partialorder %v3160, 0.0
    %vm3221 = vcmp.gt.f32.partialorder %v3165, 0.0
    %vm3222 = vcmp.gt.f32.partialorder %v3168, 0.0
    %vm3223 = vcmp.gt.f32.partialorder %v3173, 0.0
    %vm3224 = vcmp.gt.f32.partialorder %v3176, 0.0
    %vm3225 = vcmp.gt.f32.partialorder %v3181, 0.0
    %vm3226 = vcmp.gt.f32.partialorder %v3184, 0.0
    %vm3227 = vcmp.gt.f32.partialorder %v3189, 0.0
    %vm3228 = vcmp.gt.f32.partialorder %v3192, 0.0
    %vm3229 = vcmp.gt.f32.partialorder %v3197, 0.0
    %vm3230 = vcmp.gt.f32.partialorder %v3200, 0.0
    %vm3231 = vcmp.gt.f32.partialorder %v3205, 0.0
    %vm3232 = vcmp.gt.f32.partialorder %v3208, 0.0
    %vm3233 = vcmp.gt.f32.partialorder %v3213, 0.0
    %vm3234 = vcmp.gt.f32.partialorder %v3216, 0.0
    %v3235 = vmul.f32 %v3157, 0.01
    %v3236 = vmul.f32 %v3160, 0.01
    %v3237 = vmul.f32 %v3165, 0.01
    %v3238 = vmul.f32 %v3168, 0.01
    %v3239 = vmul.f32 %v3173, 0.01
    %v3240 = vmul.f32 %v3176, 0.01
    %v3241 = vmul.f32 %v3181, 0.01
    %v3242 = vmul.f32 %v3184, 0.01
    %v3243 = vmul.f32 %v3189, 0.01
    %v3244 = vmul.f32 %v3192, 0.01
    %v3245 = vmul.f32 %v3197, 0.01
    %v3246 = vmul.f32 %v3200, 0.01
    %v3247 = vmul.f32 %v3205, 0.01
    %v3248 = vmul.f32 %v3208, 0.01
    %v3249 = vmul.f32 %v3213, 0.01
    %v3250 = vmul.f32 %v3216, 0.01
    %v3251 = vsel %vm3219, %v3157, %v3235
    %v3252 = vsel %vm3220, %v3160, %v3236
    %v3253 = vsel %vm3221, %v3165, %v3237
    %v3254 = vsel %vm3222, %v3168, %v3238
    %v3255 = vsel %vm3223, %v3173, %v3239
    %v3256 = vsel %vm3224, %v3176, %v3240
    %v3257 = vsel %vm3225, %v3181, %v3241
    %v3258 = vsel %vm3226, %v3184, %v3242
    %v3259 = vsel %vm3227, %v3189, %v3243
    %v3260 = vsel %vm3228, %v3192, %v3244
    %v3261 = vsel %vm3229, %v3197, %v3245
    %v3262 = vsel %vm3230, %v3200, %v3246
    %v3263 = vsel %vm3231, %v3205, %v3247
    %v3264 = vsel %vm3232, %v3208, %v3248
    %v3265 = vsel %vm3233, %v3213, %v3249
    %v3266 = vsel %vm3234, %v3216, %v3250
    %s3267 = scalar_lea.vmem %s7, 1
    %v3268 = vld [vmem:[%s3267] sm:$0x1]
    %v3270 = vlaneseq
    %v3271 = vshrl.u32 %v3270, 7
    %v3272 = vsub.s32 0, %v3271
    %v3273 = vrot.slane %v3268, %v3272
    %v3275 = vmul.f32 %v2057, %v3273
    %v3276 = vmul.f32 %v2058, %v3273
    %v3277 = vmul.f32 %v2059, %v3273
    %v3278 = vmul.f32 %v2060, %v3273
    %v3279 = vmul.f32 %v2061, %v3273
    %v3280 = vmul.f32 %v2062, %v3273
    %v3281 = vmul.f32 %v2063, %v3273
    %v3282 = vmul.f32 %v2064, %v3273
    %v3283 = vmul.f32 %v2065, %v3273
    %v3284 = vmul.f32 %v2066, %v3273
    %v3285 = vmul.f32 %v2067, %v3273
    %v3286 = vmul.f32 %v2068, %v3273
    %v3287 = vmul.f32 %v2069, %v3273
    %v3288 = vmul.f32 %v2070, %v3273
    %v3289 = vmul.f32 %v2071, %v3273
    %v3290 = vmul.f32 %v2072, %v3273
    %v3291 = vsel %vm388, %v3275, 0.0
    %3292 = vadd.xlane.f32.xlu0 %v3291
    %v3293 = vpop.xlane.xlu0 %3292
    %v3294 = vsel %vm388, %v3276, 0.0
    %3295 = vadd.xlane.f32.xlu0 %v3294
    %v3296 = vpop.xlane.xlu0 %3295
    %v3297 = vsel %vm388, %v3277, 0.0
    %3298 = vadd.xlane.f32.xlu0 %v3297
    %v3299 = vpop.xlane.xlu0 %3298
    %v3300 = vsel %vm388, %v3278, 0.0
    %3301 = vadd.xlane.f32.xlu0 %v3300
    %v3302 = vpop.xlane.xlu0 %3301
    %v3303 = vsel %vm388, %v3279, 0.0
    %3304 = vadd.xlane.f32.xlu0 %v3303
    %v3305 = vpop.xlane.xlu0 %3304
    %v3306 = vsel %vm388, %v3280, 0.0
    %3307 = vadd.xlane.f32.xlu0 %v3306
    %v3308 = vpop.xlane.xlu0 %3307
    %v3309 = vsel %vm388, %v3281, 0.0
    %3310 = vadd.xlane.f32.xlu0 %v3309
    %v3311 = vpop.xlane.xlu0 %3310
    %v3312 = vsel %vm388, %v3282, 0.0
    %3313 = vadd.xlane.f32.xlu0 %v3312
    %v3314 = vpop.xlane.xlu0 %3313
    %v3315 = vsel %vm388, %v3283, 0.0
    %3316 = vadd.xlane.f32.xlu0 %v3315
    %v3317 = vpop.xlane.xlu0 %3316
    %v3318 = vsel %vm388, %v3284, 0.0
    %3319 = vadd.xlane.f32.xlu0 %v3318
    %v3320 = vpop.xlane.xlu0 %3319
    %v3321 = vsel %vm388, %v3285, 0.0
    %3322 = vadd.xlane.f32.xlu0 %v3321
    %v3323 = vpop.xlane.xlu0 %3322
    %v3324 = vsel %vm388, %v3286, 0.0
    %3325 = vadd.xlane.f32.xlu0 %v3324
    %v3326 = vpop.xlane.xlu0 %3325
    %v3327 = vsel %vm388, %v3287, 0.0
    %3328 = vadd.xlane.f32.xlu0 %v3327
    %v3329 = vpop.xlane.xlu0 %3328
    %v3330 = vsel %vm388, %v3288, 0.0
    %3331 = vadd.xlane.f32.xlu0 %v3330
    %v3332 = vpop.xlane.xlu0 %3331
    %v3333 = vsel %vm388, %v3289, 0.0
    %3334 = vadd.xlane.f32.xlu0 %v3333
    %v3335 = vpop.xlane.xlu0 %3334
    %v3336 = vsel %vm388, %v3290, 0.0
    %3337 = vadd.xlane.f32.xlu0 %v3336
    %v3338 = vpop.xlane.xlu0 %3337
    %s3339 = scalar_lea.vmem %s8, 1
    %v3340 = vld [vmem:[%s3339] sm:$0x1]
    %v3342 = vlaneseq
    %v3343 = vshrl.u32 %v3342, 7
    %v3344 = vsub.s32 0, %v3343
    %v3345 = vrot.slane %v3340, %v3344
    %v3347 = vadd.f32 %v3293, %v3345
    %v3348 = vadd.f32 %v3296, %v3345
    %v3349 = vadd.f32 %v3299, %v3345
    %v3350 = vadd.f32 %v3302, %v3345
    %v3351 = vadd.f32 %v3305, %v3345
    %v3352 = vadd.f32 %v3308, %v3345
    %v3353 = vadd.f32 %v3311, %v3345
    %v3354 = vadd.f32 %v3314, %v3345
    %v3355 = vadd.f32 %v3317, %v3345
    %v3356 = vadd.f32 %v3320, %v3345
    %v3357 = vadd.f32 %v3323, %v3345
    %v3358 = vadd.f32 %v3326, %v3345
    %v3359 = vadd.f32 %v3329, %v3345
    %v3360 = vadd.f32 %v3332, %v3345
    %v3361 = vadd.f32 %v3335, %v3345
    %v3362 = vadd.f32 %v3338, %v3345
    %v3363 = vxor.u32 %v3347, 2147483648
    %v3364 = vxor.u32 %v3348, 2147483648
    %v3365 = vxor.u32 %v3349, 2147483648
    %v3366 = vxor.u32 %v3350, 2147483648
    %v3367 = vxor.u32 %v3351, 2147483648
    %v3368 = vxor.u32 %v3352, 2147483648
    %v3369 = vxor.u32 %v3353, 2147483648
    %v3370 = vxor.u32 %v3354, 2147483648
    %v3371 = vxor.u32 %v3355, 2147483648
    %v3372 = vxor.u32 %v3356, 2147483648
    %v3373 = vxor.u32 %v3357, 2147483648
    %v3374 = vxor.u32 %v3358, 2147483648
    %v3375 = vxor.u32 %v3359, 2147483648
    %v3376 = vxor.u32 %v3360, 2147483648
    %v3377 = vxor.u32 %v3361, 2147483648
    %v3378 = vxor.u32 %v3362, 2147483648
    %v3379 = vmul.f32 %v3363, 1.442695
    %v3380 = vpow.pop %v3379
    %v3381 = vmul.f32 %v3364, 1.442695
    %v3382 = vpow.pop %v3381
    %v3383 = vmul.f32 %v3365, 1.442695
    %v3384 = vpow.pop %v3383
    %v3385 = vmul.f32 %v3366, 1.442695
    %v3386 = vpow.pop %v3385
    %v3387 = vmul.f32 %v3367, 1.442695
    %v3388 = vpow.pop %v3387
    %v3389 = vmul.f32 %v3368, 1.442695
    %v3390 = vpow.pop %v3389
    %v3391 = vmul.f32 %v3369, 1.442695
    %v3392 = vpow.pop %v3391
    %v3393 = vmul.f32 %v3370, 1.442695
    %v3394 = vpow.pop %v3393
    %v3395 = vmul.f32 %v3371, 1.442695
    %v3396 = vpow.pop %v3395
    %v3397 = vmul.f32 %v3372, 1.442695
    %v3398 = vpow.pop %v3397
    %v3399 = vmul.f32 %v3373, 1.442695
    %v3400 = vpow.pop %v3399
    %v3401 = vmul.f32 %v3374, 1.442695
    %v3402 = vpow.pop %v3401
    %v3403 = vmul.f32 %v3375, 1.442695
    %v3404 = vpow.pop %v3403
    %v3405 = vmul.f32 %v3376, 1.442695
    %v3406 = vpow.pop %v3405
    %v3407 = vmul.f32 %v3377, 1.442695
    %v3408 = vpow.pop %v3407
    %v3409 = vmul.f32 %v3378, 1.442695
    %v3410 = vpow.pop %v3409
    %v3411 = vadd.f32 %v3380, 1.0
    %v3412 = vadd.f32 %v3382, 1.0
    %v3413 = vadd.f32 %v3384, 1.0
    %v3414 = vadd.f32 %v3386, 1.0
    %v3415 = vadd.f32 %v3388, 1.0
    %v3416 = vadd.f32 %v3390, 1.0
    %v3417 = vadd.f32 %v3392, 1.0
    %v3418 = vadd.f32 %v3394, 1.0
    %v3419 = vadd.f32 %v3396, 1.0
    %v3420 = vadd.f32 %v3398, 1.0
    %v3421 = vadd.f32 %v3400, 1.0
    %v3422 = vadd.f32 %v3402, 1.0
    %v3423 = vadd.f32 %v3404, 1.0
    %v3424 = vadd.f32 %v3406, 1.0
    %v3425 = vadd.f32 %v3408, 1.0
    %v3426 = vadd.f32 %v3410, 1.0
    %v3427 = vrcp.pop %v3411
    %v3428 = vmul.f32 1.0, %v3427
    %v3429 = vrcp.pop %v3412
    %v3430 = vmul.f32 1.0, %v3429
    %v3431 = vrcp.pop %v3413
    %v3432 = vmul.f32 1.0, %v3431
    %v3433 = vrcp.pop %v3414
    %v3434 = vmul.f32 1.0, %v3433
    %v3435 = vrcp.pop %v3415
    %v3436 = vmul.f32 1.0, %v3435
    %v3437 = vrcp.pop %v3416
    %v3438 = vmul.f32 1.0, %v3437
    %v3439 = vrcp.pop %v3417
    %v3440 = vmul.f32 1.0, %v3439
    %v3441 = vrcp.pop %v3418
    %v3442 = vmul.f32 1.0, %v3441
    %v3443 = vrcp.pop %v3419
    %v3444 = vmul.f32 1.0, %v3443
    %v3445 = vrcp.pop %v3420
    %v3446 = vmul.f32 1.0, %v3445
    %v3447 = vrcp.pop %v3421
    %v3448 = vmul.f32 1.0, %v3447
    %v3449 = vrcp.pop %v3422
    %v3450 = vmul.f32 1.0, %v3449
    %v3451 = vrcp.pop %v3423
    %v3452 = vmul.f32 1.0, %v3451
    %v3453 = vrcp.pop %v3424
    %v3454 = vmul.f32 1.0, %v3453
    %v3455 = vrcp.pop %v3425
    %v3456 = vmul.f32 1.0, %v3455
    %v3457 = vrcp.pop %v3426
    %v3458 = vmul.f32 1.0, %v3457
    %v3459 = vsub.f32 1.0, %v3428
    %v3460 = vsub.f32 1.0, %v3430
    %v3461 = vsub.f32 1.0, %v3432
    %v3462 = vsub.f32 1.0, %v3434
    %v3463 = vsub.f32 1.0, %v3436
    %v3464 = vsub.f32 1.0, %v3438
    %v3465 = vsub.f32 1.0, %v3440
    %v3466 = vsub.f32 1.0, %v3442
    %v3467 = vsub.f32 1.0, %v3444
    %v3468 = vsub.f32 1.0, %v3446
    %v3469 = vsub.f32 1.0, %v3448
    %v3470 = vsub.f32 1.0, %v3450
    %v3471 = vsub.f32 1.0, %v3452
    %v3472 = vsub.f32 1.0, %v3454
    %v3473 = vsub.f32 1.0, %v3456
    %v3474 = vsub.f32 1.0, %v3458
    %3476 = vset.pattern.permute.xlu0 0
    %3477 = vperm.xlu0 %3476, %v3459
    %v3478 = vpop.permute.xlu0 %3477
    %3481 = vset.pattern.permute.xlu0 0
    %3482 = vperm.xlu0 %3481, %v3460
    %v3483 = vpop.permute.xlu0 %3482
    %3486 = vset.pattern.permute.xlu0 0
    %3487 = vperm.xlu0 %3486, %v3461
    %v3488 = vpop.permute.xlu0 %3487
    %3491 = vset.pattern.permute.xlu0 0
    %3492 = vperm.xlu0 %3491, %v3462
    %v3493 = vpop.permute.xlu0 %3492
    %3496 = vset.pattern.permute.xlu0 0
    %3497 = vperm.xlu0 %3496, %v3463
    %v3498 = vpop.permute.xlu0 %3497
    %3501 = vset.pattern.permute.xlu0 0
    %3502 = vperm.xlu0 %3501, %v3464
    %v3503 = vpop.permute.xlu0 %3502
    %3506 = vset.pattern.permute.xlu0 0
    %3507 = vperm.xlu0 %3506, %v3465
    %v3508 = vpop.permute.xlu0 %3507
    %3511 = vset.pattern.permute.xlu0 0
    %3512 = vperm.xlu0 %3511, %v3466
    %v3513 = vpop.permute.xlu0 %3512
    %3516 = vset.pattern.permute.xlu0 0
    %3517 = vperm.xlu0 %3516, %v3467
    %v3518 = vpop.permute.xlu0 %3517
    %3521 = vset.pattern.permute.xlu0 0
    %3522 = vperm.xlu0 %3521, %v3468
    %v3523 = vpop.permute.xlu0 %3522
    %3526 = vset.pattern.permute.xlu0 0
    %3527 = vperm.xlu0 %3526, %v3469
    %v3528 = vpop.permute.xlu0 %3527
    %3531 = vset.pattern.permute.xlu0 0
    %3532 = vperm.xlu0 %3531, %v3470
    %v3533 = vpop.permute.xlu0 %3532
    %3536 = vset.pattern.permute.xlu0 0
    %3537 = vperm.xlu0 %3536, %v3471
    %v3538 = vpop.permute.xlu0 %3537
    %3541 = vset.pattern.permute.xlu0 0
    %3542 = vperm.xlu0 %3541, %v3472
    %v3543 = vpop.permute.xlu0 %3542
    %3546 = vset.pattern.permute.xlu0 0
    %3547 = vperm.xlu0 %3546, %v3473
    %v3548 = vpop.permute.xlu0 %3547
    %3551 = vset.pattern.permute.xlu0 0
    %3552 = vperm.xlu0 %3551, %v3474
    %v3553 = vpop.permute.xlu0 %3552
    %v3555 = vmul.f32 %v3478, %v3251
    %v3556 = vmul.f32 %v3483, %v3252
    %v3557 = vmul.f32 %v3488, %v3253
    %v3558 = vmul.f32 %v3493, %v3254
    %v3559 = vmul.f32 %v3498, %v3255
    %v3560 = vmul.f32 %v3503, %v3256
    %v3561 = vmul.f32 %v3508, %v3257
    %v3562 = vmul.f32 %v3513, %v3258
    %v3563 = vmul.f32 %v3518, %v3259
    %v3564 = vmul.f32 %v3523, %v3260
    %v3565 = vmul.f32 %v3528, %v3261
    %v3566 = vmul.f32 %v3533, %v3262
    %v3567 = vmul.f32 %v3538, %v3263
    %v3568 = vmul.f32 %v3543, %v3264
    %v3569 = vmul.f32 %v3548, %v3265
    %v3570 = vmul.f32 %v3553, %v3266
    %3572 = vset.pattern.permute.xlu0 0
    %3573 = vperm.xlu0 %3572, %v3428
    %v3574 = vpop.permute.xlu0 %3573
    %3577 = vset.pattern.permute.xlu0 0
    %3578 = vperm.xlu0 %3577, %v3430
    %v3579 = vpop.permute.xlu0 %3578
    %3582 = vset.pattern.permute.xlu0 0
    %3583 = vperm.xlu0 %3582, %v3432
    %v3584 = vpop.permute.xlu0 %3583
    %3587 = vset.pattern.permute.xlu0 0
    %3588 = vperm.xlu0 %3587, %v3434
    %v3589 = vpop.permute.xlu0 %3588
    %3592 = vset.pattern.permute.xlu0 0
    %3593 = vperm.xlu0 %3592, %v3436
    %v3594 = vpop.permute.xlu0 %3593
    %3597 = vset.pattern.permute.xlu0 0
    %3598 = vperm.xlu0 %3597, %v3438
    %v3599 = vpop.permute.xlu0 %3598
    %3602 = vset.pattern.permute.xlu0 0
    %3603 = vperm.xlu0 %3602, %v3440
    %v3604 = vpop.permute.xlu0 %3603
    %3607 = vset.pattern.permute.xlu0 0
    %3608 = vperm.xlu0 %3607, %v3442
    %v3609 = vpop.permute.xlu0 %3608
    %3612 = vset.pattern.permute.xlu0 0
    %3613 = vperm.xlu0 %3612, %v3444
    %v3614 = vpop.permute.xlu0 %3613
    %3617 = vset.pattern.permute.xlu0 0
    %3618 = vperm.xlu0 %3617, %v3446
    %v3619 = vpop.permute.xlu0 %3618
    %3622 = vset.pattern.permute.xlu0 0
    %3623 = vperm.xlu0 %3622, %v3448
    %v3624 = vpop.permute.xlu0 %3623
    %3627 = vset.pattern.permute.xlu0 0
    %3628 = vperm.xlu0 %3627, %v3450
    %v3629 = vpop.permute.xlu0 %3628
    %3632 = vset.pattern.permute.xlu0 0
    %3633 = vperm.xlu0 %3632, %v3452
    %v3634 = vpop.permute.xlu0 %3633
    %3637 = vset.pattern.permute.xlu0 0
    %3638 = vperm.xlu0 %3637, %v3454
    %v3639 = vpop.permute.xlu0 %3638
    %3642 = vset.pattern.permute.xlu0 0
    %3643 = vperm.xlu0 %3642, %v3456
    %v3644 = vpop.permute.xlu0 %3643
    %3647 = vset.pattern.permute.xlu0 0
    %3648 = vperm.xlu0 %3647, %v3458
    %v3649 = vpop.permute.xlu0 %3648
    %v3651 = vmul.f32 %v3574, %v2057
    %v3652 = vmul.f32 %v3579, %v2058
    %v3653 = vmul.f32 %v3584, %v2059
    %v3654 = vmul.f32 %v3589, %v2060
    %v3655 = vmul.f32 %v3594, %v2061
    %v3656 = vmul.f32 %v3599, %v2062
    %v3657 = vmul.f32 %v3604, %v2063
    %v3658 = vmul.f32 %v3609, %v2064
    %v3659 = vmul.f32 %v3614, %v2065
    %v3660 = vmul.f32 %v3619, %v2066
    %v3661 = vmul.f32 %v3624, %v2067
    %v3662 = vmul.f32 %v3629, %v2068
    %v3663 = vmul.f32 %v3634, %v2069
    %v3664 = vmul.f32 %v3639, %v2070
    %v3665 = vmul.f32 %v3644, %v2071
    %v3666 = vmul.f32 %v3649, %v2072
    %v3667 = vadd.f32 %v3555, %v3651
    %v3668 = vadd.f32 %v3556, %v3652
    %v3669 = vadd.f32 %v3557, %v3653
    %v3670 = vadd.f32 %v3558, %v3654
    %v3671 = vadd.f32 %v3559, %v3655
    %v3672 = vadd.f32 %v3560, %v3656
    %v3673 = vadd.f32 %v3561, %v3657
    %v3674 = vadd.f32 %v3562, %v3658
    %v3675 = vadd.f32 %v3563, %v3659
    %v3676 = vadd.f32 %v3564, %v3660
    %v3677 = vadd.f32 %v3565, %v3661
    %v3678 = vadd.f32 %v3566, %v3662
    %v3679 = vadd.f32 %v3567, %v3663
    %v3680 = vadd.f32 %v3568, %v3664
    %v3681 = vadd.f32 %v3569, %v3665
    %v3682 = vadd.f32 %v3570, %v3666
    %v3683 = vmul.f32 %v179, %v3667
    %v3684 = vmul.f32 %v183, %v3668
    %v3685 = vmul.f32 %v190, %v3669
    %v3686 = vmul.f32 %v194, %v3670
    %v3687 = vmul.f32 %v201, %v3671
    %v3688 = vmul.f32 %v205, %v3672
    %v3689 = vmul.f32 %v212, %v3673
    %v3690 = vmul.f32 %v216, %v3674
    %v3691 = vmul.f32 %v223, %v3675
    %v3692 = vmul.f32 %v227, %v3676
    %v3693 = vmul.f32 %v234, %v3677
    %v3694 = vmul.f32 %v238, %v3678
    %v3695 = vmul.f32 %v245, %v3679
    %v3696 = vmul.f32 %v249, %v3680
    %v3697 = vmul.f32 %v256, %v3681
    %v3698 = vmul.f32 %v260, %v3682
    %v3699 = vlaneseq
    %v3700 = vshrl.u32 %v3699, 7
    %v3701 = vsub.s32 0, %v3700
    %v3702 = vrot.slane %v83, %v3701
    %3704 = vbcast.lane.b32.xlu0 %v3702, 256
    %v3705 = vpop.permute.xlu0 %3704
    %v3706 = vlaneseq
    %v3707 = vshrl.u32 %v3706, 7
    %v3708 = vsub.s32 1, %v3707
    %v3709 = vrot.slane %v83, %v3708
    %3711 = vbcast.lane.b32.xlu0 %v3709, 256
    %v3712 = vpop.permute.xlu0 %3711
    %v3713 = vlaneseq
    %v3714 = vshrl.u32 %v3713, 7
    %v3715 = vsub.s32 2, %v3714
    %v3716 = vrot.slane %v83, %v3715
    %3718 = vbcast.lane.b32.xlu0 %v3716, 256
    %v3719 = vpop.permute.xlu0 %3718
    %v3720 = vlaneseq
    %v3721 = vshrl.u32 %v3720, 7
    %v3722 = vsub.s32 3, %v3721
    %v3723 = vrot.slane %v83, %v3722
    %3725 = vbcast.lane.b32.xlu0 %v3723, 256
    %v3726 = vpop.permute.xlu0 %3725
    %v3727 = vlaneseq
    %v3728 = vshrl.u32 %v3727, 7
    %v3729 = vsub.s32 4, %v3728
    %v3730 = vrot.slane %v83, %v3729
    %3732 = vbcast.lane.b32.xlu0 %v3730, 256
    %v3733 = vpop.permute.xlu0 %3732
    %v3734 = vlaneseq
    %v3735 = vshrl.u32 %v3734, 7
    %v3736 = vsub.s32 5, %v3735
    %v3737 = vrot.slane %v83, %v3736
    %3739 = vbcast.lane.b32.xlu0 %v3737, 256
    %v3740 = vpop.permute.xlu0 %3739
    %v3741 = vlaneseq
    %v3742 = vshrl.u32 %v3741, 7
    %v3743 = vsub.s32 6, %v3742
    %v3744 = vrot.slane %v83, %v3743
    %3746 = vbcast.lane.b32.xlu0 %v3744, 256
    %v3747 = vpop.permute.xlu0 %3746
    %v3748 = vlaneseq
    %v3749 = vshrl.u32 %v3748, 7
    %v3750 = vsub.s32 7, %v3749
    %v3751 = vrot.slane %v83, %v3750
    %3753 = vbcast.lane.b32.xlu0 %v3751, 256
    %v3754 = vpop.permute.xlu0 %3753
    %vm3755 = vcmp.eq.f32.partialorder %v3705, 0.0
    %vm3756 = vcmp.eq.f32.partialorder %v3712, 0.0
    %vm3757 = vcmp.eq.f32.partialorder %v3719, 0.0
    %vm3758 = vcmp.eq.f32.partialorder %v3726, 0.0
    %vm3759 = vcmp.eq.f32.partialorder %v3733, 0.0
    %vm3760 = vcmp.eq.f32.partialorder %v3740, 0.0
    %vm3761 = vcmp.eq.f32.partialorder %v3747, 0.0
    %vm3762 = vcmp.eq.f32.partialorder %v3754, 0.0
    %v3763 = vunpack.c.l.bf16 %v42
    %v3764 = vunpack.c.l.bf16 %v43
    %v3765 = vunpack.c.l.bf16 %v44
    %v3766 = vunpack.c.l.bf16 %v45
    %v3767 = vunpack.c.l.bf16 %v46
    %v3768 = vunpack.c.l.bf16 %v47
    %v3769 = vunpack.c.l.bf16 %v48
    %v3770 = vunpack.c.l.bf16 %v49
    %v3771 = vsel %vm3755, 1, 0
    %v3772 = vsel %vm3756, 1, 0
    %v3773 = vsel %vm3757, 1, 0
    %v3774 = vsel %vm3758, 1, 0
    %v3775 = vsel %vm3759, 1, 0
    %v3776 = vsel %vm3760, 1, 0
    %v3777 = vsel %vm3761, 1, 0
    %v3778 = vsel %vm3762, 1, 0
    %vm3779 = vcmp.eq.s32.totalorder %v3771, 1
    %vm3780 = vcmp.eq.s32.totalorder %v3772, 1
    %vm3781 = vcmp.eq.s32.totalorder %v3773, 1
    %vm3782 = vcmp.eq.s32.totalorder %v3774, 1
    %vm3783 = vcmp.eq.s32.totalorder %v3775, 1
    %vm3784 = vcmp.eq.s32.totalorder %v3776, 1
    %vm3785 = vcmp.eq.s32.totalorder %v3777, 1
    %vm3786 = vcmp.eq.s32.totalorder %v3778, 1
    %v3787 = vsel %vm3779, -1e+09, %v3763
    %v3788 = vsel %vm3780, -1e+09, %v3764
    %v3789 = vsel %vm3781, -1e+09, %v3765
    %v3790 = vsel %vm3782, -1e+09, %v3766
    %v3791 = vsel %vm3783, -1e+09, %v3767
    %v3792 = vsel %vm3784, -1e+09, %v3768
    %v3793 = vsel %vm3785, -1e+09, %v3769
    %v3794 = vsel %vm3786, -1e+09, %v3770
    %v3795 = vsel %vm388, %v3787, -inf
    %v3796 = vrot.slane %v3795, 4
    %v3797 = vmax.f32 %v3795, %v3796
    %v3798 = vrot.slane %v3797, 2
    %v3799 = vmax.f32 %v3797, %v3798
    %v3800 = vrot.slane %v3799, 1
    %v3801 = vmax.f32 %v3799, %v3800
    %v3802 = vsel %vm388, %v3788, -inf
    %v3803 = vrot.slane %v3802, 4
    %v3804 = vmax.f32 %v3802, %v3803
    %v3805 = vrot.slane %v3804, 2
    %v3806 = vmax.f32 %v3804, %v3805
    %v3807 = vrot.slane %v3806, 1
    %v3808 = vmax.f32 %v3806, %v3807
    %v3809 = vsel %vm388, %v3789, -inf
    %v3810 = vrot.slane %v3809, 4
    %v3811 = vmax.f32 %v3809, %v3810
    %v3812 = vrot.slane %v3811, 2
    %v3813 = vmax.f32 %v3811, %v3812
    %v3814 = vrot.slane %v3813, 1
    %v3815 = vmax.f32 %v3813, %v3814
    %v3816 = vsel %vm388, %v3790, -inf
    %v3817 = vrot.slane %v3816, 4
    %v3818 = vmax.f32 %v3816, %v3817
    %v3819 = vrot.slane %v3818, 2
    %v3820 = vmax.f32 %v3818, %v3819
    %v3821 = vrot.slane %v3820, 1
    %v3822 = vmax.f32 %v3820, %v3821
    %v3823 = vsel %vm388, %v3791, -inf
    %v3824 = vrot.slane %v3823, 4
    %v3825 = vmax.f32 %v3823, %v3824
    %v3826 = vrot.slane %v3825, 2
    %v3827 = vmax.f32 %v3825, %v3826
    %v3828 = vrot.slane %v3827, 1
    %v3829 = vmax.f32 %v3827, %v3828
    %v3830 = vsel %vm388, %v3792, -inf
    %v3831 = vrot.slane %v3830, 4
    %v3832 = vmax.f32 %v3830, %v3831
    %v3833 = vrot.slane %v3832, 2
    %v3834 = vmax.f32 %v3832, %v3833
    %v3835 = vrot.slane %v3834, 1
    %v3836 = vmax.f32 %v3834, %v3835
    %v3837 = vsel %vm388, %v3793, -inf
    %v3838 = vrot.slane %v3837, 4
    %v3839 = vmax.f32 %v3837, %v3838
    %v3840 = vrot.slane %v3839, 2
    %v3841 = vmax.f32 %v3839, %v3840
    %v3842 = vrot.slane %v3841, 1
    %v3843 = vmax.f32 %v3841, %v3842
    %v3844 = vsel %vm388, %v3794, -inf
    %v3845 = vrot.slane %v3844, 4
    %v3846 = vmax.f32 %v3844, %v3845
    %v3847 = vrot.slane %v3846, 2
    %v3848 = vmax.f32 %v3846, %v3847
    %v3849 = vrot.slane %v3848, 1
    %v3850 = vmax.f32 %v3848, %v3849
    %v3851 = vmul.f32 %v3683, %v3801
    %v3852 = vmul.f32 %v3684, %v3801
    %v3853 = vmul.f32 %v3685, %v3808
    %v3854 = vmul.f32 %v3686, %v3808
    %v3855 = vmul.f32 %v3687, %v3815
    %v3856 = vmul.f32 %v3688, %v3815
    %v3857 = vmul.f32 %v3689, %v3822
    %v3858 = vmul.f32 %v3690, %v3822
    %v3859 = vmul.f32 %v3691, %v3829
    %v3860 = vmul.f32 %v3692, %v3829
    %v3861 = vmul.f32 %v3693, %v3836
    %v3862 = vmul.f32 %v3694, %v3836
    %v3863 = vmul.f32 %v3695, %v3843
    %v3864 = vmul.f32 %v3696, %v3843
    %v3865 = vmul.f32 %v3697, %v3850
    %v3866 = vmul.f32 %v3698, %v3850
    %v3867 = vsel %vm388, %v3851, 0.0
    %3868 = vadd.xlane.f32.xlu0 %v3867
    %v3869 = vpop.xlane.xlu0 %3868
    %v3870 = vsel %vm388, %v3852, 0.0
    %3871 = vadd.xlane.f32.xlu0 %v3870
    %v3872 = vpop.xlane.xlu0 %3871
    %v3873 = vsel %vm388, %v3853, 0.0
    %3874 = vadd.xlane.f32.xlu0 %v3873
    %v3875 = vpop.xlane.xlu0 %3874
    %v3876 = vsel %vm388, %v3854, 0.0
    %3877 = vadd.xlane.f32.xlu0 %v3876
    %v3878 = vpop.xlane.xlu0 %3877
    %v3879 = vsel %vm388, %v3855, 0.0
    %3880 = vadd.xlane.f32.xlu0 %v3879
    %v3881 = vpop.xlane.xlu0 %3880
    %v3882 = vsel %vm388, %v3856, 0.0
    %3883 = vadd.xlane.f32.xlu0 %v3882
    %v3884 = vpop.xlane.xlu0 %3883
    %v3885 = vsel %vm388, %v3857, 0.0
    %3886 = vadd.xlane.f32.xlu0 %v3885
    %v3887 = vpop.xlane.xlu0 %3886
    %v3888 = vsel %vm388, %v3858, 0.0
    %3889 = vadd.xlane.f32.xlu0 %v3888
    %v3890 = vpop.xlane.xlu0 %3889
    %v3891 = vsel %vm388, %v3859, 0.0
    %3892 = vadd.xlane.f32.xlu0 %v3891
    %v3893 = vpop.xlane.xlu0 %3892
    %v3894 = vsel %vm388, %v3860, 0.0
    %3895 = vadd.xlane.f32.xlu0 %v3894
    %v3896 = vpop.xlane.xlu0 %3895
    %v3897 = vsel %vm388, %v3861, 0.0
    %3898 = vadd.xlane.f32.xlu0 %v3897
    %v3899 = vpop.xlane.xlu0 %3898
    %v3900 = vsel %vm388, %v3862, 0.0
    %3901 = vadd.xlane.f32.xlu0 %v3900
    %v3902 = vpop.xlane.xlu0 %3901
    %v3903 = vsel %vm388, %v3863, 0.0
    %3904 = vadd.xlane.f32.xlu0 %v3903
    %v3905 = vpop.xlane.xlu0 %3904
    %v3906 = vsel %vm388, %v3864, 0.0
    %3907 = vadd.xlane.f32.xlu0 %v3906
    %v3908 = vpop.xlane.xlu0 %3907
    %v3909 = vsel %vm388, %v3865, 0.0
    %3910 = vadd.xlane.f32.xlu0 %v3909
    %v3911 = vpop.xlane.xlu0 %3910
    %v3912 = vsel %vm388, %v3866, 0.0
    %3913 = vadd.xlane.f32.xlu0 %v3912
    %v3914 = vpop.xlane.xlu0 %3913
    %vm3915 = vcmp.eq.f32.partialorder %v90, 0.0
    %vm3916 = vcmp.eq.f32.partialorder %v94, 0.0
    %vm3917 = vcmp.eq.f32.partialorder %v101, 0.0
    %vm3918 = vcmp.eq.f32.partialorder %v105, 0.0
    %vm3919 = vcmp.eq.f32.partialorder %v112, 0.0
    %vm3920 = vcmp.eq.f32.partialorder %v116, 0.0
    %vm3921 = vcmp.eq.f32.partialorder %v123, 0.0
    %vm3922 = vcmp.eq.f32.partialorder %v127, 0.0
    %vm3923 = vcmp.eq.f32.partialorder %v134, 0.0
    %vm3924 = vcmp.eq.f32.partialorder %v138, 0.0
    %vm3925 = vcmp.eq.f32.partialorder %v145, 0.0
    %vm3926 = vcmp.eq.f32.partialorder %v149, 0.0
    %vm3927 = vcmp.eq.f32.partialorder %v156, 0.0
    %vm3928 = vcmp.eq.f32.partialorder %v160, 0.0
    %vm3929 = vcmp.eq.f32.partialorder %v167, 0.0
    %vm3930 = vcmp.eq.f32.partialorder %v171, 0.0
    %v3931 = vsel %vm3915, -1e+09, %v3869
    %v3932 = vsel %vm3916, -1e+09, %v3872
    %v3933 = vsel %vm3917, -1e+09, %v3875
    %v3934 = vsel %vm3918, -1e+09, %v3878
    %v3935 = vsel %vm3919, -1e+09, %v3881
    %v3936 = vsel %vm3920, -1e+09, %v3884
    %v3937 = vsel %vm3921, -1e+09, %v3887
    %v3938 = vsel %vm3922, -1e+09, %v3890
    %v3939 = vsel %vm3923, -1e+09, %v3893
    %v3940 = vsel %vm3924, -1e+09, %v3896
    %v3941 = vsel %vm3925, -1e+09, %v3899
    %v3942 = vsel %vm3926, -1e+09, %v3902
    %v3943 = vsel %vm3927, -1e+09, %v3905
    %v3944 = vsel %vm3928, -1e+09, %v3908
    %v3945 = vsel %vm3929, -1e+09, %v3911
    %v3946 = vsel %vm3930, -1e+09, %v3914
    %v3947 = vmax.f32 %v3931, %v3932
    %v3948 = vrot.slane %v3947, 4
    %v3949 = vmax.f32 %v3947, %v3948
    %v3950 = vrot.slane %v3949, 2
    %v3951 = vmax.f32 %v3949, %v3950
    %v3952 = vrot.slane %v3951, 1
    %v3953 = vmax.f32 %v3951, %v3952
    %v3954 = vmax.f32 %v3933, %v3934
    %v3955 = vrot.slane %v3954, 4
    %v3956 = vmax.f32 %v3954, %v3955
    %v3957 = vrot.slane %v3956, 2
    %v3958 = vmax.f32 %v3956, %v3957
    %v3959 = vrot.slane %v3958, 1
    %v3960 = vmax.f32 %v3958, %v3959
    %v3961 = vmax.f32 %v3935, %v3936
    %v3962 = vrot.slane %v3961, 4
    %v3963 = vmax.f32 %v3961, %v3962
    %v3964 = vrot.slane %v3963, 2
    %v3965 = vmax.f32 %v3963, %v3964
    %v3966 = vrot.slane %v3965, 1
    %v3967 = vmax.f32 %v3965, %v3966
    %v3968 = vmax.f32 %v3937, %v3938
    %v3969 = vrot.slane %v3968, 4
    %v3970 = vmax.f32 %v3968, %v3969
    %v3971 = vrot.slane %v3970, 2
    %v3972 = vmax.f32 %v3970, %v3971
    %v3973 = vrot.slane %v3972, 1
    %v3974 = vmax.f32 %v3972, %v3973
    %v3975 = vmax.f32 %v3939, %v3940
    %v3976 = vrot.slane %v3975, 4
    %v3977 = vmax.f32 %v3975, %v3976
    %v3978 = vrot.slane %v3977, 2
    %v3979 = vmax.f32 %v3977, %v3978
    %v3980 = vrot.slane %v3979, 1
    %v3981 = vmax.f32 %v3979, %v3980
    %v3982 = vmax.f32 %v3941, %v3942
    %v3983 = vrot.slane %v3982, 4
    %v3984 = vmax.f32 %v3982, %v3983
    %v3985 = vrot.slane %v3984, 2
    %v3986 = vmax.f32 %v3984, %v3985
    %v3987 = vrot.slane %v3986, 1
    %v3988 = vmax.f32 %v3986, %v3987
    %v3989 = vmax.f32 %v3943, %v3944
    %v3990 = vrot.slane %v3989, 4
    %v3991 = vmax.f32 %v3989, %v3990
    %v3992 = vrot.slane %v3991, 2
    %v3993 = vmax.f32 %v3991, %v3992
    %v3994 = vrot.slane %v3993, 1
    %v3995 = vmax.f32 %v3993, %v3994
    %v3996 = vmax.f32 %v3945, %v3946
    %v3997 = vrot.slane %v3996, 4
    %v3998 = vmax.f32 %v3996, %v3997
    %v3999 = vrot.slane %v3998, 2
    %v4000 = vmax.f32 %v3998, %v3999
    %v4001 = vrot.slane %v4000, 1
    %v4002 = vmax.f32 %v4000, %v4001
    %v4003 = vsub.f32 %v3931, %v3953
    %v4004 = vsub.f32 %v3932, %v3953
    %v4005 = vsub.f32 %v3933, %v3960
    %v4006 = vsub.f32 %v3934, %v3960
    %v4007 = vsub.f32 %v3935, %v3967
    %v4008 = vsub.f32 %v3936, %v3967
    %v4009 = vsub.f32 %v3937, %v3974
    %v4010 = vsub.f32 %v3938, %v3974
    %v4011 = vsub.f32 %v3939, %v3981
    %v4012 = vsub.f32 %v3940, %v3981
    %v4013 = vsub.f32 %v3941, %v3988
    %v4014 = vsub.f32 %v3942, %v3988
    %v4015 = vsub.f32 %v3943, %v3995
    %v4016 = vsub.f32 %v3944, %v3995
    %v4017 = vsub.f32 %v3945, %v4002
    %v4018 = vsub.f32 %v3946, %v4002
    %v4019 = vmul.f32 %v4003, 1.442695
    %v4020 = vpow.pop %v4019
    %v4021 = vmul.f32 %v4004, 1.442695
    %v4022 = vpow.pop %v4021
    %v4023 = vmul.f32 %v4005, 1.442695
    %v4024 = vpow.pop %v4023
    %v4025 = vmul.f32 %v4006, 1.442695
    %v4026 = vpow.pop %v4025
    %v4027 = vmul.f32 %v4007, 1.442695
    %v4028 = vpow.pop %v4027
    %v4029 = vmul.f32 %v4008, 1.442695
    %v4030 = vpow.pop %v4029
    %v4031 = vmul.f32 %v4009, 1.442695
    %v4032 = vpow.pop %v4031
    %v4033 = vmul.f32 %v4010, 1.442695
    %v4034 = vpow.pop %v4033
    %v4035 = vmul.f32 %v4011, 1.442695
    %v4036 = vpow.pop %v4035
    %v4037 = vmul.f32 %v4012, 1.442695
    %v4038 = vpow.pop %v4037
    %v4039 = vmul.f32 %v4013, 1.442695
    %v4040 = vpow.pop %v4039
    %v4041 = vmul.f32 %v4014, 1.442695
    %v4042 = vpow.pop %v4041
    %v4043 = vmul.f32 %v4015, 1.442695
    %v4044 = vpow.pop %v4043
    %v4045 = vmul.f32 %v4016, 1.442695
    %v4046 = vpow.pop %v4045
    %v4047 = vmul.f32 %v4017, 1.442695
    %v4048 = vpow.pop %v4047
    %v4049 = vmul.f32 %v4018, 1.442695
    %v4050 = vpow.pop %v4049
    %v4051 = vadd.f32 %v4020, %v4022
    %v4052 = vrot.slane %v4051, 4
    %v4053 = vadd.f32 %v4051, %v4052
    %v4054 = vrot.slane %v4053, 2
    %v4055 = vadd.f32 %v4053, %v4054
    %v4056 = vrot.slane %v4055, 1
    %v4057 = vadd.f32 %v4055, %v4056
    %v4058 = vadd.f32 %v4024, %v4026
    %v4059 = vrot.slane %v4058, 4
    %v4060 = vadd.f32 %v4058, %v4059
    %v4061 = vrot.slane %v4060, 2
    %v4062 = vadd.f32 %v4060, %v4061
    %v4063 = vrot.slane %v4062, 1
    %v4064 = vadd.f32 %v4062, %v4063
    %v4065 = vadd.f32 %v4028, %v4030
    %v4066 = vrot.slane %v4065, 4
    %v4067 = vadd.f32 %v4065, %v4066
    %v4068 = vrot.slane %v4067, 2
    %v4069 = vadd.f32 %v4067, %v4068
    %v4070 = vrot.slane %v4069, 1
    %v4071 = vadd.f32 %v4069, %v4070
    %v4072 = vadd.f32 %v4032, %v4034
    %v4073 = vrot.slane %v4072, 4
    %v4074 = vadd.f32 %v4072, %v4073
    %v4075 = vrot.slane %v4074, 2
    %v4076 = vadd.f32 %v4074, %v4075
    %v4077 = vrot.slane %v4076, 1
    %v4078 = vadd.f32 %v4076, %v4077
    %v4079 = vadd.f32 %v4036, %v4038
    %v4080 = vrot.slane %v4079, 4
    %v4081 = vadd.f32 %v4079, %v4080
    %v4082 = vrot.slane %v4081, 2
    %v4083 = vadd.f32 %v4081, %v4082
    %v4084 = vrot.slane %v4083, 1
    %v4085 = vadd.f32 %v4083, %v4084
    %v4086 = vadd.f32 %v4040, %v4042
    %v4087 = vrot.slane %v4086, 4
    %v4088 = vadd.f32 %v4086, %v4087
    %v4089 = vrot.slane %v4088, 2
    %v4090 = vadd.f32 %v4088, %v4089
    %v4091 = vrot.slane %v4090, 1
    %v4092 = vadd.f32 %v4090, %v4091
    %v4093 = vadd.f32 %v4044, %v4046
    %v4094 = vrot.slane %v4093, 4
    %v4095 = vadd.f32 %v4093, %v4094
    %v4096 = vrot.slane %v4095, 2
    %v4097 = vadd.f32 %v4095, %v4096
    %v4098 = vrot.slane %v4097, 1
    %v4099 = vadd.f32 %v4097, %v4098
    %v4100 = vadd.f32 %v4048, %v4050
    %v4101 = vrot.slane %v4100, 4
    %v4102 = vadd.f32 %v4100, %v4101
    %v4103 = vrot.slane %v4102, 2
    %v4104 = vadd.f32 %v4102, %v4103
    %v4105 = vrot.slane %v4104, 1
    %v4106 = vadd.f32 %v4104, %v4105
    %v4107 = vrcp.pop %v4057
    %v4108 = vmul.f32 %v4020, %v4107
    %v4109 = vmul.f32 %v4022, %v4107
    %v4110 = vrcp.pop %v4064
    %v4111 = vmul.f32 %v4024, %v4110
    %v4112 = vmul.f32 %v4026, %v4110
    %v4113 = vrcp.pop %v4071
    %v4114 = vmul.f32 %v4028, %v4113
    %v4115 = vmul.f32 %v4030, %v4113
    %v4116 = vrcp.pop %v4078
    %v4117 = vmul.f32 %v4032, %v4116
    %v4118 = vmul.f32 %v4034, %v4116
    %v4119 = vrcp.pop %v4085
    %v4120 = vmul.f32 %v4036, %v4119
    %v4121 = vmul.f32 %v4038, %v4119
    %v4122 = vrcp.pop %v4092
    %v4123 = vmul.f32 %v4040, %v4122
    %v4124 = vmul.f32 %v4042, %v4122
    %v4125 = vrcp.pop %v4099
    %v4126 = vmul.f32 %v4044, %v4125
    %v4127 = vmul.f32 %v4046, %v4125
    %v4128 = vrcp.pop %v4106
    %v4129 = vmul.f32 %v4048, %v4128
    %v4130 = vmul.f32 %v4050, %v4128
    %v4131 = vmul.f32 %v4108, %v3683
    %v4132 = vmul.f32 %v4109, %v3684
    %v4133 = vmul.f32 %v4111, %v3685
    %v4134 = vmul.f32 %v4112, %v3686
    %v4135 = vmul.f32 %v4114, %v3687
    %v4136 = vmul.f32 %v4115, %v3688
    %v4137 = vmul.f32 %v4117, %v3689
    %v4138 = vmul.f32 %v4118, %v3690
    %v4139 = vmul.f32 %v4120, %v3691
    %v4140 = vmul.f32 %v4121, %v3692
    %v4141 = vmul.f32 %v4123, %v3693
    %v4142 = vmul.f32 %v4124, %v3694
    %v4143 = vmul.f32 %v4126, %v3695
    %v4144 = vmul.f32 %v4127, %v3696
    %v4145 = vmul.f32 %v4129, %v3697
    %v4146 = vmul.f32 %v4130, %v3698
    %v4147 = vsel %vm388, %v4131, 0.0
    %v4148 = vsel %vm388, %v4132, 0.0
    %v4149 = vadd.f32 %v4147, %v4148
    %v4150 = vrot.slane %v4149, 4
    %v4151 = vadd.f32 %v4149, %v4150
    %v4152 = vrot.slane %v4151, 2
    %v4153 = vadd.f32 %v4151, %v4152
    %v4154 = vrot.slane %v4153, 1
    %v4155 = vadd.f32 %v4153, %v4154
    %v4156 = vsel %vm388, %v4133, 0.0
    %v4157 = vsel %vm388, %v4134, 0.0
    %v4158 = vadd.f32 %v4156, %v4157
    %v4159 = vrot.slane %v4158, 4
    %v4160 = vadd.f32 %v4158, %v4159
    %v4161 = vrot.slane %v4160, 2
    %v4162 = vadd.f32 %v4160, %v4161
    %v4163 = vrot.slane %v4162, 1
    %v4164 = vadd.f32 %v4162, %v4163
    %v4165 = vsel %vm388, %v4135, 0.0
    %v4166 = vsel %vm388, %v4136, 0.0
    %v4167 = vadd.f32 %v4165, %v4166
    %v4168 = vrot.slane %v4167, 4
    %v4169 = vadd.f32 %v4167, %v4168
    %v4170 = vrot.slane %v4169, 2
    %v4171 = vadd.f32 %v4169, %v4170
    %v4172 = vrot.slane %v4171, 1
    %v4173 = vadd.f32 %v4171, %v4172
    %v4174 = vsel %vm388, %v4137, 0.0
    %v4175 = vsel %vm388, %v4138, 0.0
    %v4176 = vadd.f32 %v4174, %v4175
    %v4177 = vrot.slane %v4176, 4
    %v4178 = vadd.f32 %v4176, %v4177
    %v4179 = vrot.slane %v4178, 2
    %v4180 = vadd.f32 %v4178, %v4179
    %v4181 = vrot.slane %v4180, 1
    %v4182 = vadd.f32 %v4180, %v4181
    %v4183 = vsel %vm388, %v4139, 0.0
    %v4184 = vsel %vm388, %v4140, 0.0
    %v4185 = vadd.f32 %v4183, %v4184
    %v4186 = vrot.slane %v4185, 4
    %v4187 = vadd.f32 %v4185, %v4186
    %v4188 = vrot.slane %v4187, 2
    %v4189 = vadd.f32 %v4187, %v4188
    %v4190 = vrot.slane %v4189, 1
    %v4191 = vadd.f32 %v4189, %v4190
    %v4192 = vsel %vm388, %v4141, 0.0
    %v4193 = vsel %vm388, %v4142, 0.0
    %v4194 = vadd.f32 %v4192, %v4193
    %v4195 = vrot.slane %v4194, 4
    %v4196 = vadd.f32 %v4194, %v4195
    %v4197 = vrot.slane %v4196, 2
    %v4198 = vadd.f32 %v4196, %v4197
    %v4199 = vrot.slane %v4198, 1
    %v4200 = vadd.f32 %v4198, %v4199
    %v4201 = vsel %vm388, %v4143, 0.0
    %v4202 = vsel %vm388, %v4144, 0.0
    %v4203 = vadd.f32 %v4201, %v4202
    %v4204 = vrot.slane %v4203, 4
    %v4205 = vadd.f32 %v4203, %v4204
    %v4206 = vrot.slane %v4205, 2
    %v4207 = vadd.f32 %v4205, %v4206
    %v4208 = vrot.slane %v4207, 1
    %v4209 = vadd.f32 %v4207, %v4208
    %v4210 = vsel %vm388, %v4145, 0.0
    %v4211 = vsel %vm388, %v4146, 0.0
    %v4212 = vadd.f32 %v4210, %v4211
    %v4213 = vrot.slane %v4212, 4
    %v4214 = vadd.f32 %v4212, %v4213
    %v4215 = vrot.slane %v4214, 2
    %v4216 = vadd.f32 %v4214, %v4215
    %v4217 = vrot.slane %v4216, 1
    %v4218 = vadd.f32 %v4216, %v4217
    %v4219 = vpack.c.bf16 %v4155, %v4155
    %v4220 = vpack.c.bf16 %v4164, %v4164
    %v4221 = vpack.c.bf16 %v4173, %v4173
    %v4222 = vpack.c.bf16 %v4182, %v4182
    %v4223 = vpack.c.bf16 %v4191, %v4191
    %v4224 = vpack.c.bf16 %v4200, %v4200
    %v4225 = vpack.c.bf16 %v4209, %v4209
    %v4226 = vpack.c.bf16 %v4218, %v4218
    %v4227 = vld [vmem:[%s9] sm:$0xf]
    %v4228 = vld [vmem:[%s9 + $0x4] sm:$0xf]
    %v4229 = vld [vmem:[%s9 + $0x8] sm:$0xf]
    %v4230 = vld [vmem:[%s9 + $0xc] sm:$0xf]
    %v4231 = vld [vmem:[%s9 + $0x10] sm:$0xf]
    %v4232 = vld [vmem:[%s9 + $0x14] sm:$0xf]
    %v4233 = vld [vmem:[%s9 + $0x18] sm:$0xf]
    %v4234 = vld [vmem:[%s9 + $0x1c] sm:$0xf]
    %v4235 = vld [vmem:[%s10] sm:$0x1]
    %v4237 = vlaneseq
    %v4238 = vshrl.u32 %v4237, 7
    %v4239 = vsub.s32 0, %v4238
    %v4240 = vrot.slane %v4235, %v4239
    %v4250 = vunpack.c.l.b16 %v4219
    %v4251 = vunpack.c.l.b16 %v4220
    %v4252 = vunpack.c.l.b16 %v4221
    %v4253 = vunpack.c.l.b16 %v4222
    %v4254 = vunpack.c.l.b16 %v4223
    %v4255 = vunpack.c.l.b16 %v4224
    %v4256 = vunpack.c.l.b16 %v4225
    %v4257 = vunpack.c.l.b16 %v4226
    %vm4258 = vcmask 1041409
    %v4259 = vsel %vm4258, %v4251, %v4250
    %vm4260 = vcmask 1042434
    %v4261 = vsel %vm4260, %v4252, %v4259
    %vm4262 = vcmask 1043459
    %v4263 = vsel %vm4262, %v4253, %v4261
    %vm4264 = vcmask 1044484
    %v4265 = vsel %vm4264, %v4254, %v4263
    %vm4266 = vcmask 1045509
    %v4267 = vsel %vm4266, %v4255, %v4265
    %vm4268 = vcmask 1046534
    %v4269 = vsel %vm4268, %v4256, %v4267
    %vm4270 = vcmask 1047559
    %v4271 = vsel %vm4270, %v4257, %v4269
    %v4272 = vpack.c.b16 %v4271, %v4271
    %v4281 = vunpack.c.l.b16 %v4227
    %v4282 = vunpack.c.l.b16 %v4228
    %v4283 = vunpack.c.l.b16 %v4229
    %v4284 = vunpack.c.l.b16 %v4230
    %v4285 = vunpack.c.l.b16 %v4231
    %v4286 = vunpack.c.l.b16 %v4232
    %v4287 = vunpack.c.l.b16 %v4233
    %v4288 = vunpack.c.l.b16 %v4234
    %v4289 = vpack.c.b16 %v4282, %v4281
    %v4290 = vpack.c.b16 %v4284, %v4283
    %v4291 = vpack.c.b16 %v4286, %v4285
    %v4292 = vpack.c.b16 %v4288, %v4287
    %v4298 = vsel %vm388, %v4272, 0
    %4300 = vmatprep.subr.bf16.mxu0 0
    %4301 = vmatpush1.bf16.msra.mxu0 %v4289
    %4302 = vmatprep.subr.bf16.mxu0 0
    %4303 = vmatpush1.bf16.msra.mxu0 %v4290
    %4304 = vmatprep.subr.bf16.mxu0 0
    %4305 = vmatpush1.bf16.msra.mxu0 %v4291
    %4306 = vmatprep.subr.bf16.mxu0 0
    %4307 = vmatpush1.bf16.msra.mxu0 %v4292
    %4308 = vmatprep.subr.bf16.mxu0 0
    %4309 = vmatpush1.bf16.msra.mxu0 0
    %4310 = vmatprep.subr.bf16.mxu0 0
    %4311 = vmatpush1.bf16.msra.mxu0 0
    %4312 = vmatprep.subr.bf16.mxu0 0
    %4313 = vmatpush1.bf16.msra.mxu0 0
    %4314 = vmatprep.subr.bf16.mxu0 0
    %4315 = vmatpush1.bf16.msra.mxu0 0
    %4316 = vmatprep.subr.bf16.mxu0 0
    %4317 = vmatpush1.bf16.msra.mxu0 0
    %4318 = vmatprep.subr.bf16.mxu0 0
    %4319 = vmatpush1.bf16.msra.mxu0 0
    %4320 = vmatprep.subr.bf16.mxu0 0
    %4321 = vmatpush1.bf16.msra.mxu0 0
    %4322 = vmatprep.subr.bf16.mxu0 0
    %4323 = vmatpush1.bf16.msra.mxu0 0
    %4324 = vmatprep.subr.bf16.mxu0 0
    %4325 = vmatpush1.bf16.msra.mxu0 0
    %4326 = vmatprep.subr.bf16.mxu0 0
    %4327 = vmatpush1.bf16.msra.mxu0 0
    %4328 = vmatprep.subr.bf16.mxu0 0
    %4329 = vmatpush1.bf16.msra.mxu0 0
    %4330 = vmatprep.subr.bf16.mxu0 0
    %4331 = vmatpush1.bf16.msra.mxu0 0
    %4332 = vmatprep.mubr.bf16.mxu0 0
    %4333 = vmatmul.mubr.bf16.gmra.mrb[0].mxu0 %v4298
    %v4334 = vpop.f32.mrb[0].mxu0
    %v4335 = vadd.f32 %v4240, %v4334
    %v4336 = vpop.f32.mrb[0].mxu0
    %v4337 = vpop.f32.mrb[0].mxu0
    %v4338 = vpop.f32.mrb[0].mxu0
    %4339 = vdwg.mxu0
    %vm4340 = vcmask 23552
    %4341 = vst.msk [vmem:[%s11] sm:$0xff] %vm4340, %v4335
    %v4358 = vlaneseq
    %v4359 = vand.u32 %v4358, 127
    %v4360 = vlaneseq
    %v4361 = vshrl.u32 %v4360, 7
    %v4362 = vsub.s32 %v4359, %v4361
    %v4363 = vrot.slane %v4108, %v4362
    %v4364 = vadd.s32 %v4359, 4294967288
    %v4365 = vlaneseq
    %v4366 = vshrl.u32 %v4365, 7
    %v4367 = vsub.s32 %v4364, %v4366
    %v4368 = vrot.slane %v4109, %v4367
    %vm4369 = vcmask 130112
    %v4370 = vsel %vm4369, %v4368, %v4363
    %v4371 = vlaneseq
    %v4372 = vshrl.u32 %v4371, 7
    %v4373 = vsub.s32 %v4359, %v4372
    %v4374 = vrot.slane %v4111, %v4373
    %v4375 = vlaneseq
    %v4376 = vshrl.u32 %v4375, 7
    %v4377 = vsub.s32 %v4364, %v4376
    %v4378 = vrot.slane %v4112, %v4377
    %v4379 = vsel %vm4369, %v4378, %v4374
    %v4380 = vlaneseq
    %v4381 = vshrl.u32 %v4380, 7
    %v4382 = vsub.s32 %v4359, %v4381
    %v4383 = vrot.slane %v4114, %v4382
    %v4384 = vlaneseq
    %v4385 = vshrl.u32 %v4384, 7
    %v4386 = vsub.s32 %v4364, %v4385
    %v4387 = vrot.slane %v4115, %v4386
    %v4388 = vsel %vm4369, %v4387, %v4383
    %v4389 = vlaneseq
    %v4390 = vshrl.u32 %v4389, 7
    %v4391 = vsub.s32 %v4359, %v4390
    %v4392 = vrot.slane %v4117, %v4391
    %v4393 = vlaneseq
    %v4394 = vshrl.u32 %v4393, 7
    %v4395 = vsub.s32 %v4364, %v4394
    %v4396 = vrot.slane %v4118, %v4395
    %v4397 = vsel %vm4369, %v4396, %v4392
    %v4398 = vlaneseq
    %v4399 = vshrl.u32 %v4398, 7
    %v4400 = vsub.s32 %v4359, %v4399
    %v4401 = vrot.slane %v4120, %v4400
    %v4402 = vlaneseq
    %v4403 = vshrl.u32 %v4402, 7
    %v4404 = vsub.s32 %v4364, %v4403
    %v4405 = vrot.slane %v4121, %v4404
    %v4406 = vsel %vm4369, %v4405, %v4401
    %v4407 = vlaneseq
    %v4408 = vshrl.u32 %v4407, 7
    %v4409 = vsub.s32 %v4359, %v4408
    %v4410 = vrot.slane %v4123, %v4409
    %v4411 = vlaneseq
    %v4412 = vshrl.u32 %v4411, 7
    %v4413 = vsub.s32 %v4364, %v4412
    %v4414 = vrot.slane %v4124, %v4413
    %v4415 = vsel %vm4369, %v4414, %v4410
    %v4416 = vlaneseq
    %v4417 = vshrl.u32 %v4416, 7
    %v4418 = vsub.s32 %v4359, %v4417
    %v4419 = vrot.slane %v4126, %v4418
    %v4420 = vlaneseq
    %v4421 = vshrl.u32 %v4420, 7
    %v4422 = vsub.s32 %v4364, %v4421
    %v4423 = vrot.slane %v4127, %v4422
    %v4424 = vsel %vm4369, %v4423, %v4419
    %v4425 = vlaneseq
    %v4426 = vshrl.u32 %v4425, 7
    %v4427 = vsub.s32 %v4359, %v4426
    %v4428 = vrot.slane %v4129, %v4427
    %v4429 = vlaneseq
    %v4430 = vshrl.u32 %v4429, 7
    %v4431 = vsub.s32 %v4364, %v4430
    %v4432 = vrot.slane %v4130, %v4431
    %v4433 = vsel %vm4369, %v4432, %v4428
    %v4434 = vsel %vm4258, %v4379, %v4370
    %v4435 = vsel %vm4260, %v4388, %v4434
    %v4436 = vsel %vm4262, %v4397, %v4435
    %v4437 = vsel %vm4264, %v4406, %v4436
    %v4438 = vsel %vm4266, %v4415, %v4437
    %v4439 = vsel %vm4268, %v4424, %v4438
    %v4440 = vsel %vm4270, %v4433, %v4439
    %vm4442 = vcmask 130048
    %4443 = vst.msk [vmem:[#allocation3] sm:$0xff] %vm4442, %v4440
    // Predicated region
    $region46: #{tpu_custom_call.1} parent=1 // pred_check
      _
    $region47: #{tpu_custom_call.1} parent=1 // pred_check_branch
      %4445 = sbr.rel (0) target = $region49
    $region48: #{tpu_custom_call.1} parent=1 // pred_region
      _
    $region49: #{tpu_custom_call.1} parent=1 // pred_fallthru
      _
    // Predicated region
    $region50: #{tpu_custom_call.1} parent=1 // pred_check
      _
    $region51: #{tpu_custom_call.1} parent=1 // pred_check_branch
      %4447 = sbr.rel (0) target = $region53
    $region52: #{tpu_custom_call.1} parent=1 // pred_region
      %s4449 = ssub.s32 128, 128
      %4450 = vsyncadd [#allocation4], %s4449
      %s4452 = sshll.u32 [#allocation3], 4
      %s4453 = int_to_ptr.vmem [resolvable:$true] %s4452
      %4455 = dma.vmem_to_hbm [thread:$0]  %s4453, 128, %s12, [#allocation4]
    $region53: #{tpu_custom_call.1} parent=1 // pred_fallthru
      _
    // Predicated region
    $region54: #{tpu_custom_call.1} parent=1 // pred_check
      _
    $region55: #{tpu_custom_call.1} parent=1 // pred_check_branch
      %4457 = sbr.rel (0) target = $region57
    $region56: #{tpu_custom_call.1} parent=1 // pred_region
      _
    $region57: #{tpu_custom_call.1} parent=1 // pred_fallthru
      _
    // Predicated region
    $region58: #{tpu_custom_call.1} parent=1 // pred_check
      _
    $region59: #{tpu_custom_call.1} parent=1 // pred_check_branch
      %4459 = sbr.rel (0) target = $region61
    $region60: #{tpu_custom_call.1} parent=1 // pred_region
      %4460 = dma.done [#allocation4], 128
    $region61: #{tpu_custom_call.1} parent=1 // pred_fallthru
      _
    %4461 = vsyncpa [#allocation4], 1

</llo_original>
